<compile_context>
chip_gen: v7x
topology: tpu7x:2x2x1
jax: 0.10.0
libtpu: 0.0.40
codegen_flags: <defaults>
</compile_context>

<pallas_src>
import jax
import jax.numpy as jnp
from jax.experimental import pallas as pl
from jax.experimental.pallas import tpu as pltpu


# ----------------------------------------------------------------------------
# Model dimensions (small, consistent with the module's forward)
# ----------------------------------------------------------------------------
B = 2            # batch
L = 8            # sequence length
VOCAB = 100      # synthetic vocab
H = 32           # bert hidden size
NH = 2           # attention heads
DH = H // NH     # head dim
I_FF = 64        # bert intermediate size
H_LSTM = 16      # lstm_hidden_dim -> BiLSTM output = 2*H_LSTM = 32
NUM_LABELS = 5   # num_labels
LN_EPS = 1e-12

# ---- packed "vectors" slab rows (f32, (VEC_ROWS, 128)) ----
ROW_LN_E_G, ROW_LN_E_B = 0, 1
ROW_LN1_G, ROW_LN1_B = 2, 3
ROW_LN2_G, ROW_LN2_B = 4, 5
ROW_B_QKV = 6
ROW_BO = 7
ROW_B1 = 8
ROW_B2 = 9
ROW_B_LSTM = 10
ROW_B_FC = 11
ROW_CRF_START = 12
ROW_CRF_END = 13
ROW_CRF_TRANS = 16          # rows 16..20 hold the (5,5) transition matrix
VEC_ROWS = 24

# ---- packed weight slab lane-block offsets (bf16, (H, WMAT_COLS)) ----
COL_QKV = 0                 # (H, 3H) head-major fused QKV
COL_WO = 128                # (H, H)
COL_W1 = 256                # (H, I_FF)
COL_WIH = 384               # (H, 8*H_LSTM)
COL_WHH = 512               # (2*H_LSTM, 8*H_LSTM)
COL_WFC = 640               # rows 0:16 = W_fc fwd half, rows 16:32 = bwd half
WMAT_COLS = 768

# ---- packed 32-column slab row offsets (bf16, (C32_ROWS, H)) ----
VOCAB_PAD = 128             # word embedding rows 0:128 (vocab padded 100 -> 128)
ROW_POS = 128               # position embedding rows 128:136
ROW_W2 = 144                # FFN second matrix rows 144:208
C32_ROWS = 208


# ----------------------------------------------------------------------------
# The single fused forward kernel
# ----------------------------------------------------------------------------
def _fused_forward_kernel(ids_ref, mask_ref, vec_ref, wmat_ref, c32_ref, tags_ref):
    f32 = jnp.float32
    bf16 = jnp.bfloat16

    def mm(a, b):  # bf16 MXU matmul, f32 accumulate (b already bf16)
        return jnp.dot(a.astype(bf16), b, preferred_element_type=f32)

    def layer_norm(x, g, b):
        mu = jnp.mean(x, axis=-1, keepdims=True)
        xc = x - mu
        var = jnp.mean(xc * xc, axis=-1, keepdims=True)
        return xc * jax.lax.rsqrt(var + LN_EPS) * g + b

    def sigmoid(x):  # exp + approx-reciprocal: both on the EUP slot
        return pl.reciprocal(1.0 + jnp.exp(-x), approx=True)

    def gelu(x):
        # TODO(synk): exact erf GELU (HuggingFace BERT); tanh approximation used here.
        return 0.5 * x * (1.0 + jnp.tanh(0.7978845608028654 * (x + 0.044715 * x * x * x)))

    # ---------------- packed-parameter views (static slab slices) ----------------
    def vrow(r, w):
        return vec_ref[r:r + 1, 0:w]

    ln_e_g, ln_e_b = vrow(ROW_LN_E_G, H), vrow(ROW_LN_E_B, H)
    ln1_g, ln1_b = vrow(ROW_LN1_G, H), vrow(ROW_LN1_B, H)
    ln2_g, ln2_b = vrow(ROW_LN2_G, H), vrow(ROW_LN2_B, H)
    b_qkv = vrow(ROW_B_QKV, 3 * H)
    bo = vrow(ROW_BO, H)
    b1 = vrow(ROW_B1, I_FF)
    b2 = vrow(ROW_B2, H)
    b_lstm = vrow(ROW_B_LSTM, 8 * H_LSTM)
    b_fc = vrow(ROW_B_FC, NUM_LABELS)
    crf_start = vrow(ROW_CRF_START, NUM_LABELS)
    crf_end = vrow(ROW_CRF_END, NUM_LABELS)
    trans = vec_ref[ROW_CRF_TRANS:ROW_CRF_TRANS + NUM_LABELS, 0:NUM_LABELS]     # (T, T)

    w_qkv = wmat_ref[:, COL_QKV:COL_QKV + 3 * H]                                # head-major
    w1 = wmat_ref[:, COL_W1:COL_W1 + I_FF]
    w_ih = wmat_ref[:, COL_WIH:COL_WIH + 8 * H_LSTM]
    w_hh = wmat_ref[:, COL_WHH:COL_WHH + 8 * H_LSTM]
    wo_rows = [wmat_ref[h * DH:(h + 1) * DH, COL_WO:COL_WO + H] for h in range(NH)]
    wfc_f = wmat_ref[0:H_LSTM, COL_WFC:COL_WFC + NUM_LABELS]
    wfc_b = wmat_ref[H_LSTM:2 * H_LSTM, COL_WFC:COL_WFC + NUM_LABELS]

    word_emb = c32_ref[0:VOCAB_PAD, :]                                          # (128, H)
    pos_emb = c32_ref[ROW_POS:ROW_POS + L, :]                                   # (L, H)
    w2 = c32_ref[ROW_W2:ROW_W2 + I_FF, :]                                       # (I_FF, H)

    # ---------------- fused embedding gather (one-hot matmul on the MXU) --------
    ids = ids_ref[...]                                                          # (B*L, 1) int32
    viota = jax.lax.broadcasted_iota(jnp.int32, (B * L, VOCAB_PAD), 1)
    onehot = jnp.where(viota == ids, 1.0, 0.0).astype(bf16)                     # (B*L, 128)
    pos_tiled = jnp.concatenate([pos_emb] * B, axis=0)                          # (B*L, H)
    emb = jnp.dot(onehot, word_emb, preferred_element_type=f32) + pos_tiled.astype(f32)

    maskf = mask_ref[...].astype(f32)                                           # (B, L)

    # ---------------- mini-BERT encoder ----------------
    x = layer_norm(emb, ln_e_g, ln_e_b)
    qkv = mm(x, w_qkv) + b_qkv                                                  # (B*L, 3H) head-major
    neg_bias = (1.0 - maskf) * (-1e9)
    scale = 1.0 / (DH ** 0.5)

    attn_rows = []
    for b in range(B):                       # static unroll: all (b, h) tiles in one step
        r0 = b * L
        bias_row = neg_bias[b:b + 1, :]                                         # (1, L)
        attn_b = jnp.zeros((L, H), f32)
        for h in range(NH):
            base = 3 * h * DH                # head-major layout: [Q_h | K_h | V_h]
            qs = qkv[r0:r0 + L, base:base + DH]
            ks = qkv[r0:r0 + L, base + DH:base + 2 * DH]
            vs = qkv[r0:r0 + L, base + 2 * DH:base + 3 * DH]
            # contract over DH on both sides (no explicit K transpose in source)
            s = jax.lax.dot_general(qs.astype(bf16), ks.astype(bf16),
                                    (((1,), (1,)), ((), ())),
                                    preferred_element_type=f32) * scale + bias_row
            m = jnp.max(s, axis=-1, keepdims=True)
            p = jnp.exp(s - m)
            p = p * pl.reciprocal(jnp.sum(p, axis=-1, keepdims=True), approx=True)
            head_out = jnp.dot(p.astype(bf16), vs.astype(bf16), preferred_element_type=f32)
            # fold the head straight into the output projection (no lane concat)
            attn_b = attn_b + mm(head_out, wo_rows[h])
        attn_rows.append(attn_b)
    attn_out = jnp.concatenate(attn_rows, axis=0) + bo                          # (B*L, H)

    x1 = layer_norm(x + attn_out, ln1_g, ln1_b)
    ffn = gelu(mm(x1, w1) + b1)
    ffn = mm(ffn, w2) + b2
    hidden = layer_norm(x1 + ffn, ln2_g, ln2_b)                                 # (B*L, H)

    # ---------------- BiLSTM (fwd + bwd fused per timestep) + emissions ----------
    # gate/lane layout over 8*H_LSTM = 128 lanes: [i_f|i_b|f_f|f_b|o_f|o_b|g_f|g_b]
    gdim = 2 * H_LSTM
    pin = mm(hidden, w_ih) + b_lstm                                             # (B*L, 128)
    pin3 = pin.reshape(B, L, 4 * gdim)

    lane = jax.lax.broadcasted_iota(jnp.int32, (1, 4 * gdim), 1)
    is_fwd_col = jnp.bitwise_and(lane, gdim - 1) < H_LSTM                       # direction mask

    hcat = jnp.zeros((B, gdim), f32)          # [h_fwd | h_bwd]
    ccat = jnp.zeros((B, gdim), f32)
    e_fwd = [None] * L
    e_bwd = [None] * L
    for t in range(L):                        # static unroll; one recurrent matmul per step
        tb = L - 1 - t
        pre = jnp.where(is_fwd_col, pin3[:, t, :], pin3[:, tb, :])              # (B, 128)
        g = pre + mm(hcat, w_hh)                                                # (B, 128)
        sig = sigmoid(g[:, 0:3 * gdim])        # ONE sigmoid over [i_f i_b | f_f f_b | o_f o_b]
        i_g = sig[:, 0:gdim]
        f_g = sig[:, gdim:2 * gdim]
        o_g = sig[:, 2 * gdim:3 * gdim]
        g_g = jnp.tanh(g[:, 3 * gdim:4 * gdim])
        ccat = f_g * ccat + i_g * g_g
        hcat = o_g * jnp.tanh(ccat)
        # per-timestep partial emissions (off the recurrence critical path, no concats)
        e_fwd[t] = mm(hcat[:, 0:H_LSTM], wfc_f)                                 # (B, T)
        e_bwd[tb] = mm(hcat[:, H_LSTM:gdim], wfc_b)                             # (B, T)

    e_list = [e_fwd[t] + e_bwd[t] + b_fc for t in range(L)]                     # emissions per step

    # ---------------- CRF Viterbi decode (batched over B on sublanes) -----------
    T = NUM_LABELS
    jj = jax.lax.broadcasted_iota(jnp.int32, (B, T), 1)

    score = crf_start + e_list[0]                                               # (B, T)
    hist = []
    for t in range(1, L):
        best = score[:, 0:1] + trans[0:1, :]                                    # prev tag 0
        bp = jnp.zeros((B, T), jnp.int32)
        for i in range(1, T):                 # running first-max over previous tags
            cand = score[:, i:i + 1] + trans[i:i + 1, :]
            take = cand > best
            bp = jnp.where(take, i, bp)
            best = jnp.maximum(best, cand)
        m_t = maskf[:, t:t + 1]                                                 # (B, 1)
        score = jnp.where(m_t > 0.0, best + e_list[t], score)
        hist.append((bp, m_t))

    score = score + crf_end
    best_final = jnp.max(score, axis=1, keepdims=True)
    cur = jnp.min(jnp.where(score == best_final, jj, T), axis=1, keepdims=True)  # (B,1) int32

    # integer backtrace: one lane max-reduce per step, no float one-hot round trip
    pos = jax.lax.broadcasted_iota(jnp.int32, (B, L), 1)
    tags = jnp.where(pos == (L - 1), cur, 0)                                    # (B, L) int32
    for t in range(L - 1, 0, -1):
        bp, m_t = hist[t - 1]
        prev = jnp.max(jnp.where(jj == cur, bp, -1), axis=1, keepdims=True)     # (B,1) gather
        cur = jnp.where(m_t > 0.0, prev, cur)  # padded positions replicate current tag
        tags = tags + jnp.where(pos == (t - 1), cur, 0)

    tags_ref[...] = tags                                                        # one (B, L) store


# ----------------------------------------------------------------------------
# Host-side parameter init + slab packing (deterministic, synthetic)
# ----------------------------------------------------------------------------
def _pack_bilstm(w_ih_f, w_hh_f, b_f, w_ih_b, w_hh_b, b_b, hdim):
    """Pack per-direction LSTM weights (source gate order i,f,g,o) into the fused
    layout [i_f|i_b|f_f|f_b|o_f|o_b|g_f|g_b] (sigmoid gates first, tanh gate last)."""
    src = [0, 1, 3, 2]                      # dest block order [i, f, o, g]
    h_in = w_ih_f.shape[0]
    wih = jnp.zeros((h_in, 8 * hdim), jnp.float32)
    whh = jnp.zeros((2 * hdim, 8 * hdim), jnp.float32)
    bias = jnp.zeros((1, 8 * hdim), jnp.float32)
    for m, s in enumerate(src):
        cf = slice(m * 2 * hdim, m * 2 * hdim + hdim)            # forward columns
        cb = slice(m * 2 * hdim + hdim, (m + 1) * 2 * hdim)      # backward columns
        sk = slice(s * hdim, (s + 1) * hdim)
        wih = wih.at[:, cf].set(w_ih_f[:, sk])
        wih = wih.at[:, cb].set(w_ih_b[:, sk])
        whh = whh.at[:hdim, cf].set(w_hh_f[:, sk])
        whh = whh.at[hdim:, cb].set(w_hh_b[:, sk])
        bias = bias.at[:, cf].set(b_f[:, sk])
        bias = bias.at[:, cb].set(b_b[:, sk])
    return wih, whh, bias


def init_params(key):
    ks = iter(jax.random.split(key, 64))

    def n(shape, s=0.02):
        return (s * jax.random.normal(next(ks), shape)).astype(jnp.float32)

    z = lambda shape: jnp.zeros(shape, jnp.float32)
    o = lambda shape: jnp.ones(shape, jnp.float32)

    # TODO(synk): load real pretrained BERT weights; synthetic deterministic init here.
    word_emb, pos_emb = n((VOCAB, H)), n((L, H))
    ln_e_g, ln_e_b = o((1, H)), z((1, H))
    wq, wk, wv = n((H, H)), n((H, H)), n((H, H))
    b_qkv = z((1, 3 * H))
    wo, bo = n((H, H)), z((1, H))
    ln1_g, ln1_b = o((1, H)), z((1, H))
    w1, b1 = n((H, I_FF)), z((1, I_FF))
    w2, b2 = n((I_FF, H)), z((1, H))
    ln2_g, ln2_b = o((1, H)), z((1, H))
    w_fc, b_fc = n((2 * H_LSTM, NUM_LABELS), 0.1), z((1, NUM_LABELS))
    crf_start = n((1, NUM_LABELS), 0.1)
    crf_end = n((1, NUM_LABELS), 0.1)
    crf_trans = n((NUM_LABELS, NUM_LABELS), 0.1)

    # BiLSTM per-direction weights (x @ W layout; bias = b_ih + b_hh), packed fused.
    w_ih_f, w_hh_f, b_f = (n((H, 4 * H_LSTM), 0.1), n((H_LSTM, 4 * H_LSTM), 0.1),
                           n((1, 4 * H_LSTM), 0.1))
    w_ih_b, w_hh_b, b_b = (n((H, 4 * H_LSTM), 0.1), n((H_LSTM, 4 * H_LSTM), 0.1),
                           n((1, 4 * H_LSTM), 0.1))
    wih_c, whh_c, blstm_c = _pack_bilstm(w_ih_f, w_hh_f, b_f, w_ih_b, w_hh_b, b_b, H_LSTM)

    # head-major fused QKV layout: per head [Q_h | K_h | V_h]
    def head_major(mat3h):
        blocks = []
        for h in range(NH):
            for tsel in range(3):
                blocks.append(mat3h[..., tsel * H + h * DH: tsel * H + (h + 1) * DH])
        return jnp.concatenate(blocks, axis=-1)

    w_qkv_hm = head_major(jnp.concatenate([wq, wk, wv], axis=1))
    b_qkv_hm = head_major(b_qkv)

    # ---- "vectors" slab: all LN/bias/CRF vectors + transition matrix (f32) ----
    vec = jnp.zeros((VEC_ROWS, 128), jnp.float32)

    def setrow(v, r, x):
        return v.at[r, :x.shape[1]].set(x[0])

    vec = setrow(vec, ROW_LN_E_G, ln_e_g)
    vec = setrow(vec, ROW_LN_E_B, ln_e_b)
    vec = setrow(vec, ROW_LN1_G, ln1_g)
    vec = setrow(vec, ROW_LN1_B, ln1_b)
    vec = setrow(vec, ROW_LN2_G, ln2_g)
    vec = setrow(vec, ROW_LN2_B, ln2_b)
    vec = setrow(vec, ROW_B_QKV, b_qkv_hm)
    vec = setrow(vec, ROW_BO, bo)
    vec = setrow(vec, ROW_B1, b1)
    vec = setrow(vec, ROW_B2, b2)
    vec = setrow(vec, ROW_B_LSTM, blstm_c)
    vec = setrow(vec, ROW_B_FC, b_fc)
    vec = setrow(vec, ROW_CRF_START, crf_start)
    vec = setrow(vec, ROW_CRF_END, crf_end)
    vec = vec.at[ROW_CRF_TRANS:ROW_CRF_TRANS + NUM_LABELS, :NUM_LABELS].set(crf_trans)

    # ---- weight slab: every matrix starts on a 128-lane boundary (bf16) ----
    wmat = jnp.zeros((H, WMAT_COLS), jnp.float32)
    wmat = wmat.at[:, COL_QKV:COL_QKV + 3 * H].set(w_qkv_hm)
    wmat = wmat.at[:, COL_WO:COL_WO + H].set(wo)
    wmat = wmat.at[:, COL_W1:COL_W1 + I_FF].set(w1)
    wmat = wmat.at[:, COL_WIH:COL_WIH + 8 * H_LSTM].set(wih_c)
    wmat = wmat.at[:, COL_WHH:COL_WHH + 8 * H_LSTM].set(whh_c)
    wmat = wmat.at[:H_LSTM, COL_WFC:COL_WFC + NUM_LABELS].set(w_fc[:H_LSTM])
    wmat = wmat.at[H_LSTM:2 * H_LSTM, COL_WFC:COL_WFC + NUM_LABELS].set(w_fc[H_LSTM:])
    wmat = wmat.astype(jnp.bfloat16)

    # ---- 32-column slab: word embeddings (vocab padded to 128), pos emb, W2 (bf16) ----
    c32 = jnp.zeros((C32_ROWS, H), jnp.float32)
    c32 = c32.at[:VOCAB].set(word_emb)
    c32 = c32.at[ROW_POS:ROW_POS + L].set(pos_emb)
    c32 = c32.at[ROW_W2:ROW_W2 + I_FF].set(w2)
    c32 = c32.astype(jnp.bfloat16)

    return {"vec": vec, "wmat": wmat, "col32": c32}


# ----------------------------------------------------------------------------
# Full forward (decode / inference branch of BertBiLSTMCRF) — ONE pallas_call
# ----------------------------------------------------------------------------
@jax.jit
def bert_bilstm_crf_forward(params, input_ids, attention_mask):
    bsz, seq_len = input_ids.shape
    ids2d = input_ids.reshape(bsz * seq_len, 1).astype(jnp.int32)   # only wrapper-side glue

    vmem = pltpu.MemorySpace.VMEM
    return pl.pallas_call(
        _fused_forward_kernel,
        out_shape=jax.ShapeDtypeStruct((bsz, seq_len), jnp.int32),
        in_specs=[pl.BlockSpec(memory_space=vmem)] * 5,
        out_specs=pl.BlockSpec(memory_space=vmem),
        cost_estimate=pl.CostEstimate(flops=700_000, transcendentals=5_000,
                                      bytes_accessed=80_000),
    )(ids2d, attention_mask.astype(jnp.int32),
      params["vec"], params["wmat"], params["col32"])


# ----------------------------------------------------------------------------
if __name__ == "__main__":
    key = jax.random.PRNGKey(0)
    k_param, k_ids = jax.random.split(key)
    params = init_params(k_param)

    input_ids = jax.random.randint(k_ids, (B, L), 0, VOCAB, dtype=jnp.int32)
    attention_mask = jnp.ones((B, L), dtype=jnp.int32)

    tags = bert_bilstm_crf_forward(params, input_ids, attention_mask)
    jax.block_until_ready(tags)
    assert tags.shape == (B, L) and tags.dtype == jnp.int32
    assert bool(jnp.all((tags >= 0) & (tags < NUM_LABELS)))
    print("KERNEL_OK")
</pallas_src>

<mosaic_0001>
module attributes {stable_mosaic.version = 11 : i64} {
  func.func @_fused_forward_kernel(%arg0: memref<16x1xi32, #tpu.memory_space<vmem>>, %arg1: memref<2x8xi32, #tpu.memory_space<vmem>>, %arg2: memref<24x128xf32, #tpu.memory_space<vmem>>, %arg3: memref<32x768xbf16, #tpu.memory_space<vmem>>, %arg4: memref<208x32xbf16, #tpu.memory_space<vmem>>, %arg5: memref<2x8xi32, #tpu.memory_space<vmem>>) attributes {dimension_semantics = [], scalar_prefetch = 0 : i64, scratch_operands = 0 : i64, tpu.core_type = #tpu.core_type<tc>} {
    %c0 = arith.constant 0 : index
    %c0_0 = arith.constant 0 : index
    %0 = vector.load %arg2[%c0, %c0_0] : memref<24x128xf32, #tpu.memory_space<vmem>>, vector<1x32xf32>
    %c1 = arith.constant 1 : index
    %c0_1 = arith.constant 0 : index
    %1 = vector.load %arg2[%c1, %c0_1] : memref<24x128xf32, #tpu.memory_space<vmem>>, vector<1x32xf32>
    %c2 = arith.constant 2 : index
    %c0_2 = arith.constant 0 : index
    %2 = vector.load %arg2[%c2, %c0_2] : memref<24x128xf32, #tpu.memory_space<vmem>>, vector<1x32xf32>
    %c3 = arith.constant 3 : index
    %c0_3 = arith.constant 0 : index
    %3 = vector.load %arg2[%c3, %c0_3] : memref<24x128xf32, #tpu.memory_space<vmem>>, vector<1x32xf32>
    %c4 = arith.constant 4 : index
    %c0_4 = arith.constant 0 : index
    %4 = vector.load %arg2[%c4, %c0_4] : memref<24x128xf32, #tpu.memory_space<vmem>>, vector<1x32xf32>
    %c5 = arith.constant 5 : index
    %c0_5 = arith.constant 0 : index
    %5 = vector.load %arg2[%c5, %c0_5] : memref<24x128xf32, #tpu.memory_space<vmem>>, vector<1x32xf32>
    %c6 = arith.constant 6 : index
    %c0_6 = arith.constant 0 : index
    %6 = vector.load %arg2[%c6, %c0_6] : memref<24x128xf32, #tpu.memory_space<vmem>>, vector<1x96xf32>
    %c7 = arith.constant 7 : index
    %c0_7 = arith.constant 0 : index
    %7 = vector.load %arg2[%c7, %c0_7] : memref<24x128xf32, #tpu.memory_space<vmem>>, vector<1x32xf32>
    %c8 = arith.constant 8 : index
    %c0_8 = arith.constant 0 : index
    %8 = vector.load %arg2[%c8, %c0_8] : memref<24x128xf32, #tpu.memory_space<vmem>>, vector<1x64xf32>
    %c9 = arith.constant 9 : index
    %c0_9 = arith.constant 0 : index
    %9 = vector.load %arg2[%c9, %c0_9] : memref<24x128xf32, #tpu.memory_space<vmem>>, vector<1x32xf32>
    %c10 = arith.constant 10 : index
    %c0_10 = arith.constant 0 : index
    %10 = vector.load %arg2[%c10, %c0_10] : memref<24x128xf32, #tpu.memory_space<vmem>>, vector<1x128xf32>
    %c11 = arith.constant 11 : index
    %c0_11 = arith.constant 0 : index
    %11 = vector.load %arg2[%c11, %c0_11] : memref<24x128xf32, #tpu.memory_space<vmem>>, vector<1x5xf32>
    %c12 = arith.constant 12 : index
    %c0_12 = arith.constant 0 : index
    %12 = vector.load %arg2[%c12, %c0_12] : memref<24x128xf32, #tpu.memory_space<vmem>>, vector<1x5xf32>
    %c13 = arith.constant 13 : index
    %c0_13 = arith.constant 0 : index
    %13 = vector.load %arg2[%c13, %c0_13] : memref<24x128xf32, #tpu.memory_space<vmem>>, vector<1x5xf32>
    %c16 = arith.constant 16 : index
    %c0_14 = arith.constant 0 : index
    %14 = vector.load %arg2[%c16, %c0_14] : memref<24x128xf32, #tpu.memory_space<vmem>>, vector<5x5xf32>
    %c0_15 = arith.constant 0 : index
    %c0_16 = arith.constant 0 : index
    %15 = vector.load %arg3[%c0_15, %c0_16] : memref<32x768xbf16, #tpu.memory_space<vmem>>, vector<32x96xbf16>
    %c0_17 = arith.constant 0 : index
    %c256 = arith.constant 256 : index
    %16 = vector.load %arg3[%c0_17, %c256] : memref<32x768xbf16, #tpu.memory_space<vmem>>, vector<32x64xbf16>
    %c0_18 = arith.constant 0 : index
    %c384 = arith.constant 384 : index
    %17 = vector.load %arg3[%c0_18, %c384] : memref<32x768xbf16, #tpu.memory_space<vmem>>, vector<32x128xbf16>
    %c0_19 = arith.constant 0 : index
    %c512 = arith.constant 512 : index
    %18 = vector.load %arg3[%c0_19, %c512] : memref<32x768xbf16, #tpu.memory_space<vmem>>, vector<32x128xbf16>
    %c0_20 = arith.constant 0 : index
    %c128 = arith.constant 128 : index
    %19 = vector.load %arg3[%c0_20, %c128] : memref<32x768xbf16, #tpu.memory_space<vmem>>, vector<16x32xbf16>
    %c16_21 = arith.constant 16 : index
    %c128_22 = arith.constant 128 : index
    %20 = vector.load %arg3[%c16_21, %c128_22] : memref<32x768xbf16, #tpu.memory_space<vmem>>, vector<16x32xbf16>
    %c0_23 = arith.constant 0 : index
    %c640 = arith.constant 640 : index
    %21 = vector.load %arg3[%c0_23, %c640] : memref<32x768xbf16, #tpu.memory_space<vmem>>, vector<16x5xbf16>
    %c16_24 = arith.constant 16 : index
    %c640_25 = arith.constant 640 : index
    %22 = vector.load %arg3[%c16_24, %c640_25] : memref<32x768xbf16, #tpu.memory_space<vmem>>, vector<16x5xbf16>
    %c0_26 = arith.constant 0 : index
    %c0_27 = arith.constant 0 : index
    %23 = vector.load %arg4[%c0_26, %c0_27] : memref<208x32xbf16, #tpu.memory_space<vmem>>, vector<128x32xbf16>
    %c128_28 = arith.constant 128 : index
    %c0_29 = arith.constant 0 : index
    %24 = vector.load %arg4[%c128_28, %c0_29] : memref<208x32xbf16, #tpu.memory_space<vmem>>, vector<8x32xbf16>
    %c144 = arith.constant 144 : index
    %c0_30 = arith.constant 0 : index
    %25 = vector.load %arg4[%c144, %c0_30] : memref<208x32xbf16, #tpu.memory_space<vmem>>, vector<64x32xbf16>
    %c0_31 = arith.constant 0 : index
    %c0_32 = arith.constant 0 : index
    %26 = vector.load %arg0[%c0_31, %c0_32] : memref<16x1xi32, #tpu.memory_space<vmem>>, vector<16x1xi32>
    %27 = tpu.iota {dimensions = array<i32: 1>} : vector<16x128xi32>
    %28 = vector.broadcast %26 : vector<16x1xi32> to vector<16x128xi32>
    %29 = arith.cmpi eq, %27, %28 : vector<16x128xi32>
    %cst = arith.constant 1.000000e+00 : f32
    %cst_33 = arith.constant 0.000000e+00 : f32
    %30 = vector.broadcast %cst : f32 to vector<16x128xf32>
    %31 = vector.broadcast %cst_33 : f32 to vector<16x128xf32>
    %32 = arith.select %29, %30, %31 : vector<16x128xi1>, vector<16x128xf32>
    %33 = arith.truncf %32 : vector<16x128xf32> to vector<16x128xbf16>
    %34 = tpu.concatenate %24, %24 in 0 : vector<8x32xbf16>, vector<8x32xbf16> -> vector<16x32xbf16>
    %cst_34 = arith.constant dense<0.000000e+00> : vector<16x32xf32>
    %35 = tpu.matmul %33, %23, %cst_34 {dimension_numbers = #tpu.dot_dimension_numbers<[1], [0], [0], [1], [0, 0, 1, 1], [], []>} : vector<16x128xbf16>, vector<128x32xbf16>, vector<16x32xf32> -> vector<16x32xf32>
    %36 = arith.extf %34 : vector<16x32xbf16> to vector<16x32xf32>
    %37 = arith.addf %35, %36 : vector<16x32xf32>
    %c0_35 = arith.constant 0 : index
    %c0_36 = arith.constant 0 : index
    %38 = vector.load %arg1[%c0_35, %c0_36] : memref<2x8xi32, #tpu.memory_space<vmem>>, vector<2x8xi32>
    %39 = arith.sitofp %38 : vector<2x8xi32> to vector<2x8xf32>
    %cst_37 = arith.constant dense<0.000000e+00> : vector<16xf32>
    %40 = vector.multi_reduction <add>, %37, %cst_37 [1] : vector<16x32xf32> to vector<16xf32>
    %41 = vector.shape_cast %40 : vector<16xf32> to vector<16x1xf32>
    %cst_38 = arith.constant 3.200000e+01 : f32
    %42 = vector.broadcast %cst_38 : f32 to vector<16x1xf32>
    %43 = arith.divf %41, %42 : vector<16x1xf32>
    %44 = vector.broadcast %43 : vector<16x1xf32> to vector<16x32xf32>
    %45 = arith.subf %37, %44 : vector<16x32xf32>
    %46 = arith.mulf %45, %45 : vector<16x32xf32>
    %cst_39 = arith.constant dense<0.000000e+00> : vector<16xf32>
    %47 = vector.multi_reduction <add>, %46, %cst_39 [1] : vector<16x32xf32> to vector<16xf32>
    %48 = vector.shape_cast %47 : vector<16xf32> to vector<16x1xf32>
    %cst_40 = arith.constant 3.200000e+01 : f32
    %49 = vector.broadcast %cst_40 : f32 to vector<16x1xf32>
    %50 = arith.divf %48, %49 : vector<16x1xf32>
    %cst_41 = arith.constant 9.99999996E-13 : f32
    %51 = vector.broadcast %cst_41 : f32 to vector<16x1xf32>
    %52 = arith.addf %50, %51 : vector<16x1xf32>
    %53 = math.rsqrt %52 : vector<16x1xf32>
    %54 = vector.broadcast %53 : vector<16x1xf32> to vector<16x32xf32>
    %55 = arith.mulf %45, %54 : vector<16x32xf32>
    %56 = vector.broadcast %0 : vector<1x32xf32> to vector<16x32xf32>
    %57 = arith.mulf %55, %56 : vector<16x32xf32>
    %58 = vector.broadcast %1 : vector<1x32xf32> to vector<16x32xf32>
    %59 = arith.addf %57, %58 : vector<16x32xf32>
    %60 = arith.truncf %59 : vector<16x32xf32> to vector<16x32xbf16>
    %cst_42 = arith.constant dense<0.000000e+00> : vector<16x96xf32>
    %61 = tpu.matmul %60, %15, %cst_42 {dimension_numbers = #tpu.dot_dimension_numbers<[1], [0], [0], [1], [0, 0, 1, 1], [], []>} : vector<16x32xbf16>, vector<32x96xbf16>, vector<16x96xf32> -> vector<16x96xf32>
    %62 = vector.broadcast %6 : vector<1x96xf32> to vector<16x96xf32>
    %63 = arith.addf %61, %62 : vector<16x96xf32>
    %cst_43 = arith.constant 1.000000e+00 : f32
    %64 = vector.broadcast %cst_43 : f32 to vector<2x8xf32>
    %65 = arith.subf %64, %39 : vector<2x8xf32>
    %cst_44 = arith.constant -1.000000e+09 : f32
    %66 = vector.broadcast %cst_44 : f32 to vector<2x8xf32>
    %67 = arith.mulf %65, %66 : vector<2x8xf32>
    %68 = vector.extract_strided_slice %67 {offsets = [0, 0], sizes = [1, 8], strides = [1, 1]} : vector<2x8xf32> to vector<1x8xf32>
    %cst_45 = arith.constant 0.000000e+00 : f32
    %69 = vector.broadcast %cst_45 : f32 to vector<8x32xf32>
    %70 = vector.extract_strided_slice %63 {offsets = [0, 0], sizes = [8, 16], strides = [1, 1]} : vector<16x96xf32> to vector<8x16xf32>
    %71 = vector.extract_strided_slice %63 {offsets = [0, 16], sizes = [8, 16], strides = [1, 1]} : vector<16x96xf32> to vector<8x16xf32>
    %72 = vector.extract_strided_slice %63 {offsets = [0, 32], sizes = [8, 16], strides = [1, 1]} : vector<16x96xf32> to vector<8x16xf32>
    %73 = arith.truncf %70 : vector<8x16xf32> to vector<8x16xbf16>
    %74 = arith.truncf %71 : vector<8x16xf32> to vector<8x16xbf16>
    %cst_46 = arith.constant dense<0.000000e+00> : vector<8x8xf32>
    %75 = tpu.matmul %73, %74, %cst_46 {dimension_numbers = #tpu.dot_dimension_numbers<[1], [1], [0], [0], [0, 0, 1, 0], [], []>} : vector<8x16xbf16>, vector<8x16xbf16>, vector<8x8xf32> -> vector<8x8xf32>
    %cst_47 = arith.constant 2.500000e-01 : f32
    %76 = vector.broadcast %cst_47 : f32 to vector<8x8xf32>
    %77 = arith.mulf %75, %76 : vector<8x8xf32>
    %78 = vector.broadcast %68 : vector<1x8xf32> to vector<8x8xf32>
    %79 = arith.addf %77, %78 : vector<8x8xf32>
    %cst_48 = arith.constant dense<0xFF800000> : vector<8xf32>
    %80 = vector.multi_reduction <maximumf>, %79, %cst_48 [1] : vector<8x8xf32> to vector<8xf32>
    %81 = vector.shape_cast %80 : vector<8xf32> to vector<8x1xf32>
    %82 = vector.broadcast %81 : vector<8x1xf32> to vector<8x8xf32>
    %83 = arith.subf %79, %82 : vector<8x8xf32>
    %84 = math.exp %83 : vector<8x8xf32>
    %cst_49 = arith.constant dense<0.000000e+00> : vector<8xf32>
    %85 = vector.multi_reduction <add>, %84, %cst_49 [1] : vector<8x8xf32> to vector<8xf32>
    %86 = vector.shape_cast %85 : vector<8xf32> to vector<8x1xf32>
    %87 = tpu.reciprocal %86 {approx = true} : vector<8x1xf32> -> vector<8x1xf32>
    %88 = vector.broadcast %87 : vector<8x1xf32> to vector<8x8xf32>
    %89 = arith.mulf %84, %88 : vector<8x8xf32>
    %90 = arith.truncf %89 : vector<8x8xf32> to vector<8x8xbf16>
    %91 = arith.truncf %72 : vector<8x16xf32> to vector<8x16xbf16>
    %cst_50 = arith.constant dense<0.000000e+00> : vector<8x16xf32>
    %92 = tpu.matmul %90, %91, %cst_50 {dimension_numbers = #tpu.dot_dimension_numbers<[1], [0], [0], [1], [0, 0, 1, 1], [], []>} : vector<8x8xbf16>, vector<8x16xbf16>, vector<8x16xf32> -> vector<8x16xf32>
    %93 = arith.truncf %92 : vector<8x16xf32> to vector<8x16xbf16>
    %cst_51 = arith.constant dense<0.000000e+00> : vector<8x32xf32>
    %94 = tpu.matmul %93, %19, %cst_51 {dimension_numbers = #tpu.dot_dimension_numbers<[1], [0], [0], [1], [0, 0, 1, 1], [], []>} : vector<8x16xbf16>, vector<16x32xbf16>, vector<8x32xf32> -> vector<8x32xf32>
    %95 = arith.addf %69, %94 : vector<8x32xf32>
    %96 = vector.extract_strided_slice %63 {offsets = [0, 48], sizes = [8, 16], strides = [1, 1]} : vector<16x96xf32> to vector<8x16xf32>
    %97 = vector.extract_strided_slice %63 {offsets = [0, 64], sizes = [8, 16], strides = [1, 1]} : vector<16x96xf32> to vector<8x16xf32>
    %98 = vector.extract_strided_slice %63 {offsets = [0, 80], sizes = [8, 16], strides = [1, 1]} : vector<16x96xf32> to vector<8x16xf32>
    %99 = arith.truncf %96 : vector<8x16xf32> to vector<8x16xbf16>
    %100 = arith.truncf %97 : vector<8x16xf32> to vector<8x16xbf16>
    %cst_52 = arith.constant dense<0.000000e+00> : vector<8x8xf32>
    %101 = tpu.matmul %99, %100, %cst_52 {dimension_numbers = #tpu.dot_dimension_numbers<[1], [1], [0], [0], [0, 0, 1, 0], [], []>} : vector<8x16xbf16>, vector<8x16xbf16>, vector<8x8xf32> -> vector<8x8xf32>
    %cst_53 = arith.constant 2.500000e-01 : f32
    %102 = vector.broadcast %cst_53 : f32 to vector<8x8xf32>
    %103 = arith.mulf %101, %102 : vector<8x8xf32>
    %104 = vector.broadcast %68 : vector<1x8xf32> to vector<8x8xf32>
    %105 = arith.addf %103, %104 : vector<8x8xf32>
    %cst_54 = arith.constant dense<0xFF800000> : vector<8xf32>
    %106 = vector.multi_reduction <maximumf>, %105, %cst_54 [1] : vector<8x8xf32> to vector<8xf32>
    %107 = vector.shape_cast %106 : vector<8xf32> to vector<8x1xf32>
    %108 = vector.broadcast %107 : vector<8x1xf32> to vector<8x8xf32>
    %109 = arith.subf %105, %108 : vector<8x8xf32>
    %110 = math.exp %109 : vector<8x8xf32>
    %cst_55 = arith.constant dense<0.000000e+00> : vector<8xf32>
    %111 = vector.multi_reduction <add>, %110, %cst_55 [1] : vector<8x8xf32> to vector<8xf32>
    %112 = vector.shape_cast %111 : vector<8xf32> to vector<8x1xf32>
    %113 = tpu.reciprocal %112 {approx = true} : vector<8x1xf32> -> vector<8x1xf32>
    %114 = vector.broadcast %113 : vector<8x1xf32> to vector<8x8xf32>
    %115 = arith.mulf %110, %114 : vector<8x8xf32>
    %116 = arith.truncf %115 : vector<8x8xf32> to vector<8x8xbf16>
    %117 = arith.truncf %98 : vector<8x16xf32> to vector<8x16xbf16>
    %cst_56 = arith.constant dense<0.000000e+00> : vector<8x16xf32>
    %118 = tpu.matmul %116, %117, %cst_56 {dimension_numbers = #tpu.dot_dimension_numbers<[1], [0], [0], [1], [0, 0, 1, 1], [], []>} : vector<8x8xbf16>, vector<8x16xbf16>, vector<8x16xf32> -> vector<8x16xf32>
    %119 = arith.truncf %118 : vector<8x16xf32> to vector<8x16xbf16>
    %cst_57 = arith.constant dense<0.000000e+00> : vector<8x32xf32>
    %120 = tpu.matmul %119, %20, %cst_57 {dimension_numbers = #tpu.dot_dimension_numbers<[1], [0], [0], [1], [0, 0, 1, 1], [], []>} : vector<8x16xbf16>, vector<16x32xbf16>, vector<8x32xf32> -> vector<8x32xf32>
    %121 = arith.addf %95, %120 : vector<8x32xf32>
    %122 = vector.extract_strided_slice %67 {offsets = [1, 0], sizes = [1, 8], strides = [1, 1]} : vector<2x8xf32> to vector<1x8xf32>
    %cst_58 = arith.constant 0.000000e+00 : f32
    %123 = vector.broadcast %cst_58 : f32 to vector<8x32xf32>
    %124 = vector.extract_strided_slice %63 {offsets = [8, 0], sizes = [8, 16], strides = [1, 1]} : vector<16x96xf32> to vector<8x16xf32>
    %125 = vector.extract_strided_slice %63 {offsets = [8, 16], sizes = [8, 16], strides = [1, 1]} : vector<16x96xf32> to vector<8x16xf32>
    %126 = vector.extract_strided_slice %63 {offsets = [8, 32], sizes = [8, 16], strides = [1, 1]} : vector<16x96xf32> to vector<8x16xf32>
    %127 = arith.truncf %124 : vector<8x16xf32> to vector<8x16xbf16>
    %128 = arith.truncf %125 : vector<8x16xf32> to vector<8x16xbf16>
    %cst_59 = arith.constant dense<0.000000e+00> : vector<8x8xf32>
    %129 = tpu.matmul %127, %128, %cst_59 {dimension_numbers = #tpu.dot_dimension_numbers<[1], [1], [0], [0], [0, 0, 1, 0], [], []>} : vector<8x16xbf16>, vector<8x16xbf16>, vector<8x8xf32> -> vector<8x8xf32>
    %cst_60 = arith.constant 2.500000e-01 : f32
    %130 = vector.broadcast %cst_60 : f32 to vector<8x8xf32>
    %131 = arith.mulf %129, %130 : vector<8x8xf32>
    %132 = vector.broadcast %122 : vector<1x8xf32> to vector<8x8xf32>
    %133 = arith.addf %131, %132 : vector<8x8xf32>
    %cst_61 = arith.constant dense<0xFF800000> : vector<8xf32>
    %134 = vector.multi_reduction <maximumf>, %133, %cst_61 [1] : vector<8x8xf32> to vector<8xf32>
    %135 = vector.shape_cast %134 : vector<8xf32> to vector<8x1xf32>
    %136 = vector.broadcast %135 : vector<8x1xf32> to vector<8x8xf32>
    %137 = arith.subf %133, %136 : vector<8x8xf32>
    %138 = math.exp %137 : vector<8x8xf32>
    %cst_62 = arith.constant dense<0.000000e+00> : vector<8xf32>
    %139 = vector.multi_reduction <add>, %138, %cst_62 [1] : vector<8x8xf32> to vector<8xf32>
    %140 = vector.shape_cast %139 : vector<8xf32> to vector<8x1xf32>
    %141 = tpu.reciprocal %140 {approx = true} : vector<8x1xf32> -> vector<8x1xf32>
    %142 = vector.broadcast %141 : vector<8x1xf32> to vector<8x8xf32>
    %143 = arith.mulf %138, %142 : vector<8x8xf32>
    %144 = arith.truncf %143 : vector<8x8xf32> to vector<8x8xbf16>
    %145 = arith.truncf %126 : vector<8x16xf32> to vector<8x16xbf16>
    %cst_63 = arith.constant dense<0.000000e+00> : vector<8x16xf32>
    %146 = tpu.matmul %144, %145, %cst_63 {dimension_numbers = #tpu.dot_dimension_numbers<[1], [0], [0], [1], [0, 0, 1, 1], [], []>} : vector<8x8xbf16>, vector<8x16xbf16>, vector<8x16xf32> -> vector<8x16xf32>
    %147 = arith.truncf %146 : vector<8x16xf32> to vector<8x16xbf16>
    %cst_64 = arith.constant dense<0.000000e+00> : vector<8x32xf32>
    %148 = tpu.matmul %147, %19, %cst_64 {dimension_numbers = #tpu.dot_dimension_numbers<[1], [0], [0], [1], [0, 0, 1, 1], [], []>} : vector<8x16xbf16>, vector<16x32xbf16>, vector<8x32xf32> -> vector<8x32xf32>
    %149 = arith.addf %123, %148 : vector<8x32xf32>
    %150 = vector.extract_strided_slice %63 {offsets = [8, 48], sizes = [8, 16], strides = [1, 1]} : vector<16x96xf32> to vector<8x16xf32>
    %151 = vector.extract_strided_slice %63 {offsets = [8, 64], sizes = [8, 16], strides = [1, 1]} : vector<16x96xf32> to vector<8x16xf32>
    %152 = vector.extract_strided_slice %63 {offsets = [8, 80], sizes = [8, 16], strides = [1, 1]} : vector<16x96xf32> to vector<8x16xf32>
    %153 = arith.truncf %150 : vector<8x16xf32> to vector<8x16xbf16>
    %154 = arith.truncf %151 : vector<8x16xf32> to vector<8x16xbf16>
    %cst_65 = arith.constant dense<0.000000e+00> : vector<8x8xf32>
    %155 = tpu.matmul %153, %154, %cst_65 {dimension_numbers = #tpu.dot_dimension_numbers<[1], [1], [0], [0], [0, 0, 1, 0], [], []>} : vector<8x16xbf16>, vector<8x16xbf16>, vector<8x8xf32> -> vector<8x8xf32>
    %cst_66 = arith.constant 2.500000e-01 : f32
    %156 = vector.broadcast %cst_66 : f32 to vector<8x8xf32>
    %157 = arith.mulf %155, %156 : vector<8x8xf32>
    %158 = vector.broadcast %122 : vector<1x8xf32> to vector<8x8xf32>
    %159 = arith.addf %157, %158 : vector<8x8xf32>
    %cst_67 = arith.constant dense<0xFF800000> : vector<8xf32>
    %160 = vector.multi_reduction <maximumf>, %159, %cst_67 [1] : vector<8x8xf32> to vector<8xf32>
    %161 = vector.shape_cast %160 : vector<8xf32> to vector<8x1xf32>
    %162 = vector.broadcast %161 : vector<8x1xf32> to vector<8x8xf32>
    %163 = arith.subf %159, %162 : vector<8x8xf32>
    %164 = math.exp %163 : vector<8x8xf32>
    %cst_68 = arith.constant dense<0.000000e+00> : vector<8xf32>
    %165 = vector.multi_reduction <add>, %164, %cst_68 [1] : vector<8x8xf32> to vector<8xf32>
    %166 = vector.shape_cast %165 : vector<8xf32> to vector<8x1xf32>
    %167 = tpu.reciprocal %166 {approx = true} : vector<8x1xf32> -> vector<8x1xf32>
    %168 = vector.broadcast %167 : vector<8x1xf32> to vector<8x8xf32>
    %169 = arith.mulf %164, %168 : vector<8x8xf32>
    %170 = arith.truncf %169 : vector<8x8xf32> to vector<8x8xbf16>
    %171 = arith.truncf %152 : vector<8x16xf32> to vector<8x16xbf16>
    %cst_69 = arith.constant dense<0.000000e+00> : vector<8x16xf32>
    %172 = tpu.matmul %170, %171, %cst_69 {dimension_numbers = #tpu.dot_dimension_numbers<[1], [0], [0], [1], [0, 0, 1, 1], [], []>} : vector<8x8xbf16>, vector<8x16xbf16>, vector<8x16xf32> -> vector<8x16xf32>
    %173 = arith.truncf %172 : vector<8x16xf32> to vector<8x16xbf16>
    %cst_70 = arith.constant dense<0.000000e+00> : vector<8x32xf32>
    %174 = tpu.matmul %173, %20, %cst_70 {dimension_numbers = #tpu.dot_dimension_numbers<[1], [0], [0], [1], [0, 0, 1, 1], [], []>} : vector<8x16xbf16>, vector<16x32xbf16>, vector<8x32xf32> -> vector<8x32xf32>
    %175 = arith.addf %149, %174 : vector<8x32xf32>
    %176 = tpu.concatenate %121, %175 in 0 : vector<8x32xf32>, vector<8x32xf32> -> vector<16x32xf32>
    %177 = vector.broadcast %7 : vector<1x32xf32> to vector<16x32xf32>
    %178 = arith.addf %176, %177 : vector<16x32xf32>
    %179 = arith.addf %59, %178 : vector<16x32xf32>
    %cst_71 = arith.constant dense<0.000000e+00> : vector<16xf32>
    %180 = vector.multi_reduction <add>, %179, %cst_71 [1] : vector<16x32xf32> to vector<16xf32>
    %181 = vector.shape_cast %180 : vector<16xf32> to vector<16x1xf32>
    %cst_72 = arith.constant 3.200000e+01 : f32
    %182 = vector.broadcast %cst_72 : f32 to vector<16x1xf32>
    %183 = arith.divf %181, %182 : vector<16x1xf32>
    %184 = vector.broadcast %183 : vector<16x1xf32> to vector<16x32xf32>
    %185 = arith.subf %179, %184 : vector<16x32xf32>
    %186 = arith.mulf %185, %185 : vector<16x32xf32>
    %cst_73 = arith.constant dense<0.000000e+00> : vector<16xf32>
    %187 = vector.multi_reduction <add>, %186, %cst_73 [1] : vector<16x32xf32> to vector<16xf32>
    %188 = vector.shape_cast %187 : vector<16xf32> to vector<16x1xf32>
    %cst_74 = arith.constant 3.200000e+01 : f32
    %189 = vector.broadcast %cst_74 : f32 to vector<16x1xf32>
    %190 = arith.divf %188, %189 : vector<16x1xf32>
    %cst_75 = arith.constant 9.99999996E-13 : f32
    %191 = vector.broadcast %cst_75 : f32 to vector<16x1xf32>
    %192 = arith.addf %190, %191 : vector<16x1xf32>
    %193 = math.rsqrt %192 : vector<16x1xf32>
    %194 = vector.broadcast %193 : vector<16x1xf32> to vector<16x32xf32>
    %195 = arith.mulf %185, %194 : vector<16x32xf32>
    %196 = vector.broadcast %2 : vector<1x32xf32> to vector<16x32xf32>
    %197 = arith.mulf %195, %196 : vector<16x32xf32>
    %198 = vector.broadcast %3 : vector<1x32xf32> to vector<16x32xf32>
    %199 = arith.addf %197, %198 : vector<16x32xf32>
    %200 = arith.truncf %199 : vector<16x32xf32> to vector<16x32xbf16>
    %cst_76 = arith.constant dense<0.000000e+00> : vector<16x64xf32>
    %201 = tpu.matmul %200, %16, %cst_76 {dimension_numbers = #tpu.dot_dimension_numbers<[1], [0], [0], [1], [0, 0, 1, 1], [], []>} : vector<16x32xbf16>, vector<32x64xbf16>, vector<16x64xf32> -> vector<16x64xf32>
    %202 = vector.broadcast %8 : vector<1x64xf32> to vector<16x64xf32>
    %203 = arith.addf %201, %202 : vector<16x64xf32>
    %cst_77 = arith.constant 5.000000e-01 : f32
    %204 = vector.broadcast %cst_77 : f32 to vector<16x64xf32>
    %205 = arith.mulf %204, %203 : vector<16x64xf32>
    %cst_78 = arith.constant 4.471500e-02 : f32
    %206 = vector.broadcast %cst_78 : f32 to vector<16x64xf32>
    %207 = arith.mulf %206, %203 : vector<16x64xf32>
    %208 = arith.mulf %207, %203 : vector<16x64xf32>
    %209 = arith.mulf %208, %203 : vector<16x64xf32>
    %210 = arith.addf %203, %209 : vector<16x64xf32>
    %cst_79 = arith.constant 0.797884583 : f32
    %211 = vector.broadcast %cst_79 : f32 to vector<16x64xf32>
    %212 = arith.mulf %211, %210 : vector<16x64xf32>
    %213 = math.tanh %212 : vector<16x64xf32>
    %cst_80 = arith.constant 1.000000e+00 : f32
    %214 = vector.broadcast %cst_80 : f32 to vector<16x64xf32>
    %215 = arith.addf %214, %213 : vector<16x64xf32>
    %216 = arith.mulf %205, %215 : vector<16x64xf32>
    %217 = arith.truncf %216 : vector<16x64xf32> to vector<16x64xbf16>
    %cst_81 = arith.constant dense<0.000000e+00> : vector<16x32xf32>
    %218 = tpu.matmul %217, %25, %cst_81 {dimension_numbers = #tpu.dot_dimension_numbers<[1], [0], [0], [1], [0, 0, 1, 1], [], []>} : vector<16x64xbf16>, vector<64x32xbf16>, vector<16x32xf32> -> vector<16x32xf32>
    %219 = vector.broadcast %9 : vector<1x32xf32> to vector<16x32xf32>
    %220 = arith.addf %218, %219 : vector<16x32xf32>
    %221 = arith.addf %199, %220 : vector<16x32xf32>
    %cst_82 = arith.constant dense<0.000000e+00> : vector<16xf32>
    %222 = vector.multi_reduction <add>, %221, %cst_82 [1] : vector<16x32xf32> to vector<16xf32>
    %223 = vector.shape_cast %222 : vector<16xf32> to vector<16x1xf32>
    %cst_83 = arith.constant 3.200000e+01 : f32
    %224 = vector.broadcast %cst_83 : f32 to vector<16x1xf32>
    %225 = arith.divf %223, %224 : vector<16x1xf32>
    %226 = vector.broadcast %225 : vector<16x1xf32> to vector<16x32xf32>
    %227 = arith.subf %221, %226 : vector<16x32xf32>
    %228 = arith.mulf %227, %227 : vector<16x32xf32>
    %cst_84 = arith.constant dense<0.000000e+00> : vector<16xf32>
    %229 = vector.multi_reduction <add>, %228, %cst_84 [1] : vector<16x32xf32> to vector<16xf32>
    %230 = vector.shape_cast %229 : vector<16xf32> to vector<16x1xf32>
    %cst_85 = arith.constant 3.200000e+01 : f32
    %231 = vector.broadcast %cst_85 : f32 to vector<16x1xf32>
    %232 = arith.divf %230, %231 : vector<16x1xf32>
    %cst_86 = arith.constant 9.99999996E-13 : f32
    %233 = vector.broadcast %cst_86 : f32 to vector<16x1xf32>
    %234 = arith.addf %232, %233 : vector<16x1xf32>
    %235 = math.rsqrt %234 : vector<16x1xf32>
    %236 = vector.broadcast %235 : vector<16x1xf32> to vector<16x32xf32>
    %237 = arith.mulf %227, %236 : vector<16x32xf32>
    %238 = vector.broadcast %4 : vector<1x32xf32> to vector<16x32xf32>
    %239 = arith.mulf %237, %238 : vector<16x32xf32>
    %240 = vector.broadcast %5 : vector<1x32xf32> to vector<16x32xf32>
    %241 = arith.addf %239, %240 : vector<16x32xf32>
    %242 = arith.truncf %241 : vector<16x32xf32> to vector<16x32xbf16>
    %cst_87 = arith.constant dense<0.000000e+00> : vector<16x128xf32>
    %243 = tpu.matmul %242, %17, %cst_87 {dimension_numbers = #tpu.dot_dimension_numbers<[1], [0], [0], [1], [0, 0, 1, 1], [], []>} : vector<16x32xbf16>, vector<32x128xbf16>, vector<16x128xf32> -> vector<16x128xf32>
    %244 = vector.broadcast %10 : vector<1x128xf32> to vector<16x128xf32>
    %245 = arith.addf %243, %244 : vector<16x128xf32>
    %246 = vector.shape_cast %245 : vector<16x128xf32> to vector<2x8x128xf32>
    %247 = tpu.iota {dimensions = array<i32: 1>} : vector<1x128xi32>
    %c31_i32 = arith.constant 31 : i32
    %248 = vector.broadcast %c31_i32 : i32 to vector<1x128xi32>
    %249 = arith.andi %247, %248 : vector<1x128xi32>
    %c16_i32 = arith.constant 16 : i32
    %250 = vector.broadcast %c16_i32 : i32 to vector<1x128xi32>
    %251 = arith.cmpi slt, %249, %250 : vector<1x128xi32>
    %cst_88 = arith.constant 0.000000e+00 : f32
    %252 = vector.broadcast %cst_88 : f32 to vector<2x32xf32>
    %cst_89 = arith.constant 0.000000e+00 : f32
    %253 = vector.broadcast %cst_89 : f32 to vector<2x32xf32>
    %254 = vector.extract_strided_slice %246 {offsets = [0, 0, 0], sizes = [2, 1, 128], strides = [1, 1, 1]} : vector<2x8x128xf32> to vector<2x1x128xf32>
    %255 = vector.shape_cast %254 : vector<2x1x128xf32> to vector<2x128xf32>
    %256 = vector.extract_strided_slice %246 {offsets = [0, 7, 0], sizes = [2, 1, 128], strides = [1, 1, 1]} : vector<2x8x128xf32> to vector<2x1x128xf32>
    %257 = vector.shape_cast %256 : vector<2x1x128xf32> to vector<2x128xf32>
    %258 = vector.shape_cast %251 : vector<1x128xi1> to vector<1x128xi1>
    %259 = vector.broadcast %258 : vector<1x128xi1> to vector<2x128xi1>
    %260 = arith.select %259, %255, %257 : vector<2x128xi1>, vector<2x128xf32>
    %261 = arith.truncf %252 : vector<2x32xf32> to vector<2x32xbf16>
    %cst_90 = arith.constant dense<0.000000e+00> : vector<2x128xf32>
    %262 = tpu.matmul %261, %18, %cst_90 {dimension_numbers = #tpu.dot_dimension_numbers<[1], [0], [0], [1], [0, 0, 1, 1], [], []>} : vector<2x32xbf16>, vector<32x128xbf16>, vector<2x128xf32> -> vector<2x128xf32>
    %263 = arith.addf %260, %262 : vector<2x128xf32>
    %264 = vector.extract_strided_slice %263 {offsets = [0, 0], sizes = [2, 96], strides = [1, 1]} : vector<2x128xf32> to vector<2x96xf32>
    %cst_91 = arith.constant 0.000000e+00 : f32
    %265 = vector.broadcast %cst_91 : f32 to vector<2x96xf32>
    %266 = arith.subf %265, %264 : vector<2x96xf32>
    %267 = math.exp %266 : vector<2x96xf32>
    %cst_92 = arith.constant 1.000000e+00 : f32
    %268 = vector.broadcast %cst_92 : f32 to vector<2x96xf32>
    %269 = arith.addf %268, %267 : vector<2x96xf32>
    %270 = tpu.reciprocal %269 {approx = true} : vector<2x96xf32> -> vector<2x96xf32>
    %271 = vector.extract_strided_slice %270 {offsets = [0, 0], sizes = [2, 32], strides = [1, 1]} : vector<2x96xf32> to vector<2x32xf32>
    %272 = vector.extract_strided_slice %270 {offsets = [0, 32], sizes = [2, 32], strides = [1, 1]} : vector<2x96xf32> to vector<2x32xf32>
    %273 = vector.extract_strided_slice %270 {offsets = [0, 64], sizes = [2, 32], strides = [1, 1]} : vector<2x96xf32> to vector<2x32xf32>
    %274 = vector.extract_strided_slice %263 {offsets = [0, 96], sizes = [2, 32], strides = [1, 1]} : vector<2x128xf32> to vector<2x32xf32>
    %275 = math.tanh %274 : vector<2x32xf32>
    %276 = arith.mulf %272, %253 : vector<2x32xf32>
    %277 = arith.mulf %271, %275 : vector<2x32xf32>
    %278 = arith.addf %276, %277 : vector<2x32xf32>
    %279 = math.tanh %278 : vector<2x32xf32>
    %280 = arith.mulf %273, %279 : vector<2x32xf32>
    %281 = vector.extract_strided_slice %280 {offsets = [0, 0], sizes = [2, 16], strides = [1, 1]} : vector<2x32xf32> to vector<2x16xf32>
    %282 = arith.truncf %281 : vector<2x16xf32> to vector<2x16xbf16>
    %cst_93 = arith.constant dense<0.000000e+00> : vector<2x5xf32>
    %283 = tpu.matmul %282, %21, %cst_93 {dimension_numbers = #tpu.dot_dimension_numbers<[1], [0], [0], [1], [0, 0, 1, 1], [], []>} : vector<2x16xbf16>, vector<16x5xbf16>, vector<2x5xf32> -> vector<2x5xf32>
    %284 = vector.extract_strided_slice %280 {offsets = [0, 16], sizes = [2, 16], strides = [1, 1]} : vector<2x32xf32> to vector<2x16xf32>
    %285 = arith.truncf %284 : vector<2x16xf32> to vector<2x16xbf16>
    %cst_94 = arith.constant dense<0.000000e+00> : vector<2x5xf32>
    %286 = tpu.matmul %285, %22, %cst_94 {dimension_numbers = #tpu.dot_dimension_numbers<[1], [0], [0], [1], [0, 0, 1, 1], [], []>} : vector<2x16xbf16>, vector<16x5xbf16>, vector<2x5xf32> -> vector<2x5xf32>
    %287 = vector.extract_strided_slice %246 {offsets = [0, 1, 0], sizes = [2, 1, 128], strides = [1, 1, 1]} : vector<2x8x128xf32> to vector<2x1x128xf32>
    %288 = vector.shape_cast %287 : vector<2x1x128xf32> to vector<2x128xf32>
    %289 = vector.extract_strided_slice %246 {offsets = [0, 6, 0], sizes = [2, 1, 128], strides = [1, 1, 1]} : vector<2x8x128xf32> to vector<2x1x128xf32>
    %290 = vector.shape_cast %289 : vector<2x1x128xf32> to vector<2x128xf32>
    %291 = vector.shape_cast %251 : vector<1x128xi1> to vector<1x128xi1>
    %292 = vector.broadcast %291 : vector<1x128xi1> to vector<2x128xi1>
    %293 = arith.select %292, %288, %290 : vector<2x128xi1>, vector<2x128xf32>
    %294 = arith.truncf %280 : vector<2x32xf32> to vector<2x32xbf16>
    %cst_95 = arith.constant dense<0.000000e+00> : vector<2x128xf32>
    %295 = tpu.matmul %294, %18, %cst_95 {dimension_numbers = #tpu.dot_dimension_numbers<[1], [0], [0], [1], [0, 0, 1, 1], [], []>} : vector<2x32xbf16>, vector<32x128xbf16>, vector<2x128xf32> -> vector<2x128xf32>
    %296 = arith.addf %293, %295 : vector<2x128xf32>
    %297 = vector.extract_strided_slice %296 {offsets = [0, 0], sizes = [2, 96], strides = [1, 1]} : vector<2x128xf32> to vector<2x96xf32>
    %cst_96 = arith.constant 0.000000e+00 : f32
    %298 = vector.broadcast %cst_96 : f32 to vector<2x96xf32>
    %299 = arith.subf %298, %297 : vector<2x96xf32>
    %300 = math.exp %299 : vector<2x96xf32>
    %cst_97 = arith.constant 1.000000e+00 : f32
    %301 = vector.broadcast %cst_97 : f32 to vector<2x96xf32>
    %302 = arith.addf %301, %300 : vector<2x96xf32>
    %303 = tpu.reciprocal %302 {approx = true} : vector<2x96xf32> -> vector<2x96xf32>
    %304 = vector.extract_strided_slice %303 {offsets = [0, 0], sizes = [2, 32], strides = [1, 1]} : vector<2x96xf32> to vector<2x32xf32>
    %305 = vector.extract_strided_slice %303 {offsets = [0, 32], sizes = [2, 32], strides = [1, 1]} : vector<2x96xf32> to vector<2x32xf32>
    %306 = vector.extract_strided_slice %303 {offsets = [0, 64], sizes = [2, 32], strides = [1, 1]} : vector<2x96xf32> to vector<2x32xf32>
    %307 = vector.extract_strided_slice %296 {offsets = [0, 96], sizes = [2, 32], strides = [1, 1]} : vector<2x128xf32> to vector<2x32xf32>
    %308 = math.tanh %307 : vector<2x32xf32>
    %309 = arith.mulf %305, %278 : vector<2x32xf32>
    %310 = arith.mulf %304, %308 : vector<2x32xf32>
    %311 = arith.addf %309, %310 : vector<2x32xf32>
    %312 = math.tanh %311 : vector<2x32xf32>
    %313 = arith.mulf %306, %312 : vector<2x32xf32>
    %314 = vector.extract_strided_slice %313 {offsets = [0, 0], sizes = [2, 16], strides = [1, 1]} : vector<2x32xf32> to vector<2x16xf32>
    %315 = arith.truncf %314 : vector<2x16xf32> to vector<2x16xbf16>
    %cst_98 = arith.constant dense<0.000000e+00> : vector<2x5xf32>
    %316 = tpu.matmul %315, %21, %cst_98 {dimension_numbers = #tpu.dot_dimension_numbers<[1], [0], [0], [1], [0, 0, 1, 1], [], []>} : vector<2x16xbf16>, vector<16x5xbf16>, vector<2x5xf32> -> vector<2x5xf32>
    %317 = vector.extract_strided_slice %313 {offsets = [0, 16], sizes = [2, 16], strides = [1, 1]} : vector<2x32xf32> to vector<2x16xf32>
    %318 = arith.truncf %317 : vector<2x16xf32> to vector<2x16xbf16>
    %cst_99 = arith.constant dense<0.000000e+00> : vector<2x5xf32>
    %319 = tpu.matmul %318, %22, %cst_99 {dimension_numbers = #tpu.dot_dimension_numbers<[1], [0], [0], [1], [0, 0, 1, 1], [], []>} : vector<2x16xbf16>, vector<16x5xbf16>, vector<2x5xf32> -> vector<2x5xf32>
    %320 = vector.extract_strided_slice %246 {offsets = [0, 2, 0], sizes = [2, 1, 128], strides = [1, 1, 1]} : vector<2x8x128xf32> to vector<2x1x128xf32>
    %321 = vector.shape_cast %320 : vector<2x1x128xf32> to vector<2x128xf32>
    %322 = vector.extract_strided_slice %246 {offsets = [0, 5, 0], sizes = [2, 1, 128], strides = [1, 1, 1]} : vector<2x8x128xf32> to vector<2x1x128xf32>
    %323 = vector.shape_cast %322 : vector<2x1x128xf32> to vector<2x128xf32>
    %324 = vector.shape_cast %251 : vector<1x128xi1> to vector<1x128xi1>
    %325 = vector.broadcast %324 : vector<1x128xi1> to vector<2x128xi1>
    %326 = arith.select %325, %321, %323 : vector<2x128xi1>, vector<2x128xf32>
    %327 = arith.truncf %313 : vector<2x32xf32> to vector<2x32xbf16>
    %cst_100 = arith.constant dense<0.000000e+00> : vector<2x128xf32>
    %328 = tpu.matmul %327, %18, %cst_100 {dimension_numbers = #tpu.dot_dimension_numbers<[1], [0], [0], [1], [0, 0, 1, 1], [], []>} : vector<2x32xbf16>, vector<32x128xbf16>, vector<2x128xf32> -> vector<2x128xf32>
    %329 = arith.addf %326, %328 : vector<2x128xf32>
    %330 = vector.extract_strided_slice %329 {offsets = [0, 0], sizes = [2, 96], strides = [1, 1]} : vector<2x128xf32> to vector<2x96xf32>
    %cst_101 = arith.constant 0.000000e+00 : f32
    %331 = vector.broadcast %cst_101 : f32 to vector<2x96xf32>
    %332 = arith.subf %331, %330 : vector<2x96xf32>
    %333 = math.exp %332 : vector<2x96xf32>
    %cst_102 = arith.constant 1.000000e+00 : f32
    %334 = vector.broadcast %cst_102 : f32 to vector<2x96xf32>
    %335 = arith.addf %334, %333 : vector<2x96xf32>
    %336 = tpu.reciprocal %335 {approx = true} : vector<2x96xf32> -> vector<2x96xf32>
    %337 = vector.extract_strided_slice %336 {offsets = [0, 0], sizes = [2, 32], strides = [1, 1]} : vector<2x96xf32> to vector<2x32xf32>
    %338 = vector.extract_strided_slice %336 {offsets = [0, 32], sizes = [2, 32], strides = [1, 1]} : vector<2x96xf32> to vector<2x32xf32>
    %339 = vector.extract_strided_slice %336 {offsets = [0, 64], sizes = [2, 32], strides = [1, 1]} : vector<2x96xf32> to vector<2x32xf32>
    %340 = vector.extract_strided_slice %329 {offsets = [0, 96], sizes = [2, 32], strides = [1, 1]} : vector<2x128xf32> to vector<2x32xf32>
    %341 = math.tanh %340 : vector<2x32xf32>
    %342 = arith.mulf %338, %311 : vector<2x32xf32>
    %343 = arith.mulf %337, %341 : vector<2x32xf32>
    %344 = arith.addf %342, %343 : vector<2x32xf32>
    %345 = math.tanh %344 : vector<2x32xf32>
    %346 = arith.mulf %339, %345 : vector<2x32xf32>
    %347 = vector.extract_strided_slice %346 {offsets = [0, 0], sizes = [2, 16], strides = [1, 1]} : vector<2x32xf32> to vector<2x16xf32>
    %348 = arith.truncf %347 : vector<2x16xf32> to vector<2x16xbf16>
    %cst_103 = arith.constant dense<0.000000e+00> : vector<2x5xf32>
    %349 = tpu.matmul %348, %21, %cst_103 {dimension_numbers = #tpu.dot_dimension_numbers<[1], [0], [0], [1], [0, 0, 1, 1], [], []>} : vector<2x16xbf16>, vector<16x5xbf16>, vector<2x5xf32> -> vector<2x5xf32>
    %350 = vector.extract_strided_slice %346 {offsets = [0, 16], sizes = [2, 16], strides = [1, 1]} : vector<2x32xf32> to vector<2x16xf32>
    %351 = arith.truncf %350 : vector<2x16xf32> to vector<2x16xbf16>
    %cst_104 = arith.constant dense<0.000000e+00> : vector<2x5xf32>
    %352 = tpu.matmul %351, %22, %cst_104 {dimension_numbers = #tpu.dot_dimension_numbers<[1], [0], [0], [1], [0, 0, 1, 1], [], []>} : vector<2x16xbf16>, vector<16x5xbf16>, vector<2x5xf32> -> vector<2x5xf32>
    %353 = vector.extract_strided_slice %246 {offsets = [0, 3, 0], sizes = [2, 1, 128], strides = [1, 1, 1]} : vector<2x8x128xf32> to vector<2x1x128xf32>
    %354 = vector.shape_cast %353 : vector<2x1x128xf32> to vector<2x128xf32>
    %355 = vector.extract_strided_slice %246 {offsets = [0, 4, 0], sizes = [2, 1, 128], strides = [1, 1, 1]} : vector<2x8x128xf32> to vector<2x1x128xf32>
    %356 = vector.shape_cast %355 : vector<2x1x128xf32> to vector<2x128xf32>
    %357 = vector.shape_cast %251 : vector<1x128xi1> to vector<1x128xi1>
    %358 = vector.broadcast %357 : vector<1x128xi1> to vector<2x128xi1>
    %359 = arith.select %358, %354, %356 : vector<2x128xi1>, vector<2x128xf32>
    %360 = arith.truncf %346 : vector<2x32xf32> to vector<2x32xbf16>
    %cst_105 = arith.constant dense<0.000000e+00> : vector<2x128xf32>
    %361 = tpu.matmul %360, %18, %cst_105 {dimension_numbers = #tpu.dot_dimension_numbers<[1], [0], [0], [1], [0, 0, 1, 1], [], []>} : vector<2x32xbf16>, vector<32x128xbf16>, vector<2x128xf32> -> vector<2x128xf32>
    %362 = arith.addf %359, %361 : vector<2x128xf32>
    %363 = vector.extract_strided_slice %362 {offsets = [0, 0], sizes = [2, 96], strides = [1, 1]} : vector<2x128xf32> to vector<2x96xf32>
    %cst_106 = arith.constant 0.000000e+00 : f32
    %364 = vector.broadcast %cst_106 : f32 to vector<2x96xf32>
    %365 = arith.subf %364, %363 : vector<2x96xf32>
    %366 = math.exp %365 : vector<2x96xf32>
    %cst_107 = arith.constant 1.000000e+00 : f32
    %367 = vector.broadcast %cst_107 : f32 to vector<2x96xf32>
    %368 = arith.addf %367, %366 : vector<2x96xf32>
    %369 = tpu.reciprocal %368 {approx = true} : vector<2x96xf32> -> vector<2x96xf32>
    %370 = vector.extract_strided_slice %369 {offsets = [0, 0], sizes = [2, 32], strides = [1, 1]} : vector<2x96xf32> to vector<2x32xf32>
    %371 = vector.extract_strided_slice %369 {offsets = [0, 32], sizes = [2, 32], strides = [1, 1]} : vector<2x96xf32> to vector<2x32xf32>
    %372 = vector.extract_strided_slice %369 {offsets = [0, 64], sizes = [2, 32], strides = [1, 1]} : vector<2x96xf32> to vector<2x32xf32>
    %373 = vector.extract_strided_slice %362 {offsets = [0, 96], sizes = [2, 32], strides = [1, 1]} : vector<2x128xf32> to vector<2x32xf32>
    %374 = math.tanh %373 : vector<2x32xf32>
    %375 = arith.mulf %371, %344 : vector<2x32xf32>
    %376 = arith.mulf %370, %374 : vector<2x32xf32>
    %377 = arith.addf %375, %376 : vector<2x32xf32>
    %378 = math.tanh %377 : vector<2x32xf32>
    %379 = arith.mulf %372, %378 : vector<2x32xf32>
    %380 = vector.extract_strided_slice %379 {offsets = [0, 0], sizes = [2, 16], strides = [1, 1]} : vector<2x32xf32> to vector<2x16xf32>
    %381 = arith.truncf %380 : vector<2x16xf32> to vector<2x16xbf16>
    %cst_108 = arith.constant dense<0.000000e+00> : vector<2x5xf32>
    %382 = tpu.matmul %381, %21, %cst_108 {dimension_numbers = #tpu.dot_dimension_numbers<[1], [0], [0], [1], [0, 0, 1, 1], [], []>} : vector<2x16xbf16>, vector<16x5xbf16>, vector<2x5xf32> -> vector<2x5xf32>
    %383 = vector.extract_strided_slice %379 {offsets = [0, 16], sizes = [2, 16], strides = [1, 1]} : vector<2x32xf32> to vector<2x16xf32>
    %384 = arith.truncf %383 : vector<2x16xf32> to vector<2x16xbf16>
    %cst_109 = arith.constant dense<0.000000e+00> : vector<2x5xf32>
    %385 = tpu.matmul %384, %22, %cst_109 {dimension_numbers = #tpu.dot_dimension_numbers<[1], [0], [0], [1], [0, 0, 1, 1], [], []>} : vector<2x16xbf16>, vector<16x5xbf16>, vector<2x5xf32> -> vector<2x5xf32>
    %386 = vector.extract_strided_slice %246 {offsets = [0, 4, 0], sizes = [2, 1, 128], strides = [1, 1, 1]} : vector<2x8x128xf32> to vector<2x1x128xf32>
    %387 = vector.shape_cast %386 : vector<2x1x128xf32> to vector<2x128xf32>
    %388 = vector.extract_strided_slice %246 {offsets = [0, 3, 0], sizes = [2, 1, 128], strides = [1, 1, 1]} : vector<2x8x128xf32> to vector<2x1x128xf32>
    %389 = vector.shape_cast %388 : vector<2x1x128xf32> to vector<2x128xf32>
    %390 = vector.shape_cast %251 : vector<1x128xi1> to vector<1x128xi1>
    %391 = vector.broadcast %390 : vector<1x128xi1> to vector<2x128xi1>
    %392 = arith.select %391, %387, %389 : vector<2x128xi1>, vector<2x128xf32>
    %393 = arith.truncf %379 : vector<2x32xf32> to vector<2x32xbf16>
    %cst_110 = arith.constant dense<0.000000e+00> : vector<2x128xf32>
    %394 = tpu.matmul %393, %18, %cst_110 {dimension_numbers = #tpu.dot_dimension_numbers<[1], [0], [0], [1], [0, 0, 1, 1], [], []>} : vector<2x32xbf16>, vector<32x128xbf16>, vector<2x128xf32> -> vector<2x128xf32>
    %395 = arith.addf %392, %394 : vector<2x128xf32>
    %396 = vector.extract_strided_slice %395 {offsets = [0, 0], sizes = [2, 96], strides = [1, 1]} : vector<2x128xf32> to vector<2x96xf32>
    %cst_111 = arith.constant 0.000000e+00 : f32
    %397 = vector.broadcast %cst_111 : f32 to vector<2x96xf32>
    %398 = arith.subf %397, %396 : vector<2x96xf32>
    %399 = math.exp %398 : vector<2x96xf32>
    %cst_112 = arith.constant 1.000000e+00 : f32
    %400 = vector.broadcast %cst_112 : f32 to vector<2x96xf32>
    %401 = arith.addf %400, %399 : vector<2x96xf32>
    %402 = tpu.reciprocal %401 {approx = true} : vector<2x96xf32> -> vector<2x96xf32>
    %403 = vector.extract_strided_slice %402 {offsets = [0, 0], sizes = [2, 32], strides = [1, 1]} : vector<2x96xf32> to vector<2x32xf32>
    %404 = vector.extract_strided_slice %402 {offsets = [0, 32], sizes = [2, 32], strides = [1, 1]} : vector<2x96xf32> to vector<2x32xf32>
    %405 = vector.extract_strided_slice %402 {offsets = [0, 64], sizes = [2, 32], strides = [1, 1]} : vector<2x96xf32> to vector<2x32xf32>
    %406 = vector.extract_strided_slice %395 {offsets = [0, 96], sizes = [2, 32], strides = [1, 1]} : vector<2x128xf32> to vector<2x32xf32>
    %407 = math.tanh %406 : vector<2x32xf32>
    %408 = arith.mulf %404, %377 : vector<2x32xf32>
    %409 = arith.mulf %403, %407 : vector<2x32xf32>
    %410 = arith.addf %408, %409 : vector<2x32xf32>
    %411 = math.tanh %410 : vector<2x32xf32>
    %412 = arith.mulf %405, %411 : vector<2x32xf32>
    %413 = vector.extract_strided_slice %412 {offsets = [0, 0], sizes = [2, 16], strides = [1, 1]} : vector<2x32xf32> to vector<2x16xf32>
    %414 = arith.truncf %413 : vector<2x16xf32> to vector<2x16xbf16>
    %cst_113 = arith.constant dense<0.000000e+00> : vector<2x5xf32>
    %415 = tpu.matmul %414, %21, %cst_113 {dimension_numbers = #tpu.dot_dimension_numbers<[1], [0], [0], [1], [0, 0, 1, 1], [], []>} : vector<2x16xbf16>, vector<16x5xbf16>, vector<2x5xf32> -> vector<2x5xf32>
    %416 = vector.extract_strided_slice %412 {offsets = [0, 16], sizes = [2, 16], strides = [1, 1]} : vector<2x32xf32> to vector<2x16xf32>
    %417 = arith.truncf %416 : vector<2x16xf32> to vector<2x16xbf16>
    %cst_114 = arith.constant dense<0.000000e+00> : vector<2x5xf32>
    %418 = tpu.matmul %417, %22, %cst_114 {dimension_numbers = #tpu.dot_dimension_numbers<[1], [0], [0], [1], [0, 0, 1, 1], [], []>} : vector<2x16xbf16>, vector<16x5xbf16>, vector<2x5xf32> -> vector<2x5xf32>
    %419 = vector.extract_strided_slice %246 {offsets = [0, 5, 0], sizes = [2, 1, 128], strides = [1, 1, 1]} : vector<2x8x128xf32> to vector<2x1x128xf32>
    %420 = vector.shape_cast %419 : vector<2x1x128xf32> to vector<2x128xf32>
    %421 = vector.extract_strided_slice %246 {offsets = [0, 2, 0], sizes = [2, 1, 128], strides = [1, 1, 1]} : vector<2x8x128xf32> to vector<2x1x128xf32>
    %422 = vector.shape_cast %421 : vector<2x1x128xf32> to vector<2x128xf32>
    %423 = vector.shape_cast %251 : vector<1x128xi1> to vector<1x128xi1>
    %424 = vector.broadcast %423 : vector<1x128xi1> to vector<2x128xi1>
    %425 = arith.select %424, %420, %422 : vector<2x128xi1>, vector<2x128xf32>
    %426 = arith.truncf %412 : vector<2x32xf32> to vector<2x32xbf16>
    %cst_115 = arith.constant dense<0.000000e+00> : vector<2x128xf32>
    %427 = tpu.matmul %426, %18, %cst_115 {dimension_numbers = #tpu.dot_dimension_numbers<[1], [0], [0], [1], [0, 0, 1, 1], [], []>} : vector<2x32xbf16>, vector<32x128xbf16>, vector<2x128xf32> -> vector<2x128xf32>
    %428 = arith.addf %425, %427 : vector<2x128xf32>
    %429 = vector.extract_strided_slice %428 {offsets = [0, 0], sizes = [2, 96], strides = [1, 1]} : vector<2x128xf32> to vector<2x96xf32>
    %cst_116 = arith.constant 0.000000e+00 : f32
    %430 = vector.broadcast %cst_116 : f32 to vector<2x96xf32>
    %431 = arith.subf %430, %429 : vector<2x96xf32>
    %432 = math.exp %431 : vector<2x96xf32>
    %cst_117 = arith.constant 1.000000e+00 : f32
    %433 = vector.broadcast %cst_117 : f32 to vector<2x96xf32>
    %434 = arith.addf %433, %432 : vector<2x96xf32>
    %435 = tpu.reciprocal %434 {approx = true} : vector<2x96xf32> -> vector<2x96xf32>
    %436 = vector.extract_strided_slice %435 {offsets = [0, 0], sizes = [2, 32], strides = [1, 1]} : vector<2x96xf32> to vector<2x32xf32>
    %437 = vector.extract_strided_slice %435 {offsets = [0, 32], sizes = [2, 32], strides = [1, 1]} : vector<2x96xf32> to vector<2x32xf32>
    %438 = vector.extract_strided_slice %435 {offsets = [0, 64], sizes = [2, 32], strides = [1, 1]} : vector<2x96xf32> to vector<2x32xf32>
    %439 = vector.extract_strided_slice %428 {offsets = [0, 96], sizes = [2, 32], strides = [1, 1]} : vector<2x128xf32> to vector<2x32xf32>
    %440 = math.tanh %439 : vector<2x32xf32>
    %441 = arith.mulf %437, %410 : vector<2x32xf32>
    %442 = arith.mulf %436, %440 : vector<2x32xf32>
    %443 = arith.addf %441, %442 : vector<2x32xf32>
    %444 = math.tanh %443 : vector<2x32xf32>
    %445 = arith.mulf %438, %444 : vector<2x32xf32>
    %446 = vector.extract_strided_slice %445 {offsets = [0, 0], sizes = [2, 16], strides = [1, 1]} : vector<2x32xf32> to vector<2x16xf32>
    %447 = arith.truncf %446 : vector<2x16xf32> to vector<2x16xbf16>
    %cst_118 = arith.constant dense<0.000000e+00> : vector<2x5xf32>
    %448 = tpu.matmul %447, %21, %cst_118 {dimension_numbers = #tpu.dot_dimension_numbers<[1], [0], [0], [1], [0, 0, 1, 1], [], []>} : vector<2x16xbf16>, vector<16x5xbf16>, vector<2x5xf32> -> vector<2x5xf32>
    %449 = vector.extract_strided_slice %445 {offsets = [0, 16], sizes = [2, 16], strides = [1, 1]} : vector<2x32xf32> to vector<2x16xf32>
    %450 = arith.truncf %449 : vector<2x16xf32> to vector<2x16xbf16>
    %cst_119 = arith.constant dense<0.000000e+00> : vector<2x5xf32>
    %451 = tpu.matmul %450, %22, %cst_119 {dimension_numbers = #tpu.dot_dimension_numbers<[1], [0], [0], [1], [0, 0, 1, 1], [], []>} : vector<2x16xbf16>, vector<16x5xbf16>, vector<2x5xf32> -> vector<2x5xf32>
    %452 = vector.extract_strided_slice %246 {offsets = [0, 6, 0], sizes = [2, 1, 128], strides = [1, 1, 1]} : vector<2x8x128xf32> to vector<2x1x128xf32>
    %453 = vector.shape_cast %452 : vector<2x1x128xf32> to vector<2x128xf32>
    %454 = vector.extract_strided_slice %246 {offsets = [0, 1, 0], sizes = [2, 1, 128], strides = [1, 1, 1]} : vector<2x8x128xf32> to vector<2x1x128xf32>
    %455 = vector.shape_cast %454 : vector<2x1x128xf32> to vector<2x128xf32>
    %456 = vector.shape_cast %251 : vector<1x128xi1> to vector<1x128xi1>
    %457 = vector.broadcast %456 : vector<1x128xi1> to vector<2x128xi1>
    %458 = arith.select %457, %453, %455 : vector<2x128xi1>, vector<2x128xf32>
    %459 = arith.truncf %445 : vector<2x32xf32> to vector<2x32xbf16>
    %cst_120 = arith.constant dense<0.000000e+00> : vector<2x128xf32>
    %460 = tpu.matmul %459, %18, %cst_120 {dimension_numbers = #tpu.dot_dimension_numbers<[1], [0], [0], [1], [0, 0, 1, 1], [], []>} : vector<2x32xbf16>, vector<32x128xbf16>, vector<2x128xf32> -> vector<2x128xf32>
    %461 = arith.addf %458, %460 : vector<2x128xf32>
    %462 = vector.extract_strided_slice %461 {offsets = [0, 0], sizes = [2, 96], strides = [1, 1]} : vector<2x128xf32> to vector<2x96xf32>
    %cst_121 = arith.constant 0.000000e+00 : f32
    %463 = vector.broadcast %cst_121 : f32 to vector<2x96xf32>
    %464 = arith.subf %463, %462 : vector<2x96xf32>
    %465 = math.exp %464 : vector<2x96xf32>
    %cst_122 = arith.constant 1.000000e+00 : f32
    %466 = vector.broadcast %cst_122 : f32 to vector<2x96xf32>
    %467 = arith.addf %466, %465 : vector<2x96xf32>
    %468 = tpu.reciprocal %467 {approx = true} : vector<2x96xf32> -> vector<2x96xf32>
    %469 = vector.extract_strided_slice %468 {offsets = [0, 0], sizes = [2, 32], strides = [1, 1]} : vector<2x96xf32> to vector<2x32xf32>
    %470 = vector.extract_strided_slice %468 {offsets = [0, 32], sizes = [2, 32], strides = [1, 1]} : vector<2x96xf32> to vector<2x32xf32>
    %471 = vector.extract_strided_slice %468 {offsets = [0, 64], sizes = [2, 32], strides = [1, 1]} : vector<2x96xf32> to vector<2x32xf32>
    %472 = vector.extract_strided_slice %461 {offsets = [0, 96], sizes = [2, 32], strides = [1, 1]} : vector<2x128xf32> to vector<2x32xf32>
    %473 = math.tanh %472 : vector<2x32xf32>
    %474 = arith.mulf %470, %443 : vector<2x32xf32>
    %475 = arith.mulf %469, %473 : vector<2x32xf32>
    %476 = arith.addf %474, %475 : vector<2x32xf32>
    %477 = math.tanh %476 : vector<2x32xf32>
    %478 = arith.mulf %471, %477 : vector<2x32xf32>
    %479 = vector.extract_strided_slice %478 {offsets = [0, 0], sizes = [2, 16], strides = [1, 1]} : vector<2x32xf32> to vector<2x16xf32>
    %480 = arith.truncf %479 : vector<2x16xf32> to vector<2x16xbf16>
    %cst_123 = arith.constant dense<0.000000e+00> : vector<2x5xf32>
    %481 = tpu.matmul %480, %21, %cst_123 {dimension_numbers = #tpu.dot_dimension_numbers<[1], [0], [0], [1], [0, 0, 1, 1], [], []>} : vector<2x16xbf16>, vector<16x5xbf16>, vector<2x5xf32> -> vector<2x5xf32>
    %482 = vector.extract_strided_slice %478 {offsets = [0, 16], sizes = [2, 16], strides = [1, 1]} : vector<2x32xf32> to vector<2x16xf32>
    %483 = arith.truncf %482 : vector<2x16xf32> to vector<2x16xbf16>
    %cst_124 = arith.constant dense<0.000000e+00> : vector<2x5xf32>
    %484 = tpu.matmul %483, %22, %cst_124 {dimension_numbers = #tpu.dot_dimension_numbers<[1], [0], [0], [1], [0, 0, 1, 1], [], []>} : vector<2x16xbf16>, vector<16x5xbf16>, vector<2x5xf32> -> vector<2x5xf32>
    %485 = vector.extract_strided_slice %246 {offsets = [0, 7, 0], sizes = [2, 1, 128], strides = [1, 1, 1]} : vector<2x8x128xf32> to vector<2x1x128xf32>
    %486 = vector.shape_cast %485 : vector<2x1x128xf32> to vector<2x128xf32>
    %487 = vector.extract_strided_slice %246 {offsets = [0, 0, 0], sizes = [2, 1, 128], strides = [1, 1, 1]} : vector<2x8x128xf32> to vector<2x1x128xf32>
    %488 = vector.shape_cast %487 : vector<2x1x128xf32> to vector<2x128xf32>
    %489 = vector.shape_cast %251 : vector<1x128xi1> to vector<1x128xi1>
    %490 = vector.broadcast %489 : vector<1x128xi1> to vector<2x128xi1>
    %491 = arith.select %490, %486, %488 : vector<2x128xi1>, vector<2x128xf32>
    %492 = arith.truncf %478 : vector<2x32xf32> to vector<2x32xbf16>
    %cst_125 = arith.constant dense<0.000000e+00> : vector<2x128xf32>
    %493 = tpu.matmul %492, %18, %cst_125 {dimension_numbers = #tpu.dot_dimension_numbers<[1], [0], [0], [1], [0, 0, 1, 1], [], []>} : vector<2x32xbf16>, vector<32x128xbf16>, vector<2x128xf32> -> vector<2x128xf32>
    %494 = arith.addf %491, %493 : vector<2x128xf32>
    %495 = vector.extract_strided_slice %494 {offsets = [0, 0], sizes = [2, 96], strides = [1, 1]} : vector<2x128xf32> to vector<2x96xf32>
    %cst_126 = arith.constant 0.000000e+00 : f32
    %496 = vector.broadcast %cst_126 : f32 to vector<2x96xf32>
    %497 = arith.subf %496, %495 : vector<2x96xf32>
    %498 = math.exp %497 : vector<2x96xf32>
    %cst_127 = arith.constant 1.000000e+00 : f32
    %499 = vector.broadcast %cst_127 : f32 to vector<2x96xf32>
    %500 = arith.addf %499, %498 : vector<2x96xf32>
    %501 = tpu.reciprocal %500 {approx = true} : vector<2x96xf32> -> vector<2x96xf32>
    %502 = vector.extract_strided_slice %501 {offsets = [0, 0], sizes = [2, 32], strides = [1, 1]} : vector<2x96xf32> to vector<2x32xf32>
    %503 = vector.extract_strided_slice %501 {offsets = [0, 32], sizes = [2, 32], strides = [1, 1]} : vector<2x96xf32> to vector<2x32xf32>
    %504 = vector.extract_strided_slice %501 {offsets = [0, 64], sizes = [2, 32], strides = [1, 1]} : vector<2x96xf32> to vector<2x32xf32>
    %505 = vector.extract_strided_slice %494 {offsets = [0, 96], sizes = [2, 32], strides = [1, 1]} : vector<2x128xf32> to vector<2x32xf32>
    %506 = math.tanh %505 : vector<2x32xf32>
    %507 = arith.mulf %503, %476 : vector<2x32xf32>
    %508 = arith.mulf %502, %506 : vector<2x32xf32>
    %509 = arith.addf %507, %508 : vector<2x32xf32>
    %510 = math.tanh %509 : vector<2x32xf32>
    %511 = arith.mulf %504, %510 : vector<2x32xf32>
    %512 = vector.extract_strided_slice %511 {offsets = [0, 0], sizes = [2, 16], strides = [1, 1]} : vector<2x32xf32> to vector<2x16xf32>
    %513 = arith.truncf %512 : vector<2x16xf32> to vector<2x16xbf16>
    %cst_128 = arith.constant dense<0.000000e+00> : vector<2x5xf32>
    %514 = tpu.matmul %513, %21, %cst_128 {dimension_numbers = #tpu.dot_dimension_numbers<[1], [0], [0], [1], [0, 0, 1, 1], [], []>} : vector<2x16xbf16>, vector<16x5xbf16>, vector<2x5xf32> -> vector<2x5xf32>
    %515 = vector.extract_strided_slice %511 {offsets = [0, 16], sizes = [2, 16], strides = [1, 1]} : vector<2x32xf32> to vector<2x16xf32>
    %516 = arith.truncf %515 : vector<2x16xf32> to vector<2x16xbf16>
    %cst_129 = arith.constant dense<0.000000e+00> : vector<2x5xf32>
    %517 = tpu.matmul %516, %22, %cst_129 {dimension_numbers = #tpu.dot_dimension_numbers<[1], [0], [0], [1], [0, 0, 1, 1], [], []>} : vector<2x16xbf16>, vector<16x5xbf16>, vector<2x5xf32> -> vector<2x5xf32>
    %518 = arith.addf %283, %517 : vector<2x5xf32>
    %519 = vector.broadcast %11 : vector<1x5xf32> to vector<2x5xf32>
    %520 = arith.addf %518, %519 : vector<2x5xf32>
    %521 = arith.addf %316, %484 : vector<2x5xf32>
    %522 = vector.broadcast %11 : vector<1x5xf32> to vector<2x5xf32>
    %523 = arith.addf %521, %522 : vector<2x5xf32>
    %524 = arith.addf %349, %451 : vector<2x5xf32>
    %525 = vector.broadcast %11 : vector<1x5xf32> to vector<2x5xf32>
    %526 = arith.addf %524, %525 : vector<2x5xf32>
    %527 = arith.addf %382, %418 : vector<2x5xf32>
    %528 = vector.broadcast %11 : vector<1x5xf32> to vector<2x5xf32>
    %529 = arith.addf %527, %528 : vector<2x5xf32>
    %530 = arith.addf %415, %385 : vector<2x5xf32>
    %531 = vector.broadcast %11 : vector<1x5xf32> to vector<2x5xf32>
    %532 = arith.addf %530, %531 : vector<2x5xf32>
    %533 = arith.addf %448, %352 : vector<2x5xf32>
    %534 = vector.broadcast %11 : vector<1x5xf32> to vector<2x5xf32>
    %535 = arith.addf %533, %534 : vector<2x5xf32>
    %536 = arith.addf %481, %319 : vector<2x5xf32>
    %537 = vector.broadcast %11 : vector<1x5xf32> to vector<2x5xf32>
    %538 = arith.addf %536, %537 : vector<2x5xf32>
    %539 = arith.addf %514, %286 : vector<2x5xf32>
    %540 = vector.broadcast %11 : vector<1x5xf32> to vector<2x5xf32>
    %541 = arith.addf %539, %540 : vector<2x5xf32>
    %542 = tpu.iota {dimensions = array<i32: 1>} : vector<2x5xi32>
    %543 = vector.broadcast %12 : vector<1x5xf32> to vector<2x5xf32>
    %544 = arith.addf %543, %520 : vector<2x5xf32>
    %545 = vector.extract_strided_slice %544 {offsets = [0, 0], sizes = [2, 1], strides = [1, 1]} : vector<2x5xf32> to vector<2x1xf32>
    %546 = vector.extract_strided_slice %14 {offsets = [0, 0], sizes = [1, 5], strides = [1, 1]} : vector<5x5xf32> to vector<1x5xf32>
    %547 = vector.broadcast %545 : vector<2x1xf32> to vector<2x5xf32>
    %548 = vector.broadcast %546 : vector<1x5xf32> to vector<2x5xf32>
    %549 = arith.addf %547, %548 : vector<2x5xf32>
    %c0_i32 = arith.constant 0 : i32
    %550 = vector.broadcast %c0_i32 : i32 to vector<2x5xi32>
    %551 = vector.extract_strided_slice %544 {offsets = [0, 1], sizes = [2, 1], strides = [1, 1]} : vector<2x5xf32> to vector<2x1xf32>
    %552 = vector.extract_strided_slice %14 {offsets = [1, 0], sizes = [1, 5], strides = [1, 1]} : vector<5x5xf32> to vector<1x5xf32>
    %553 = vector.broadcast %551 : vector<2x1xf32> to vector<2x5xf32>
    %554 = vector.broadcast %552 : vector<1x5xf32> to vector<2x5xf32>
    %555 = arith.addf %553, %554 : vector<2x5xf32>
    %556 = arith.cmpf ogt, %555, %549 : vector<2x5xf32>
    %c1_i32 = arith.constant 1 : i32
    %557 = vector.broadcast %c1_i32 : i32 to vector<2x5xi32>
    %558 = arith.select %556, %557, %550 : vector<2x5xi1>, vector<2x5xi32>
    %559 = arith.maximumf %549, %555 : vector<2x5xf32>
    %560 = vector.extract_strided_slice %544 {offsets = [0, 2], sizes = [2, 1], strides = [1, 1]} : vector<2x5xf32> to vector<2x1xf32>
    %561 = vector.extract_strided_slice %14 {offsets = [2, 0], sizes = [1, 5], strides = [1, 1]} : vector<5x5xf32> to vector<1x5xf32>
    %562 = vector.broadcast %560 : vector<2x1xf32> to vector<2x5xf32>
    %563 = vector.broadcast %561 : vector<1x5xf32> to vector<2x5xf32>
    %564 = arith.addf %562, %563 : vector<2x5xf32>
    %565 = arith.cmpf ogt, %564, %559 : vector<2x5xf32>
    %c2_i32 = arith.constant 2 : i32
    %566 = vector.broadcast %c2_i32 : i32 to vector<2x5xi32>
    %567 = arith.select %565, %566, %558 : vector<2x5xi1>, vector<2x5xi32>
    %568 = arith.maximumf %559, %564 : vector<2x5xf32>
    %569 = vector.extract_strided_slice %544 {offsets = [0, 3], sizes = [2, 1], strides = [1, 1]} : vector<2x5xf32> to vector<2x1xf32>
    %570 = vector.extract_strided_slice %14 {offsets = [3, 0], sizes = [1, 5], strides = [1, 1]} : vector<5x5xf32> to vector<1x5xf32>
    %571 = vector.broadcast %569 : vector<2x1xf32> to vector<2x5xf32>
    %572 = vector.broadcast %570 : vector<1x5xf32> to vector<2x5xf32>
    %573 = arith.addf %571, %572 : vector<2x5xf32>
    %574 = arith.cmpf ogt, %573, %568 : vector<2x5xf32>
    %c3_i32 = arith.constant 3 : i32
    %575 = vector.broadcast %c3_i32 : i32 to vector<2x5xi32>
    %576 = arith.select %574, %575, %567 : vector<2x5xi1>, vector<2x5xi32>
    %577 = arith.maximumf %568, %573 : vector<2x5xf32>
    %578 = vector.extract_strided_slice %544 {offsets = [0, 4], sizes = [2, 1], strides = [1, 1]} : vector<2x5xf32> to vector<2x1xf32>
    %579 = vector.extract_strided_slice %14 {offsets = [4, 0], sizes = [1, 5], strides = [1, 1]} : vector<5x5xf32> to vector<1x5xf32>
    %580 = vector.broadcast %578 : vector<2x1xf32> to vector<2x5xf32>
    %581 = vector.broadcast %579 : vector<1x5xf32> to vector<2x5xf32>
    %582 = arith.addf %580, %581 : vector<2x5xf32>
    %583 = arith.cmpf ogt, %582, %577 : vector<2x5xf32>
    %c4_i32 = arith.constant 4 : i32
    %584 = vector.broadcast %c4_i32 : i32 to vector<2x5xi32>
    %585 = arith.select %583, %584, %576 : vector<2x5xi1>, vector<2x5xi32>
    %586 = arith.maximumf %577, %582 : vector<2x5xf32>
    %587 = vector.extract_strided_slice %39 {offsets = [0, 1], sizes = [2, 1], strides = [1, 1]} : vector<2x8xf32> to vector<2x1xf32>
    %cst_130 = arith.constant 0.000000e+00 : f32
    %588 = vector.broadcast %cst_130 : f32 to vector<2x1xf32>
    %589 = arith.cmpf ogt, %587, %588 : vector<2x1xf32>
    %590 = arith.addf %586, %523 : vector<2x5xf32>
    %591 = vector.shape_cast %589 : vector<2x1xi1> to vector<2x1xi1>
    %592 = vector.broadcast %591 : vector<2x1xi1> to vector<2x5xi1>
    %593 = arith.select %592, %590, %544 : vector<2x5xi1>, vector<2x5xf32>
    %594 = vector.extract_strided_slice %593 {offsets = [0, 0], sizes = [2, 1], strides = [1, 1]} : vector<2x5xf32> to vector<2x1xf32>
    %595 = vector.extract_strided_slice %14 {offsets = [0, 0], sizes = [1, 5], strides = [1, 1]} : vector<5x5xf32> to vector<1x5xf32>
    %596 = vector.broadcast %594 : vector<2x1xf32> to vector<2x5xf32>
    %597 = vector.broadcast %595 : vector<1x5xf32> to vector<2x5xf32>
    %598 = arith.addf %596, %597 : vector<2x5xf32>
    %c0_i32_131 = arith.constant 0 : i32
    %599 = vector.broadcast %c0_i32_131 : i32 to vector<2x5xi32>
    %600 = vector.extract_strided_slice %593 {offsets = [0, 1], sizes = [2, 1], strides = [1, 1]} : vector<2x5xf32> to vector<2x1xf32>
    %601 = vector.extract_strided_slice %14 {offsets = [1, 0], sizes = [1, 5], strides = [1, 1]} : vector<5x5xf32> to vector<1x5xf32>
    %602 = vector.broadcast %600 : vector<2x1xf32> to vector<2x5xf32>
    %603 = vector.broadcast %601 : vector<1x5xf32> to vector<2x5xf32>
    %604 = arith.addf %602, %603 : vector<2x5xf32>
    %605 = arith.cmpf ogt, %604, %598 : vector<2x5xf32>
    %c1_i32_132 = arith.constant 1 : i32
    %606 = vector.broadcast %c1_i32_132 : i32 to vector<2x5xi32>
    %607 = arith.select %605, %606, %599 : vector<2x5xi1>, vector<2x5xi32>
    %608 = arith.maximumf %598, %604 : vector<2x5xf32>
    %609 = vector.extract_strided_slice %593 {offsets = [0, 2], sizes = [2, 1], strides = [1, 1]} : vector<2x5xf32> to vector<2x1xf32>
    %610 = vector.extract_strided_slice %14 {offsets = [2, 0], sizes = [1, 5], strides = [1, 1]} : vector<5x5xf32> to vector<1x5xf32>
    %611 = vector.broadcast %609 : vector<2x1xf32> to vector<2x5xf32>
    %612 = vector.broadcast %610 : vector<1x5xf32> to vector<2x5xf32>
    %613 = arith.addf %611, %612 : vector<2x5xf32>
    %614 = arith.cmpf ogt, %613, %608 : vector<2x5xf32>
    %c2_i32_133 = arith.constant 2 : i32
    %615 = vector.broadcast %c2_i32_133 : i32 to vector<2x5xi32>
    %616 = arith.select %614, %615, %607 : vector<2x5xi1>, vector<2x5xi32>
    %617 = arith.maximumf %608, %613 : vector<2x5xf32>
    %618 = vector.extract_strided_slice %593 {offsets = [0, 3], sizes = [2, 1], strides = [1, 1]} : vector<2x5xf32> to vector<2x1xf32>
    %619 = vector.extract_strided_slice %14 {offsets = [3, 0], sizes = [1, 5], strides = [1, 1]} : vector<5x5xf32> to vector<1x5xf32>
    %620 = vector.broadcast %618 : vector<2x1xf32> to vector<2x5xf32>
    %621 = vector.broadcast %619 : vector<1x5xf32> to vector<2x5xf32>
    %622 = arith.addf %620, %621 : vector<2x5xf32>
    %623 = arith.cmpf ogt, %622, %617 : vector<2x5xf32>
    %c3_i32_134 = arith.constant 3 : i32
    %624 = vector.broadcast %c3_i32_134 : i32 to vector<2x5xi32>
    %625 = arith.select %623, %624, %616 : vector<2x5xi1>, vector<2x5xi32>
    %626 = arith.maximumf %617, %622 : vector<2x5xf32>
    %627 = vector.extract_strided_slice %593 {offsets = [0, 4], sizes = [2, 1], strides = [1, 1]} : vector<2x5xf32> to vector<2x1xf32>
    %628 = vector.extract_strided_slice %14 {offsets = [4, 0], sizes = [1, 5], strides = [1, 1]} : vector<5x5xf32> to vector<1x5xf32>
    %629 = vector.broadcast %627 : vector<2x1xf32> to vector<2x5xf32>
    %630 = vector.broadcast %628 : vector<1x5xf32> to vector<2x5xf32>
    %631 = arith.addf %629, %630 : vector<2x5xf32>
    %632 = arith.cmpf ogt, %631, %626 : vector<2x5xf32>
    %c4_i32_135 = arith.constant 4 : i32
    %633 = vector.broadcast %c4_i32_135 : i32 to vector<2x5xi32>
    %634 = arith.select %632, %633, %625 : vector<2x5xi1>, vector<2x5xi32>
    %635 = arith.maximumf %626, %631 : vector<2x5xf32>
    %636 = vector.extract_strided_slice %39 {offsets = [0, 2], sizes = [2, 1], strides = [1, 1]} : vector<2x8xf32> to vector<2x1xf32>
    %cst_136 = arith.constant 0.000000e+00 : f32
    %637 = vector.broadcast %cst_136 : f32 to vector<2x1xf32>
    %638 = arith.cmpf ogt, %636, %637 : vector<2x1xf32>
    %639 = arith.addf %635, %526 : vector<2x5xf32>
    %640 = vector.shape_cast %638 : vector<2x1xi1> to vector<2x1xi1>
    %641 = vector.broadcast %640 : vector<2x1xi1> to vector<2x5xi1>
    %642 = arith.select %641, %639, %593 : vector<2x5xi1>, vector<2x5xf32>
    %643 = vector.extract_strided_slice %642 {offsets = [0, 0], sizes = [2, 1], strides = [1, 1]} : vector<2x5xf32> to vector<2x1xf32>
    %644 = vector.extract_strided_slice %14 {offsets = [0, 0], sizes = [1, 5], strides = [1, 1]} : vector<5x5xf32> to vector<1x5xf32>
    %645 = vector.broadcast %643 : vector<2x1xf32> to vector<2x5xf32>
    %646 = vector.broadcast %644 : vector<1x5xf32> to vector<2x5xf32>
    %647 = arith.addf %645, %646 : vector<2x5xf32>
    %c0_i32_137 = arith.constant 0 : i32
    %648 = vector.broadcast %c0_i32_137 : i32 to vector<2x5xi32>
    %649 = vector.extract_strided_slice %642 {offsets = [0, 1], sizes = [2, 1], strides = [1, 1]} : vector<2x5xf32> to vector<2x1xf32>
    %650 = vector.extract_strided_slice %14 {offsets = [1, 0], sizes = [1, 5], strides = [1, 1]} : vector<5x5xf32> to vector<1x5xf32>
    %651 = vector.broadcast %649 : vector<2x1xf32> to vector<2x5xf32>
    %652 = vector.broadcast %650 : vector<1x5xf32> to vector<2x5xf32>
    %653 = arith.addf %651, %652 : vector<2x5xf32>
    %654 = arith.cmpf ogt, %653, %647 : vector<2x5xf32>
    %c1_i32_138 = arith.constant 1 : i32
    %655 = vector.broadcast %c1_i32_138 : i32 to vector<2x5xi32>
    %656 = arith.select %654, %655, %648 : vector<2x5xi1>, vector<2x5xi32>
    %657 = arith.maximumf %647, %653 : vector<2x5xf32>
    %658 = vector.extract_strided_slice %642 {offsets = [0, 2], sizes = [2, 1], strides = [1, 1]} : vector<2x5xf32> to vector<2x1xf32>
    %659 = vector.extract_strided_slice %14 {offsets = [2, 0], sizes = [1, 5], strides = [1, 1]} : vector<5x5xf32> to vector<1x5xf32>
    %660 = vector.broadcast %658 : vector<2x1xf32> to vector<2x5xf32>
    %661 = vector.broadcast %659 : vector<1x5xf32> to vector<2x5xf32>
    %662 = arith.addf %660, %661 : vector<2x5xf32>
    %663 = arith.cmpf ogt, %662, %657 : vector<2x5xf32>
    %c2_i32_139 = arith.constant 2 : i32
    %664 = vector.broadcast %c2_i32_139 : i32 to vector<2x5xi32>
    %665 = arith.select %663, %664, %656 : vector<2x5xi1>, vector<2x5xi32>
    %666 = arith.maximumf %657, %662 : vector<2x5xf32>
    %667 = vector.extract_strided_slice %642 {offsets = [0, 3], sizes = [2, 1], strides = [1, 1]} : vector<2x5xf32> to vector<2x1xf32>
    %668 = vector.extract_strided_slice %14 {offsets = [3, 0], sizes = [1, 5], strides = [1, 1]} : vector<5x5xf32> to vector<1x5xf32>
    %669 = vector.broadcast %667 : vector<2x1xf32> to vector<2x5xf32>
    %670 = vector.broadcast %668 : vector<1x5xf32> to vector<2x5xf32>
    %671 = arith.addf %669, %670 : vector<2x5xf32>
    %672 = arith.cmpf ogt, %671, %666 : vector<2x5xf32>
    %c3_i32_140 = arith.constant 3 : i32
    %673 = vector.broadcast %c3_i32_140 : i32 to vector<2x5xi32>
    %674 = arith.select %672, %673, %665 : vector<2x5xi1>, vector<2x5xi32>
    %675 = arith.maximumf %666, %671 : vector<2x5xf32>
    %676 = vector.extract_strided_slice %642 {offsets = [0, 4], sizes = [2, 1], strides = [1, 1]} : vector<2x5xf32> to vector<2x1xf32>
    %677 = vector.extract_strided_slice %14 {offsets = [4, 0], sizes = [1, 5], strides = [1, 1]} : vector<5x5xf32> to vector<1x5xf32>
    %678 = vector.broadcast %676 : vector<2x1xf32> to vector<2x5xf32>
    %679 = vector.broadcast %677 : vector<1x5xf32> to vector<2x5xf32>
    %680 = arith.addf %678, %679 : vector<2x5xf32>
    %681 = arith.cmpf ogt, %680, %675 : vector<2x5xf32>
    %c4_i32_141 = arith.constant 4 : i32
    %682 = vector.broadcast %c4_i32_141 : i32 to vector<2x5xi32>
    %683 = arith.select %681, %682, %674 : vector<2x5xi1>, vector<2x5xi32>
    %684 = arith.maximumf %675, %680 : vector<2x5xf32>
    %685 = vector.extract_strided_slice %39 {offsets = [0, 3], sizes = [2, 1], strides = [1, 1]} : vector<2x8xf32> to vector<2x1xf32>
    %cst_142 = arith.constant 0.000000e+00 : f32
    %686 = vector.broadcast %cst_142 : f32 to vector<2x1xf32>
    %687 = arith.cmpf ogt, %685, %686 : vector<2x1xf32>
    %688 = arith.addf %684, %529 : vector<2x5xf32>
    %689 = vector.shape_cast %687 : vector<2x1xi1> to vector<2x1xi1>
    %690 = vector.broadcast %689 : vector<2x1xi1> to vector<2x5xi1>
    %691 = arith.select %690, %688, %642 : vector<2x5xi1>, vector<2x5xf32>
    %692 = vector.extract_strided_slice %691 {offsets = [0, 0], sizes = [2, 1], strides = [1, 1]} : vector<2x5xf32> to vector<2x1xf32>
    %693 = vector.extract_strided_slice %14 {offsets = [0, 0], sizes = [1, 5], strides = [1, 1]} : vector<5x5xf32> to vector<1x5xf32>
    %694 = vector.broadcast %692 : vector<2x1xf32> to vector<2x5xf32>
    %695 = vector.broadcast %693 : vector<1x5xf32> to vector<2x5xf32>
    %696 = arith.addf %694, %695 : vector<2x5xf32>
    %c0_i32_143 = arith.constant 0 : i32
    %697 = vector.broadcast %c0_i32_143 : i32 to vector<2x5xi32>
    %698 = vector.extract_strided_slice %691 {offsets = [0, 1], sizes = [2, 1], strides = [1, 1]} : vector<2x5xf32> to vector<2x1xf32>
    %699 = vector.extract_strided_slice %14 {offsets = [1, 0], sizes = [1, 5], strides = [1, 1]} : vector<5x5xf32> to vector<1x5xf32>
    %700 = vector.broadcast %698 : vector<2x1xf32> to vector<2x5xf32>
    %701 = vector.broadcast %699 : vector<1x5xf32> to vector<2x5xf32>
    %702 = arith.addf %700, %701 : vector<2x5xf32>
    %703 = arith.cmpf ogt, %702, %696 : vector<2x5xf32>
    %c1_i32_144 = arith.constant 1 : i32
    %704 = vector.broadcast %c1_i32_144 : i32 to vector<2x5xi32>
    %705 = arith.select %703, %704, %697 : vector<2x5xi1>, vector<2x5xi32>
    %706 = arith.maximumf %696, %702 : vector<2x5xf32>
    %707 = vector.extract_strided_slice %691 {offsets = [0, 2], sizes = [2, 1], strides = [1, 1]} : vector<2x5xf32> to vector<2x1xf32>
    %708 = vector.extract_strided_slice %14 {offsets = [2, 0], sizes = [1, 5], strides = [1, 1]} : vector<5x5xf32> to vector<1x5xf32>
    %709 = vector.broadcast %707 : vector<2x1xf32> to vector<2x5xf32>
    %710 = vector.broadcast %708 : vector<1x5xf32> to vector<2x5xf32>
    %711 = arith.addf %709, %710 : vector<2x5xf32>
    %712 = arith.cmpf ogt, %711, %706 : vector<2x5xf32>
    %c2_i32_145 = arith.constant 2 : i32
    %713 = vector.broadcast %c2_i32_145 : i32 to vector<2x5xi32>
    %714 = arith.select %712, %713, %705 : vector<2x5xi1>, vector<2x5xi32>
    %715 = arith.maximumf %706, %711 : vector<2x5xf32>
    %716 = vector.extract_strided_slice %691 {offsets = [0, 3], sizes = [2, 1], strides = [1, 1]} : vector<2x5xf32> to vector<2x1xf32>
    %717 = vector.extract_strided_slice %14 {offsets = [3, 0], sizes = [1, 5], strides = [1, 1]} : vector<5x5xf32> to vector<1x5xf32>
    %718 = vector.broadcast %716 : vector<2x1xf32> to vector<2x5xf32>
    %719 = vector.broadcast %717 : vector<1x5xf32> to vector<2x5xf32>
    %720 = arith.addf %718, %719 : vector<2x5xf32>
    %721 = arith.cmpf ogt, %720, %715 : vector<2x5xf32>
    %c3_i32_146 = arith.constant 3 : i32
    %722 = vector.broadcast %c3_i32_146 : i32 to vector<2x5xi32>
    %723 = arith.select %721, %722, %714 : vector<2x5xi1>, vector<2x5xi32>
    %724 = arith.maximumf %715, %720 : vector<2x5xf32>
    %725 = vector.extract_strided_slice %691 {offsets = [0, 4], sizes = [2, 1], strides = [1, 1]} : vector<2x5xf32> to vector<2x1xf32>
    %726 = vector.extract_strided_slice %14 {offsets = [4, 0], sizes = [1, 5], strides = [1, 1]} : vector<5x5xf32> to vector<1x5xf32>
    %727 = vector.broadcast %725 : vector<2x1xf32> to vector<2x5xf32>
    %728 = vector.broadcast %726 : vector<1x5xf32> to vector<2x5xf32>
    %729 = arith.addf %727, %728 : vector<2x5xf32>
    %730 = arith.cmpf ogt, %729, %724 : vector<2x5xf32>
    %c4_i32_147 = arith.constant 4 : i32
    %731 = vector.broadcast %c4_i32_147 : i32 to vector<2x5xi32>
    %732 = arith.select %730, %731, %723 : vector<2x5xi1>, vector<2x5xi32>
    %733 = arith.maximumf %724, %729 : vector<2x5xf32>
    %734 = vector.extract_strided_slice %39 {offsets = [0, 4], sizes = [2, 1], strides = [1, 1]} : vector<2x8xf32> to vector<2x1xf32>
    %cst_148 = arith.constant 0.000000e+00 : f32
    %735 = vector.broadcast %cst_148 : f32 to vector<2x1xf32>
    %736 = arith.cmpf ogt, %734, %735 : vector<2x1xf32>
    %737 = arith.addf %733, %532 : vector<2x5xf32>
    %738 = vector.shape_cast %736 : vector<2x1xi1> to vector<2x1xi1>
    %739 = vector.broadcast %738 : vector<2x1xi1> to vector<2x5xi1>
    %740 = arith.select %739, %737, %691 : vector<2x5xi1>, vector<2x5xf32>
    %741 = vector.extract_strided_slice %740 {offsets = [0, 0], sizes = [2, 1], strides = [1, 1]} : vector<2x5xf32> to vector<2x1xf32>
    %742 = vector.extract_strided_slice %14 {offsets = [0, 0], sizes = [1, 5], strides = [1, 1]} : vector<5x5xf32> to vector<1x5xf32>
    %743 = vector.broadcast %741 : vector<2x1xf32> to vector<2x5xf32>
    %744 = vector.broadcast %742 : vector<1x5xf32> to vector<2x5xf32>
    %745 = arith.addf %743, %744 : vector<2x5xf32>
    %c0_i32_149 = arith.constant 0 : i32
    %746 = vector.broadcast %c0_i32_149 : i32 to vector<2x5xi32>
    %747 = vector.extract_strided_slice %740 {offsets = [0, 1], sizes = [2, 1], strides = [1, 1]} : vector<2x5xf32> to vector<2x1xf32>
    %748 = vector.extract_strided_slice %14 {offsets = [1, 0], sizes = [1, 5], strides = [1, 1]} : vector<5x5xf32> to vector<1x5xf32>
    %749 = vector.broadcast %747 : vector<2x1xf32> to vector<2x5xf32>
    %750 = vector.broadcast %748 : vector<1x5xf32> to vector<2x5xf32>
    %751 = arith.addf %749, %750 : vector<2x5xf32>
    %752 = arith.cmpf ogt, %751, %745 : vector<2x5xf32>
    %c1_i32_150 = arith.constant 1 : i32
    %753 = vector.broadcast %c1_i32_150 : i32 to vector<2x5xi32>
    %754 = arith.select %752, %753, %746 : vector<2x5xi1>, vector<2x5xi32>
    %755 = arith.maximumf %745, %751 : vector<2x5xf32>
    %756 = vector.extract_strided_slice %740 {offsets = [0, 2], sizes = [2, 1], strides = [1, 1]} : vector<2x5xf32> to vector<2x1xf32>
    %757 = vector.extract_strided_slice %14 {offsets = [2, 0], sizes = [1, 5], strides = [1, 1]} : vector<5x5xf32> to vector<1x5xf32>
    %758 = vector.broadcast %756 : vector<2x1xf32> to vector<2x5xf32>
    %759 = vector.broadcast %757 : vector<1x5xf32> to vector<2x5xf32>
    %760 = arith.addf %758, %759 : vector<2x5xf32>
    %761 = arith.cmpf ogt, %760, %755 : vector<2x5xf32>
    %c2_i32_151 = arith.constant 2 : i32
    %762 = vector.broadcast %c2_i32_151 : i32 to vector<2x5xi32>
    %763 = arith.select %761, %762, %754 : vector<2x5xi1>, vector<2x5xi32>
    %764 = arith.maximumf %755, %760 : vector<2x5xf32>
    %765 = vector.extract_strided_slice %740 {offsets = [0, 3], sizes = [2, 1], strides = [1, 1]} : vector<2x5xf32> to vector<2x1xf32>
    %766 = vector.extract_strided_slice %14 {offsets = [3, 0], sizes = [1, 5], strides = [1, 1]} : vector<5x5xf32> to vector<1x5xf32>
    %767 = vector.broadcast %765 : vector<2x1xf32> to vector<2x5xf32>
    %768 = vector.broadcast %766 : vector<1x5xf32> to vector<2x5xf32>
    %769 = arith.addf %767, %768 : vector<2x5xf32>
    %770 = arith.cmpf ogt, %769, %764 : vector<2x5xf32>
    %c3_i32_152 = arith.constant 3 : i32
    %771 = vector.broadcast %c3_i32_152 : i32 to vector<2x5xi32>
    %772 = arith.select %770, %771, %763 : vector<2x5xi1>, vector<2x5xi32>
    %773 = arith.maximumf %764, %769 : vector<2x5xf32>
    %774 = vector.extract_strided_slice %740 {offsets = [0, 4], sizes = [2, 1], strides = [1, 1]} : vector<2x5xf32> to vector<2x1xf32>
    %775 = vector.extract_strided_slice %14 {offsets = [4, 0], sizes = [1, 5], strides = [1, 1]} : vector<5x5xf32> to vector<1x5xf32>
    %776 = vector.broadcast %774 : vector<2x1xf32> to vector<2x5xf32>
    %777 = vector.broadcast %775 : vector<1x5xf32> to vector<2x5xf32>
    %778 = arith.addf %776, %777 : vector<2x5xf32>
    %779 = arith.cmpf ogt, %778, %773 : vector<2x5xf32>
    %c4_i32_153 = arith.constant 4 : i32
    %780 = vector.broadcast %c4_i32_153 : i32 to vector<2x5xi32>
    %781 = arith.select %779, %780, %772 : vector<2x5xi1>, vector<2x5xi32>
    %782 = arith.maximumf %773, %778 : vector<2x5xf32>
    %783 = vector.extract_strided_slice %39 {offsets = [0, 5], sizes = [2, 1], strides = [1, 1]} : vector<2x8xf32> to vector<2x1xf32>
    %cst_154 = arith.constant 0.000000e+00 : f32
    %784 = vector.broadcast %cst_154 : f32 to vector<2x1xf32>
    %785 = arith.cmpf ogt, %783, %784 : vector<2x1xf32>
    %786 = arith.addf %782, %535 : vector<2x5xf32>
    %787 = vector.shape_cast %785 : vector<2x1xi1> to vector<2x1xi1>
    %788 = vector.broadcast %787 : vector<2x1xi1> to vector<2x5xi1>
    %789 = arith.select %788, %786, %740 : vector<2x5xi1>, vector<2x5xf32>
    %790 = vector.extract_strided_slice %789 {offsets = [0, 0], sizes = [2, 1], strides = [1, 1]} : vector<2x5xf32> to vector<2x1xf32>
    %791 = vector.extract_strided_slice %14 {offsets = [0, 0], sizes = [1, 5], strides = [1, 1]} : vector<5x5xf32> to vector<1x5xf32>
    %792 = vector.broadcast %790 : vector<2x1xf32> to vector<2x5xf32>
    %793 = vector.broadcast %791 : vector<1x5xf32> to vector<2x5xf32>
    %794 = arith.addf %792, %793 : vector<2x5xf32>
    %c0_i32_155 = arith.constant 0 : i32
    %795 = vector.broadcast %c0_i32_155 : i32 to vector<2x5xi32>
    %796 = vector.extract_strided_slice %789 {offsets = [0, 1], sizes = [2, 1], strides = [1, 1]} : vector<2x5xf32> to vector<2x1xf32>
    %797 = vector.extract_strided_slice %14 {offsets = [1, 0], sizes = [1, 5], strides = [1, 1]} : vector<5x5xf32> to vector<1x5xf32>
    %798 = vector.broadcast %796 : vector<2x1xf32> to vector<2x5xf32>
    %799 = vector.broadcast %797 : vector<1x5xf32> to vector<2x5xf32>
    %800 = arith.addf %798, %799 : vector<2x5xf32>
    %801 = arith.cmpf ogt, %800, %794 : vector<2x5xf32>
    %c1_i32_156 = arith.constant 1 : i32
    %802 = vector.broadcast %c1_i32_156 : i32 to vector<2x5xi32>
    %803 = arith.select %801, %802, %795 : vector<2x5xi1>, vector<2x5xi32>
    %804 = arith.maximumf %794, %800 : vector<2x5xf32>
    %805 = vector.extract_strided_slice %789 {offsets = [0, 2], sizes = [2, 1], strides = [1, 1]} : vector<2x5xf32> to vector<2x1xf32>
    %806 = vector.extract_strided_slice %14 {offsets = [2, 0], sizes = [1, 5], strides = [1, 1]} : vector<5x5xf32> to vector<1x5xf32>
    %807 = vector.broadcast %805 : vector<2x1xf32> to vector<2x5xf32>
    %808 = vector.broadcast %806 : vector<1x5xf32> to vector<2x5xf32>
    %809 = arith.addf %807, %808 : vector<2x5xf32>
    %810 = arith.cmpf ogt, %809, %804 : vector<2x5xf32>
    %c2_i32_157 = arith.constant 2 : i32
    %811 = vector.broadcast %c2_i32_157 : i32 to vector<2x5xi32>
    %812 = arith.select %810, %811, %803 : vector<2x5xi1>, vector<2x5xi32>
    %813 = arith.maximumf %804, %809 : vector<2x5xf32>
    %814 = vector.extract_strided_slice %789 {offsets = [0, 3], sizes = [2, 1], strides = [1, 1]} : vector<2x5xf32> to vector<2x1xf32>
    %815 = vector.extract_strided_slice %14 {offsets = [3, 0], sizes = [1, 5], strides = [1, 1]} : vector<5x5xf32> to vector<1x5xf32>
    %816 = vector.broadcast %814 : vector<2x1xf32> to vector<2x5xf32>
    %817 = vector.broadcast %815 : vector<1x5xf32> to vector<2x5xf32>
    %818 = arith.addf %816, %817 : vector<2x5xf32>
    %819 = arith.cmpf ogt, %818, %813 : vector<2x5xf32>
    %c3_i32_158 = arith.constant 3 : i32
    %820 = vector.broadcast %c3_i32_158 : i32 to vector<2x5xi32>
    %821 = arith.select %819, %820, %812 : vector<2x5xi1>, vector<2x5xi32>
    %822 = arith.maximumf %813, %818 : vector<2x5xf32>
    %823 = vector.extract_strided_slice %789 {offsets = [0, 4], sizes = [2, 1], strides = [1, 1]} : vector<2x5xf32> to vector<2x1xf32>
    %824 = vector.extract_strided_slice %14 {offsets = [4, 0], sizes = [1, 5], strides = [1, 1]} : vector<5x5xf32> to vector<1x5xf32>
    %825 = vector.broadcast %823 : vector<2x1xf32> to vector<2x5xf32>
    %826 = vector.broadcast %824 : vector<1x5xf32> to vector<2x5xf32>
    %827 = arith.addf %825, %826 : vector<2x5xf32>
    %828 = arith.cmpf ogt, %827, %822 : vector<2x5xf32>
    %c4_i32_159 = arith.constant 4 : i32
    %829 = vector.broadcast %c4_i32_159 : i32 to vector<2x5xi32>
    %830 = arith.select %828, %829, %821 : vector<2x5xi1>, vector<2x5xi32>
    %831 = arith.maximumf %822, %827 : vector<2x5xf32>
    %832 = vector.extract_strided_slice %39 {offsets = [0, 6], sizes = [2, 1], strides = [1, 1]} : vector<2x8xf32> to vector<2x1xf32>
    %cst_160 = arith.constant 0.000000e+00 : f32
    %833 = vector.broadcast %cst_160 : f32 to vector<2x1xf32>
    %834 = arith.cmpf ogt, %832, %833 : vector<2x1xf32>
    %835 = arith.addf %831, %538 : vector<2x5xf32>
    %836 = vector.shape_cast %834 : vector<2x1xi1> to vector<2x1xi1>
    %837 = vector.broadcast %836 : vector<2x1xi1> to vector<2x5xi1>
    %838 = arith.select %837, %835, %789 : vector<2x5xi1>, vector<2x5xf32>
    %839 = vector.extract_strided_slice %838 {offsets = [0, 0], sizes = [2, 1], strides = [1, 1]} : vector<2x5xf32> to vector<2x1xf32>
    %840 = vector.extract_strided_slice %14 {offsets = [0, 0], sizes = [1, 5], strides = [1, 1]} : vector<5x5xf32> to vector<1x5xf32>
    %841 = vector.broadcast %839 : vector<2x1xf32> to vector<2x5xf32>
    %842 = vector.broadcast %840 : vector<1x5xf32> to vector<2x5xf32>
    %843 = arith.addf %841, %842 : vector<2x5xf32>
    %c0_i32_161 = arith.constant 0 : i32
    %844 = vector.broadcast %c0_i32_161 : i32 to vector<2x5xi32>
    %845 = vector.extract_strided_slice %838 {offsets = [0, 1], sizes = [2, 1], strides = [1, 1]} : vector<2x5xf32> to vector<2x1xf32>
    %846 = vector.extract_strided_slice %14 {offsets = [1, 0], sizes = [1, 5], strides = [1, 1]} : vector<5x5xf32> to vector<1x5xf32>
    %847 = vector.broadcast %845 : vector<2x1xf32> to vector<2x5xf32>
    %848 = vector.broadcast %846 : vector<1x5xf32> to vector<2x5xf32>
    %849 = arith.addf %847, %848 : vector<2x5xf32>
    %850 = arith.cmpf ogt, %849, %843 : vector<2x5xf32>
    %c1_i32_162 = arith.constant 1 : i32
    %851 = vector.broadcast %c1_i32_162 : i32 to vector<2x5xi32>
    %852 = arith.select %850, %851, %844 : vector<2x5xi1>, vector<2x5xi32>
    %853 = arith.maximumf %843, %849 : vector<2x5xf32>
    %854 = vector.extract_strided_slice %838 {offsets = [0, 2], sizes = [2, 1], strides = [1, 1]} : vector<2x5xf32> to vector<2x1xf32>
    %855 = vector.extract_strided_slice %14 {offsets = [2, 0], sizes = [1, 5], strides = [1, 1]} : vector<5x5xf32> to vector<1x5xf32>
    %856 = vector.broadcast %854 : vector<2x1xf32> to vector<2x5xf32>
    %857 = vector.broadcast %855 : vector<1x5xf32> to vector<2x5xf32>
    %858 = arith.addf %856, %857 : vector<2x5xf32>
    %859 = arith.cmpf ogt, %858, %853 : vector<2x5xf32>
    %c2_i32_163 = arith.constant 2 : i32
    %860 = vector.broadcast %c2_i32_163 : i32 to vector<2x5xi32>
    %861 = arith.select %859, %860, %852 : vector<2x5xi1>, vector<2x5xi32>
    %862 = arith.maximumf %853, %858 : vector<2x5xf32>
    %863 = vector.extract_strided_slice %838 {offsets = [0, 3], sizes = [2, 1], strides = [1, 1]} : vector<2x5xf32> to vector<2x1xf32>
    %864 = vector.extract_strided_slice %14 {offsets = [3, 0], sizes = [1, 5], strides = [1, 1]} : vector<5x5xf32> to vector<1x5xf32>
    %865 = vector.broadcast %863 : vector<2x1xf32> to vector<2x5xf32>
    %866 = vector.broadcast %864 : vector<1x5xf32> to vector<2x5xf32>
    %867 = arith.addf %865, %866 : vector<2x5xf32>
    %868 = arith.cmpf ogt, %867, %862 : vector<2x5xf32>
    %c3_i32_164 = arith.constant 3 : i32
    %869 = vector.broadcast %c3_i32_164 : i32 to vector<2x5xi32>
    %870 = arith.select %868, %869, %861 : vector<2x5xi1>, vector<2x5xi32>
    %871 = arith.maximumf %862, %867 : vector<2x5xf32>
    %872 = vector.extract_strided_slice %838 {offsets = [0, 4], sizes = [2, 1], strides = [1, 1]} : vector<2x5xf32> to vector<2x1xf32>
    %873 = vector.extract_strided_slice %14 {offsets = [4, 0], sizes = [1, 5], strides = [1, 1]} : vector<5x5xf32> to vector<1x5xf32>
    %874 = vector.broadcast %872 : vector<2x1xf32> to vector<2x5xf32>
    %875 = vector.broadcast %873 : vector<1x5xf32> to vector<2x5xf32>
    %876 = arith.addf %874, %875 : vector<2x5xf32>
    %877 = arith.cmpf ogt, %876, %871 : vector<2x5xf32>
    %c4_i32_165 = arith.constant 4 : i32
    %878 = vector.broadcast %c4_i32_165 : i32 to vector<2x5xi32>
    %879 = arith.select %877, %878, %870 : vector<2x5xi1>, vector<2x5xi32>
    %880 = arith.maximumf %871, %876 : vector<2x5xf32>
    %881 = vector.extract_strided_slice %39 {offsets = [0, 7], sizes = [2, 1], strides = [1, 1]} : vector<2x8xf32> to vector<2x1xf32>
    %cst_166 = arith.constant 0.000000e+00 : f32
    %882 = vector.broadcast %cst_166 : f32 to vector<2x1xf32>
    %883 = arith.cmpf ogt, %881, %882 : vector<2x1xf32>
    %884 = arith.addf %880, %541 : vector<2x5xf32>
    %885 = vector.shape_cast %883 : vector<2x1xi1> to vector<2x1xi1>
    %886 = vector.broadcast %885 : vector<2x1xi1> to vector<2x5xi1>
    %887 = arith.select %886, %884, %838 : vector<2x5xi1>, vector<2x5xf32>
    %888 = vector.broadcast %13 : vector<1x5xf32> to vector<2x5xf32>
    %889 = arith.addf %887, %888 : vector<2x5xf32>
    %cst_167 = arith.constant dense<0xFF800000> : vector<2xf32>
    %890 = vector.multi_reduction <maximumf>, %889, %cst_167 [1] : vector<2x5xf32> to vector<2xf32>
    %891 = vector.shape_cast %890 : vector<2xf32> to vector<2x1xf32>
    %892 = vector.broadcast %891 : vector<2x1xf32> to vector<2x5xf32>
    %893 = arith.cmpf oeq, %889, %892 : vector<2x5xf32>
    %c5_i32 = arith.constant 5 : i32
    %894 = vector.broadcast %c5_i32 : i32 to vector<2x5xi32>
    %895 = arith.select %893, %542, %894 : vector<2x5xi1>, vector<2x5xi32>
    %cst_168 = arith.constant dense<2147483647> : vector<2xi32>
    %896 = vector.multi_reduction <minsi>, %895, %cst_168 [1] : vector<2x5xi32> to vector<2xi32>
    %897 = vector.shape_cast %896 : vector<2xi32> to vector<2x1xi32>
    %898 = tpu.iota {dimensions = array<i32: 1>} : vector<2x8xi32>
    %c7_i32 = arith.constant 7 : i32
    %899 = vector.broadcast %c7_i32 : i32 to vector<2x8xi32>
    %900 = arith.cmpi eq, %898, %899 : vector<2x8xi32>
    %c0_i32_169 = arith.constant 0 : i32
    %901 = vector.shape_cast %897 : vector<2x1xi32> to vector<2x1xi32>
    %902 = vector.broadcast %901 : vector<2x1xi32> to vector<2x8xi32>
    %903 = vector.broadcast %c0_i32_169 : i32 to vector<2x8xi32>
    %904 = arith.select %900, %902, %903 : vector<2x8xi1>, vector<2x8xi32>
    %905 = vector.broadcast %897 : vector<2x1xi32> to vector<2x5xi32>
    %906 = arith.cmpi eq, %542, %905 : vector<2x5xi32>
    %c-1_i32 = arith.constant -1 : i32
    %907 = vector.broadcast %c-1_i32 : i32 to vector<2x5xi32>
    %908 = arith.select %906, %879, %907 : vector<2x5xi1>, vector<2x5xi32>
    %cst_170 = arith.constant dense<-2147483648> : vector<2xi32>
    %909 = vector.multi_reduction <maxsi>, %908, %cst_170 [1] : vector<2x5xi32> to vector<2xi32>
    %910 = vector.shape_cast %909 : vector<2xi32> to vector<2x1xi32>
    %cst_171 = arith.constant 0.000000e+00 : f32
    %911 = vector.broadcast %cst_171 : f32 to vector<2x1xf32>
    %912 = arith.cmpf ogt, %881, %911 : vector<2x1xf32>
    %913 = arith.select %912, %910, %897 : vector<2x1xi1>, vector<2x1xi32>
    %c6_i32 = arith.constant 6 : i32
    %914 = vector.broadcast %c6_i32 : i32 to vector<2x8xi32>
    %915 = arith.cmpi eq, %898, %914 : vector<2x8xi32>
    %c0_i32_172 = arith.constant 0 : i32
    %916 = vector.shape_cast %913 : vector<2x1xi32> to vector<2x1xi32>
    %917 = vector.broadcast %916 : vector<2x1xi32> to vector<2x8xi32>
    %918 = vector.broadcast %c0_i32_172 : i32 to vector<2x8xi32>
    %919 = arith.select %915, %917, %918 : vector<2x8xi1>, vector<2x8xi32>
    %920 = arith.addi %904, %919 : vector<2x8xi32>
    %921 = vector.broadcast %913 : vector<2x1xi32> to vector<2x5xi32>
    %922 = arith.cmpi eq, %542, %921 : vector<2x5xi32>
    %c-1_i32_173 = arith.constant -1 : i32
    %923 = vector.broadcast %c-1_i32_173 : i32 to vector<2x5xi32>
    %924 = arith.select %922, %830, %923 : vector<2x5xi1>, vector<2x5xi32>
    %cst_174 = arith.constant dense<-2147483648> : vector<2xi32>
    %925 = vector.multi_reduction <maxsi>, %924, %cst_174 [1] : vector<2x5xi32> to vector<2xi32>
    %926 = vector.shape_cast %925 : vector<2xi32> to vector<2x1xi32>
    %cst_175 = arith.constant 0.000000e+00 : f32
    %927 = vector.broadcast %cst_175 : f32 to vector<2x1xf32>
    %928 = arith.cmpf ogt, %832, %927 : vector<2x1xf32>
    %929 = arith.select %928, %926, %913 : vector<2x1xi1>, vector<2x1xi32>
    %c5_i32_176 = arith.constant 5 : i32
    %930 = vector.broadcast %c5_i32_176 : i32 to vector<2x8xi32>
    %931 = arith.cmpi eq, %898, %930 : vector<2x8xi32>
    %c0_i32_177 = arith.constant 0 : i32
    %932 = vector.shape_cast %929 : vector<2x1xi32> to vector<2x1xi32>
    %933 = vector.broadcast %932 : vector<2x1xi32> to vector<2x8xi32>
    %934 = vector.broadcast %c0_i32_177 : i32 to vector<2x8xi32>
    %935 = arith.select %931, %933, %934 : vector<2x8xi1>, vector<2x8xi32>
    %936 = arith.addi %920, %935 : vector<2x8xi32>
    %937 = vector.broadcast %929 : vector<2x1xi32> to vector<2x5xi32>
    %938 = arith.cmpi eq, %542, %937 : vector<2x5xi32>
    %c-1_i32_178 = arith.constant -1 : i32
    %939 = vector.broadcast %c-1_i32_178 : i32 to vector<2x5xi32>
    %940 = arith.select %938, %781, %939 : vector<2x5xi1>, vector<2x5xi32>
    %cst_179 = arith.constant dense<-2147483648> : vector<2xi32>
    %941 = vector.multi_reduction <maxsi>, %940, %cst_179 [1] : vector<2x5xi32> to vector<2xi32>
    %942 = vector.shape_cast %941 : vector<2xi32> to vector<2x1xi32>
    %cst_180 = arith.constant 0.000000e+00 : f32
    %943 = vector.broadcast %cst_180 : f32 to vector<2x1xf32>
    %944 = arith.cmpf ogt, %783, %943 : vector<2x1xf32>
    %945 = arith.select %944, %942, %929 : vector<2x1xi1>, vector<2x1xi32>
    %c4_i32_181 = arith.constant 4 : i32
    %946 = vector.broadcast %c4_i32_181 : i32 to vector<2x8xi32>
    %947 = arith.cmpi eq, %898, %946 : vector<2x8xi32>
    %c0_i32_182 = arith.constant 0 : i32
    %948 = vector.shape_cast %945 : vector<2x1xi32> to vector<2x1xi32>
    %949 = vector.broadcast %948 : vector<2x1xi32> to vector<2x8xi32>
    %950 = vector.broadcast %c0_i32_182 : i32 to vector<2x8xi32>
    %951 = arith.select %947, %949, %950 : vector<2x8xi1>, vector<2x8xi32>
    %952 = arith.addi %936, %951 : vector<2x8xi32>
    %953 = vector.broadcast %945 : vector<2x1xi32> to vector<2x5xi32>
    %954 = arith.cmpi eq, %542, %953 : vector<2x5xi32>
    %c-1_i32_183 = arith.constant -1 : i32
    %955 = vector.broadcast %c-1_i32_183 : i32 to vector<2x5xi32>
    %956 = arith.select %954, %732, %955 : vector<2x5xi1>, vector<2x5xi32>
    %cst_184 = arith.constant dense<-2147483648> : vector<2xi32>
    %957 = vector.multi_reduction <maxsi>, %956, %cst_184 [1] : vector<2x5xi32> to vector<2xi32>
    %958 = vector.shape_cast %957 : vector<2xi32> to vector<2x1xi32>
    %cst_185 = arith.constant 0.000000e+00 : f32
    %959 = vector.broadcast %cst_185 : f32 to vector<2x1xf32>
    %960 = arith.cmpf ogt, %734, %959 : vector<2x1xf32>
    %961 = arith.select %960, %958, %945 : vector<2x1xi1>, vector<2x1xi32>
    %c3_i32_186 = arith.constant 3 : i32
    %962 = vector.broadcast %c3_i32_186 : i32 to vector<2x8xi32>
    %963 = arith.cmpi eq, %898, %962 : vector<2x8xi32>
    %c0_i32_187 = arith.constant 0 : i32
    %964 = vector.shape_cast %961 : vector<2x1xi32> to vector<2x1xi32>
    %965 = vector.broadcast %964 : vector<2x1xi32> to vector<2x8xi32>
    %966 = vector.broadcast %c0_i32_187 : i32 to vector<2x8xi32>
    %967 = arith.select %963, %965, %966 : vector<2x8xi1>, vector<2x8xi32>
    %968 = arith.addi %952, %967 : vector<2x8xi32>
    %969 = vector.broadcast %961 : vector<2x1xi32> to vector<2x5xi32>
    %970 = arith.cmpi eq, %542, %969 : vector<2x5xi32>
    %c-1_i32_188 = arith.constant -1 : i32
    %971 = vector.broadcast %c-1_i32_188 : i32 to vector<2x5xi32>
    %972 = arith.select %970, %683, %971 : vector<2x5xi1>, vector<2x5xi32>
    %cst_189 = arith.constant dense<-2147483648> : vector<2xi32>
    %973 = vector.multi_reduction <maxsi>, %972, %cst_189 [1] : vector<2x5xi32> to vector<2xi32>
    %974 = vector.shape_cast %973 : vector<2xi32> to vector<2x1xi32>
    %cst_190 = arith.constant 0.000000e+00 : f32
    %975 = vector.broadcast %cst_190 : f32 to vector<2x1xf32>
    %976 = arith.cmpf ogt, %685, %975 : vector<2x1xf32>
    %977 = arith.select %976, %974, %961 : vector<2x1xi1>, vector<2x1xi32>
    %c2_i32_191 = arith.constant 2 : i32
    %978 = vector.broadcast %c2_i32_191 : i32 to vector<2x8xi32>
    %979 = arith.cmpi eq, %898, %978 : vector<2x8xi32>
    %c0_i32_192 = arith.constant 0 : i32
    %980 = vector.shape_cast %977 : vector<2x1xi32> to vector<2x1xi32>
    %981 = vector.broadcast %980 : vector<2x1xi32> to vector<2x8xi32>
    %982 = vector.broadcast %c0_i32_192 : i32 to vector<2x8xi32>
    %983 = arith.select %979, %981, %982 : vector<2x8xi1>, vector<2x8xi32>
    %984 = arith.addi %968, %983 : vector<2x8xi32>
    %985 = vector.broadcast %977 : vector<2x1xi32> to vector<2x5xi32>
    %986 = arith.cmpi eq, %542, %985 : vector<2x5xi32>
    %c-1_i32_193 = arith.constant -1 : i32
    %987 = vector.broadcast %c-1_i32_193 : i32 to vector<2x5xi32>
    %988 = arith.select %986, %634, %987 : vector<2x5xi1>, vector<2x5xi32>
    %cst_194 = arith.constant dense<-2147483648> : vector<2xi32>
    %989 = vector.multi_reduction <maxsi>, %988, %cst_194 [1] : vector<2x5xi32> to vector<2xi32>
    %990 = vector.shape_cast %989 : vector<2xi32> to vector<2x1xi32>
    %cst_195 = arith.constant 0.000000e+00 : f32
    %991 = vector.broadcast %cst_195 : f32 to vector<2x1xf32>
    %992 = arith.cmpf ogt, %636, %991 : vector<2x1xf32>
    %993 = arith.select %992, %990, %977 : vector<2x1xi1>, vector<2x1xi32>
    %c1_i32_196 = arith.constant 1 : i32
    %994 = vector.broadcast %c1_i32_196 : i32 to vector<2x8xi32>
    %995 = arith.cmpi eq, %898, %994 : vector<2x8xi32>
    %c0_i32_197 = arith.constant 0 : i32
    %996 = vector.shape_cast %993 : vector<2x1xi32> to vector<2x1xi32>
    %997 = vector.broadcast %996 : vector<2x1xi32> to vector<2x8xi32>
    %998 = vector.broadcast %c0_i32_197 : i32 to vector<2x8xi32>
    %999 = arith.select %995, %997, %998 : vector<2x8xi1>, vector<2x8xi32>
    %1000 = arith.addi %984, %999 : vector<2x8xi32>
    %1001 = vector.broadcast %993 : vector<2x1xi32> to vector<2x5xi32>
    %1002 = arith.cmpi eq, %542, %1001 : vector<2x5xi32>
    %c-1_i32_198 = arith.constant -1 : i32
    %1003 = vector.broadcast %c-1_i32_198 : i32 to vector<2x5xi32>
    %1004 = arith.select %1002, %585, %1003 : vector<2x5xi1>, vector<2x5xi32>
    %cst_199 = arith.constant dense<-2147483648> : vector<2xi32>
    %1005 = vector.multi_reduction <maxsi>, %1004, %cst_199 [1] : vector<2x5xi32> to vector<2xi32>
    %1006 = vector.shape_cast %1005 : vector<2xi32> to vector<2x1xi32>
    %cst_200 = arith.constant 0.000000e+00 : f32
    %1007 = vector.broadcast %cst_200 : f32 to vector<2x1xf32>
    %1008 = arith.cmpf ogt, %587, %1007 : vector<2x1xf32>
    %1009 = arith.select %1008, %1006, %993 : vector<2x1xi1>, vector<2x1xi32>
    %c0_i32_201 = arith.constant 0 : i32
    %1010 = vector.broadcast %c0_i32_201 : i32 to vector<2x8xi32>
    %1011 = arith.cmpi eq, %898, %1010 : vector<2x8xi32>
    %c0_i32_202 = arith.constant 0 : i32
    %1012 = vector.shape_cast %1009 : vector<2x1xi32> to vector<2x1xi32>
    %1013 = vector.broadcast %1012 : vector<2x1xi32> to vector<2x8xi32>
    %1014 = vector.broadcast %c0_i32_202 : i32 to vector<2x8xi32>
    %1015 = arith.select %1011, %1013, %1014 : vector<2x8xi1>, vector<2x8xi32>
    %1016 = arith.addi %1000, %1015 : vector<2x8xi32>
    %c0_203 = arith.constant 0 : index
    %c0_204 = arith.constant 0 : index
    %1017 = vector.load %arg5[%c0_203, %c0_204] : memref<2x8xi32, #tpu.memory_space<vmem>>, vector<2x8xi32>
    tpu.vector_store %arg5[%c0_203, %c0_204], %1016 {strides = array<i32>} : memref<2x8xi32, #tpu.memory_space<vmem>>, vector<2x8xi32>,
    return
  }
}

</mosaic_0001>

<llo_original>
// kernel: bert_bilstm_crf_forward.1
$region0: #{bert_bilstm_crf_forward.1}
  #allocation0 [shape = 'u32[]', space=smem, size = 0x4, offset = 0x4, fixed_abs, tag = 'smem constant byte address 0x4 - core index']
  #allocation1 [shape = 'u32[144,128]{1,0:T(1,128)}', space=vmem, size = 0x12000, scoped, tag = 'internal scratch']
  %s0 = inlined_call_operand.vmem [shape: s32[16,1], index: 0, kind: input, shape index: {}]
  %s1 = inlined_call_operand.vmem [shape: s32[2,8], index: 1, kind: input, shape index: {}]
  %s2 = inlined_call_operand.vmem [shape: f32[24,128], index: 2, kind: input, shape index: {}]
  %s3 = inlined_call_operand.vmem [shape: bf16[32,768], index: 3, kind: input, shape index: {}]
  %s4 = inlined_call_operand.vmem [shape: bf16[208,32], index: 4, kind: input, shape index: {}]
  %s5 = inlined_call_operand.hbm [shape: s32[2,8], index: 5, kind: output, shape index: {}]
  %s6 = sld [smem:[#allocation0]]
  $region30: #{bert_bilstm_crf_forward.1} parent=0
    _
  %s8 = ssub.s32 1, %s6
  %s9 = scalar_select 0, %s8, %s6
  $region1: #{bert_bilstm_crf_forward.1} parent=0
    #allocation2 [shape = 'u8[1024]{0}', space=vmem, size = 0x400, scoped, tag = 'output window, operand 0, single buffered']
    #allocation3 [shape = 's32[1]{0}', space=sflag, size = 0x4, scoped, tag = 'scoped memory for bert_bilstm_crf_forward.1']
    %10 = vsyncpa [#allocation3], 0
    // Predicated region
    $region2: #{bert_bilstm_crf_forward.1} parent=1 // pred_check
      _
    $region3: #{bert_bilstm_crf_forward.1} parent=1 // pred_check_branch
      %12 = sbr.rel (0) target = $region5
    $region4: #{bert_bilstm_crf_forward.1} parent=1 // pred_region
      _
    $region5: #{bert_bilstm_crf_forward.1} parent=1 // pred_fallthru
      _
    // Predicated region
    $region6: #{bert_bilstm_crf_forward.1} parent=1 // pred_check
      _
    $region7: #{bert_bilstm_crf_forward.1} parent=1 // pred_check_branch
      %14 = sbr.rel (0) target = $region9
    $region8: #{bert_bilstm_crf_forward.1} parent=1 // pred_region
      _
    $region9: #{bert_bilstm_crf_forward.1} parent=1 // pred_fallthru
      _
    // Predicated region
    $region10: #{bert_bilstm_crf_forward.1} parent=1 // pred_check
      _
    $region11: #{bert_bilstm_crf_forward.1} parent=1 // pred_check_branch
      %16 = sbr.rel (0) target = $region13
    $region12: #{bert_bilstm_crf_forward.1} parent=1 // pred_region
      _
    $region13: #{bert_bilstm_crf_forward.1} parent=1 // pred_fallthru
      _
    // Predicated region
    $region14: #{bert_bilstm_crf_forward.1} parent=1 // pred_check
      _
    $region15: #{bert_bilstm_crf_forward.1} parent=1 // pred_check_branch
      %18 = sbr.rel (0) target = $region17
    $region16: #{bert_bilstm_crf_forward.1} parent=1 // pred_region
      _
    $region17: #{bert_bilstm_crf_forward.1} parent=1 // pred_fallthru
      _
    // Predicated region
    $region18: #{bert_bilstm_crf_forward.1} parent=1 // pred_check
      _
    $region19: #{bert_bilstm_crf_forward.1} parent=1 // pred_check_branch
      %20 = sbr.rel (0) target = $region21
    $region20: #{bert_bilstm_crf_forward.1} parent=1 // pred_region
      _
    $region21: #{bert_bilstm_crf_forward.1} parent=1 // pred_fallthru
      _
    %v22 = vld [vmem:[%s2] sm:$0x1]
    %v23 = vld [vmem:[%s2 + $0x1] sm:$0x1]
    %v24 = vld [vmem:[%s2 + $0x2] sm:$0x1]
    %v25 = vld [vmem:[%s2 + $0x3] sm:$0x1]
    %v26 = vld [vmem:[%s2 + $0x4] sm:$0x1]
    %v27 = vld [vmem:[%s2 + $0x5] sm:$0x1]
    %v28 = vld [vmem:[%s2 + $0x6] sm:$0x1]
    %v29 = vld [vmem:[%s2 + $0x7] sm:$0x1]
    %v30 = vld [vmem:[%s2 + $0x8] sm:$0x1]
    %v31 = vld [vmem:[%s2 + $0x9] sm:$0x1]
    %v32 = vld [vmem:[%s2 + $0xa] sm:$0x1]
    %v33 = vld [vmem:[%s2 + $0xb] sm:$0x1]
    %v34 = vld [vmem:[%s2 + $0xc] sm:$0x1]
    %v35 = vld [vmem:[%s2 + $0xd] sm:$0x1]
    %v36 = vld [vmem:[%s2 + $0x10] sm:$0x1f]
    %v37 = vld [vmem:[%s3] sm:$0xf]
    %v38 = vld [vmem:[%s3 + $0x18] sm:$0xf]
    %v39 = vld [vmem:[%s3 + $0x30] sm:$0xf]
    %v40 = vld [vmem:[%s3 + $0x48] sm:$0xf]
    %v41 = vld [vmem:[%s3 + $0x8] sm:$0xf]
    %v42 = vld [vmem:[%s3 + $0x20] sm:$0xf]
    %v43 = vld [vmem:[%s3 + $0x38] sm:$0xf]
    %v44 = vld [vmem:[%s3 + $0x50] sm:$0xf]
    %v45 = vld [vmem:[%s3 + $0xc] sm:$0xf]
    %v46 = vld [vmem:[%s3 + $0x24] sm:$0xf]
    %v47 = vld [vmem:[%s3 + $0x3c] sm:$0xf]
    %v48 = vld [vmem:[%s3 + $0x54] sm:$0xf]
    %v49 = vld [vmem:[%s3 + $0x10] sm:$0xf]
    %v50 = vld [vmem:[%s3 + $0x28] sm:$0xf]
    %v51 = vld [vmem:[%s3 + $0x40] sm:$0xf]
    %v52 = vld [vmem:[%s3 + $0x58] sm:$0xf]
    %v53 = vld [vmem:[%s3 + $0x4] sm:$0xf]
    %v54 = vld [vmem:[%s3 + $0x1c] sm:$0xf]
    %v55 = vld [vmem:[%s3 + $0x34] sm:$0xf]
    %v56 = vld [vmem:[%s3 + $0x4c] sm:$0xf]
    %v57 = vld [vmem:[%s3 + $0x14] sm:$0xf]
    %v58 = vld [vmem:[%s3 + $0x2c] sm:$0xf]
    %v59 = vld [vmem:[%s3 + $0x44] sm:$0xf]
    %v60 = vld [vmem:[%s3 + $0x5c] sm:$0xf]
    %v61 = vld [vmem:[%s4] sm:$0xf]
    %v62 = vld [vmem:[%s4 + $0x4] sm:$0xf]
    %v63 = vld [vmem:[%s4 + $0x8] sm:$0xf]
    %v64 = vld [vmem:[%s4 + $0xc] sm:$0xf]
    %v65 = vld [vmem:[%s4 + $0x10] sm:$0xf]
    %v66 = vld [vmem:[%s4 + $0x14] sm:$0xf]
    %v67 = vld [vmem:[%s4 + $0x18] sm:$0xf]
    %v68 = vld [vmem:[%s4 + $0x1c] sm:$0xf]
    %v69 = vld [vmem:[%s4 + $0x20] sm:$0xf]
    %v70 = vld [vmem:[%s4 + $0x24] sm:$0xf]
    %v71 = vld [vmem:[%s4 + $0x28] sm:$0xf]
    %v72 = vld [vmem:[%s4 + $0x2c] sm:$0xf]
    %v73 = vld [vmem:[%s4 + $0x30] sm:$0xf]
    %v74 = vld [vmem:[%s4 + $0x34] sm:$0xf]
    %v75 = vld [vmem:[%s4 + $0x38] sm:$0xf]
    %v76 = vld [vmem:[%s4 + $0x3c] sm:$0xf]
    %v77 = vld [vmem:[%s4 + $0x40] sm:$0xf]
    %v78 = vld [vmem:[%s4 + $0x48] sm:$0xf]
    %v79 = vld [vmem:[%s4 + $0x4c] sm:$0xf]
    %v80 = vld [vmem:[%s4 + $0x50] sm:$0xf]
    %v81 = vld [vmem:[%s4 + $0x54] sm:$0xf]
    %v82 = vld [vmem:[%s4 + $0x58] sm:$0xf]
    %v83 = vld [vmem:[%s4 + $0x5c] sm:$0xf]
    %v84 = vld [vmem:[%s4 + $0x60] sm:$0xf]
    %v85 = vld [vmem:[%s4 + $0x64] sm:$0xf]
    %v86 = vld [vmem:[%s0] sm:$0xff]
    %v87 = vld [vmem:[%s0 + $0x8] sm:$0xff]
    %v88 = vlaneseq
    %v89 = vand.u32 %v88, 127
    %90 = vset.pattern.permute.xlu0 0
    %91 = vperm.xlu0 %90, %v86
    %v92 = vpop.permute.xlu0 %91
    %93 = vset.pattern.permute.xlu0 0
    %94 = vperm.xlu0 %93, %v87
    %v95 = vpop.permute.xlu0 %94
    %vm96 = vcmp.eq.s32.totalorder %v89, %v92
    %vm97 = vcmp.eq.s32.totalorder %v89, %v95
    %v98 = vsel %vm96, 1.0, 0.0
    %v99 = vsel %vm97, 1.0, 0.0
    %v100 = vpack.c.bf16 %v99, %v98
    %v102 = vunpack.c.l.b16 %v77
    %v103 = vpack.c.b16 %v102, %v102
    %vm104 = vcmask 1043456
    %v107 = vsel %vm104, %v77, %v103
    %v109 = vunpack.c.l.bf16 %v107
    %v110 = vunpack.c.h.bf16 %v107
    %v127 = vunpack.c.l.b16 %v61
    %v128 = vunpack.c.l.b16 %v62
    %v129 = vunpack.c.l.b16 %v63
    %v130 = vunpack.c.l.b16 %v64
    %v131 = vunpack.c.l.b16 %v65
    %v132 = vunpack.c.l.b16 %v66
    %v133 = vunpack.c.l.b16 %v67
    %v134 = vunpack.c.l.b16 %v68
    %v135 = vunpack.c.l.b16 %v69
    %v136 = vunpack.c.l.b16 %v70
    %v137 = vunpack.c.l.b16 %v71
    %v138 = vunpack.c.l.b16 %v72
    %v139 = vunpack.c.l.b16 %v73
    %v140 = vunpack.c.l.b16 %v74
    %v141 = vunpack.c.l.b16 %v75
    %v142 = vunpack.c.l.b16 %v76
    %v143 = vpack.c.b16 %v128, %v127
    %v144 = vpack.c.b16 %v130, %v129
    %v145 = vpack.c.b16 %v132, %v131
    %v146 = vpack.c.b16 %v134, %v133
    %v147 = vpack.c.b16 %v136, %v135
    %v148 = vpack.c.b16 %v138, %v137
    %v149 = vpack.c.b16 %v140, %v139
    %v150 = vpack.c.b16 %v142, %v141
    %159 = vmatprep.subr.bf16.mxu0 0
    %160 = vmatpush1.bf16.msra.mxu0 %v143
    %161 = vmatprep.subr.bf16.mxu0 0
    %162 = vmatpush1.bf16.msra.mxu0 %v144
    %163 = vmatprep.subr.bf16.mxu0 0
    %164 = vmatpush1.bf16.msra.mxu0 %v145
    %165 = vmatprep.subr.bf16.mxu0 0
    %166 = vmatpush1.bf16.msra.mxu0 %v146
    %167 = vmatprep.subr.bf16.mxu0 0
    %168 = vmatpush1.bf16.msra.mxu0 %v147
    %169 = vmatprep.subr.bf16.mxu0 0
    %170 = vmatpush1.bf16.msra.mxu0 %v148
    %171 = vmatprep.subr.bf16.mxu0 0
    %172 = vmatpush1.bf16.msra.mxu0 %v149
    %173 = vmatprep.subr.bf16.mxu0 0
    %174 = vmatpush1.bf16.msra.mxu0 %v150
    %175 = vmatprep.subr.bf16.mxu0 0
    %176 = vmatpush1.bf16.msra.mxu0 0
    %177 = vmatprep.subr.bf16.mxu0 0
    %178 = vmatpush1.bf16.msra.mxu0 0
    %179 = vmatprep.subr.bf16.mxu0 0
    %180 = vmatpush1.bf16.msra.mxu0 0
    %181 = vmatprep.subr.bf16.mxu0 0
    %182 = vmatpush1.bf16.msra.mxu0 0
    %183 = vmatprep.subr.bf16.mxu0 0
    %184 = vmatpush1.bf16.msra.mxu0 0
    %185 = vmatprep.subr.bf16.mxu0 0
    %186 = vmatpush1.bf16.msra.mxu0 0
    %187 = vmatprep.subr.bf16.mxu0 0
    %188 = vmatpush1.bf16.msra.mxu0 0
    %189 = vmatprep.subr.bf16.mxu0 0
    %190 = vmatpush1.bf16.msra.mxu0 0
    %191 = vmatprep.mubr.bf16.mxu0 0
    %192 = vmatmul.mubr.bf16.gmra.mrb[0].mxu0 %v100
    %v193 = vpop.f32.mrb[0].mxu0
    %v194 = vadd.f32 %v109, %v193
    %v195 = vpop.f32.mrb[0].mxu0
    %v196 = vpop.f32.mrb[0].mxu0
    %v197 = vadd.f32 %v110, %v196
    %v198 = vpop.f32.mrb[0].mxu0
    %199 = vdwg.mxu0
    %v200 = vld [vmem:[%s1] sm:$0x3]
    %v201 = vcvt.s32.f32 %v200
    %vm202 = vcmask 261120
    %v203 = vsel %vm202, %v194, 0.0
    %204 = vadd.xlane.f32.xlu0 %v203
    %v205 = vpop.xlane.xlu0 %204
    %v206 = vsel %vm202, %v197, 0.0
    %207 = vadd.xlane.f32.xlu0 %v206
    %v208 = vpop.xlane.xlu0 %207
    %v209 = vrcp.pop 32.0
    %v210 = vmul.f32 %v205, %v209
    %v211 = vmul.f32 %v208, %v209
    %v212 = vsub.f32 %v194, %v210
    %v213 = vsub.f32 %v197, %v211
    %v214 = vmul.f32 %v212, %v212
    %v215 = vmul.f32 %v213, %v213
    %v216 = vsel %vm202, %v214, 0.0
    %217 = vadd.xlane.f32.xlu0 %v216
    %v218 = vpop.xlane.xlu0 %217
    %v219 = vsel %vm202, %v215, 0.0
    %220 = vadd.xlane.f32.xlu0 %v219
    %v221 = vpop.xlane.xlu0 %220
    %v222 = vmul.f32 %v218, %v209
    %v223 = vmul.f32 %v221, %v209
    %v224 = vadd.f32 %v222, 1e-12
    %v225 = vadd.f32 %v223, 1e-12
    %v226 = vrsqrt.pop %v224
    %v227 = vrsqrt.pop %v225
    %v228 = vmul.f32 %v212, %v226
    %v229 = vmul.f32 %v213, %v227
    %v230 = vlaneseq
    %v231 = vshrl.u32 %v230, 7
    %v232 = vsub.s32 0, %v231
    %v233 = vrot.slane %v22, %v232
    %v234 = vmul.f32 %v228, %v233
    %v235 = vmul.f32 %v229, %v233
    %v236 = vlaneseq
    %v237 = vshrl.u32 %v236, 7
    %v238 = vsub.s32 0, %v237
    %v239 = vrot.slane %v23, %v238
    %v240 = vadd.f32 %v234, %v239
    %v241 = vadd.f32 %v235, %v239
    %v242 = vpack.c.bf16 %v241, %v240
    %v243 = vlaneseq
    %v244 = vshrl.u32 %v243, 7
    %v245 = vsub.s32 0, %v244
    %v246 = vrot.slane %v28, %v245
    %v251 = vunpack.c.l.b16 %v37
    %v252 = vunpack.c.l.b16 %v38
    %v253 = vunpack.c.l.b16 %v39
    %v254 = vunpack.c.l.b16 %v40
    %v255 = vpack.c.b16 %v252, %v251
    %v256 = vpack.c.b16 %v254, %v253
    %v260 = vsel %vm202, %v242, 0
    %262 = vmatprep.subr.bf16.mxu0 0
    %263 = vmatpush1.bf16.msra.mxu0 %v255
    %264 = vmatprep.subr.bf16.mxu0 0
    %265 = vmatpush1.bf16.msra.mxu0 %v256
    %266 = vmatprep.subr.bf16.mxu0 0
    %267 = vmatpush1.bf16.msra.mxu0 0
    %268 = vmatprep.subr.bf16.mxu0 0
    %269 = vmatpush1.bf16.msra.mxu0 0
    %270 = vmatprep.subr.bf16.mxu0 0
    %271 = vmatpush1.bf16.msra.mxu0 0
    %272 = vmatprep.subr.bf16.mxu0 0
    %273 = vmatpush1.bf16.msra.mxu0 0
    %274 = vmatprep.subr.bf16.mxu0 0
    %275 = vmatpush1.bf16.msra.mxu0 0
    %276 = vmatprep.subr.bf16.mxu0 0
    %277 = vmatpush1.bf16.msra.mxu0 0
    %278 = vmatprep.subr.bf16.mxu0 0
    %279 = vmatpush1.bf16.msra.mxu0 0
    %280 = vmatprep.subr.bf16.mxu0 0
    %281 = vmatpush1.bf16.msra.mxu0 0
    %282 = vmatprep.subr.bf16.mxu0 0
    %283 = vmatpush1.bf16.msra.mxu0 0
    %284 = vmatprep.subr.bf16.mxu0 0
    %285 = vmatpush1.bf16.msra.mxu0 0
    %286 = vmatprep.subr.bf16.mxu0 0
    %287 = vmatpush1.bf16.msra.mxu0 0
    %288 = vmatprep.subr.bf16.mxu0 0
    %289 = vmatpush1.bf16.msra.mxu0 0
    %290 = vmatprep.subr.bf16.mxu0 0
    %291 = vmatpush1.bf16.msra.mxu0 0
    %292 = vmatprep.subr.bf16.mxu0 0
    %293 = vmatpush1.bf16.msra.mxu0 0
    %294 = vmatprep.mubr.bf16.mxu0 0
    %295 = vmatmul.mubr.bf16.gmra.mrb[0].mxu0 %v260
    %v296 = vpop.f32.mrb[0].mxu0
    %v297 = vadd.f32 %v246, %v296
    %v298 = vpop.f32.mrb[0].mxu0
    %v299 = vpop.f32.mrb[0].mxu0
    %v300 = vadd.f32 %v246, %v299
    %v301 = vpop.f32.mrb[0].mxu0
    %302 = vdwg.mxu0
    %v303 = vsub.f32 1.0, %v201
    %v304 = vmul.f32 %v303, -1e+09
    %v305 = vpack.c.bf16 %v297, %v297
    %307 = vrot.lane.b32.xlu0 %v305, 112
    %v308 = vpop.permute.xlu0 %307
    %vm309 = vcmask 130048
    %v311 = vsel %vm309, %v305, 0
    %v314 = vsel %vm309, %v308, 0
    %316 = vmatprep.subr.bf16.mxu0 0
    %317 = vmatpush1.bf16.xpose.msra.mxu0 %v314
    %318 = vmatprep.subr.bf16.mxu0 0
    %319 = vmatpush1.bf16.xpose.msra.mxu0 0
    %320 = vmatprep.subr.bf16.mxu0 0
    %321 = vmatpush1.bf16.xpose.msra.mxu0 0
    %322 = vmatprep.subr.bf16.mxu0 0
    %323 = vmatpush1.bf16.xpose.msra.mxu0 0
    %324 = vmatprep.subr.bf16.mxu0 0
    %325 = vmatpush1.bf16.xpose.msra.mxu0 0
    %326 = vmatprep.subr.bf16.mxu0 0
    %327 = vmatpush1.bf16.xpose.msra.mxu0 0
    %328 = vmatprep.subr.bf16.mxu0 0
    %329 = vmatpush1.bf16.xpose.msra.mxu0 0
    %330 = vmatprep.subr.bf16.mxu0 0
    %331 = vmatpush1.bf16.xpose.msra.mxu0 0
    %332 = vmatprep.subr.bf16.mxu0 0
    %333 = vmatpush1.bf16.xpose.msra.mxu0 0
    %334 = vmatprep.subr.bf16.mxu0 0
    %335 = vmatpush1.bf16.xpose.msra.mxu0 0
    %336 = vmatprep.subr.bf16.mxu0 0
    %337 = vmatpush1.bf16.xpose.msra.mxu0 0
    %338 = vmatprep.subr.bf16.mxu0 0
    %339 = vmatpush1.bf16.xpose.msra.mxu0 0
    %340 = vmatprep.subr.bf16.mxu0 0
    %341 = vmatpush1.bf16.xpose.msra.mxu0 0
    %342 = vmatprep.subr.bf16.mxu0 0
    %343 = vmatpush1.bf16.xpose.msra.mxu0 0
    %344 = vmatprep.subr.bf16.mxu0 0
    %345 = vmatpush1.bf16.xpose.msra.mxu0 0
    %346 = vmatprep.subr.bf16.mxu0 0
    %347 = vmatpush1.bf16.xpose.msra.mxu0 0
    %348 = vmatprep.mubr.bf16.mxu0 0
    %349 = vmatmul.mubr.bf16.gmra.mrb[0].mxu0 %v311
    %v350 = vpop.f32.mrb[0].mxu0
    %v351 = vadd.f32 0.0, %v350
    %v352 = vpop.f32.mrb[0].mxu0
    %v353 = vpop.f32.mrb[0].mxu0
    %v354 = vpop.f32.mrb[0].mxu0
    %355 = vdwg.mxu0
    %v356 = vmul.f32 %v351, 0.25
    %v357 = vlaneseq
    %v358 = vshrl.u32 %v357, 7
    %v359 = vsub.s32 0, %v358
    %v360 = vrot.slane %v304, %v359
    %v361 = vadd.f32 %v356, %v360
    %vm362 = vcmask 64512
    %v363 = vsel %vm362, %v361, -inf
    %364 = vmax.xlane.f32.xlu0 %v363
    %v365 = vpop.xlane.xlu0 %364
    %v366 = vsub.f32 %v361, %v365
    %v367 = vmul.f32 %v366, 1.442695
    %v368 = vpow.pop %v367
    %v369 = vsel %vm362, %v368, 0.0
    %370 = vadd.xlane.f32.xlu0 %v369
    %v371 = vpop.xlane.xlu0 %370
    %v372 = vrcp.pop %v371
    %v373 = vmul.f32 %v368, %v372
    %v374 = vpack.c.bf16 %v373, %v373
    %375 = vrot.lane.b32.xlu0 %v305, 96
    %v376 = vpop.permute.xlu0 %375
    %v378 = vsel %vm362, %v374, 0
    %v381 = vsel %vm104, %v376, 0
    %383 = vmatprep.subr.bf16.mxu0 0
    %384 = vmatpush1.bf16.msra.mxu0 %v381
    %385 = vmatprep.subr.bf16.mxu0 0
    %386 = vmatpush1.bf16.msra.mxu0 0
    %387 = vmatprep.subr.bf16.mxu0 0
    %388 = vmatpush1.bf16.msra.mxu0 0
    %389 = vmatprep.subr.bf16.mxu0 0
    %390 = vmatpush1.bf16.msra.mxu0 0
    %391 = vmatprep.subr.bf16.mxu0 0
    %392 = vmatpush1.bf16.msra.mxu0 0
    %393 = vmatprep.subr.bf16.mxu0 0
    %394 = vmatpush1.bf16.msra.mxu0 0
    %395 = vmatprep.subr.bf16.mxu0 0
    %396 = vmatpush1.bf16.msra.mxu0 0
    %397 = vmatprep.subr.bf16.mxu0 0
    %398 = vmatpush1.bf16.msra.mxu0 0
    %399 = vmatprep.subr.bf16.mxu0 0
    %400 = vmatpush1.bf16.msra.mxu0 0
    %401 = vmatprep.subr.bf16.mxu0 0
    %402 = vmatpush1.bf16.msra.mxu0 0
    %403 = vmatprep.subr.bf16.mxu0 0
    %404 = vmatpush1.bf16.msra.mxu0 0
    %405 = vmatprep.subr.bf16.mxu0 0
    %406 = vmatpush1.bf16.msra.mxu0 0
    %407 = vmatprep.subr.bf16.mxu0 0
    %408 = vmatpush1.bf16.msra.mxu0 0
    %409 = vmatprep.subr.bf16.mxu0 0
    %410 = vmatpush1.bf16.msra.mxu0 0
    %411 = vmatprep.subr.bf16.mxu0 0
    %412 = vmatpush1.bf16.msra.mxu0 0
    %413 = vmatprep.subr.bf16.mxu0 0
    %414 = vmatpush1.bf16.msra.mxu0 0
    %415 = vmatprep.mubr.bf16.mxu0 0
    %416 = vmatmul.mubr.bf16.gmra.mrb[0].mxu0 %v378
    %v417 = vpop.f32.mrb[0].mxu0
    %v418 = vadd.f32 0.0, %v417
    %v419 = vpop.f32.mrb[0].mxu0
    %v420 = vpop.f32.mrb[0].mxu0
    %v421 = vpop.f32.mrb[0].mxu0
    %422 = vdwg.mxu0
    %v423 = vpack.c.bf16 %v418, %v418
    %424 = vrot.lane.b32.xlu0 %v305, 80
    %v425 = vpop.permute.xlu0 %424
    %426 = vrot.lane.b32.xlu0 %v305, 64
    %v427 = vpop.permute.xlu0 %426
    %v429 = vsel %vm309, %v425, 0
    %v432 = vsel %vm309, %v427, 0
    %434 = vmatprep.subr.bf16.mxu0 0
    %435 = vmatpush1.bf16.xpose.msra.mxu0 %v432
    %436 = vmatprep.subr.bf16.mxu0 0
    %437 = vmatpush1.bf16.xpose.msra.mxu0 0
    %438 = vmatprep.subr.bf16.mxu0 0
    %439 = vmatpush1.bf16.xpose.msra.mxu0 0
    %440 = vmatprep.subr.bf16.mxu0 0
    %441 = vmatpush1.bf16.xpose.msra.mxu0 0
    %442 = vmatprep.subr.bf16.mxu0 0
    %443 = vmatpush1.bf16.xpose.msra.mxu0 0
    %444 = vmatprep.subr.bf16.mxu0 0
    %445 = vmatpush1.bf16.xpose.msra.mxu0 0
    %446 = vmatprep.subr.bf16.mxu0 0
    %447 = vmatpush1.bf16.xpose.msra.mxu0 0
    %448 = vmatprep.subr.bf16.mxu0 0
    %449 = vmatpush1.bf16.xpose.msra.mxu0 0
    %450 = vmatprep.subr.bf16.mxu0 0
    %451 = vmatpush1.bf16.xpose.msra.mxu0 0
    %452 = vmatprep.subr.bf16.mxu0 0
    %453 = vmatpush1.bf16.xpose.msra.mxu0 0
    %454 = vmatprep.subr.bf16.mxu0 0
    %455 = vmatpush1.bf16.xpose.msra.mxu0 0
    %456 = vmatprep.subr.bf16.mxu0 0
    %457 = vmatpush1.bf16.xpose.msra.mxu0 0
    %458 = vmatprep.subr.bf16.mxu0 0
    %459 = vmatpush1.bf16.xpose.msra.mxu0 0
    %460 = vmatprep.subr.bf16.mxu0 0
    %461 = vmatpush1.bf16.xpose.msra.mxu0 0
    %462 = vmatprep.subr.bf16.mxu0 0
    %463 = vmatpush1.bf16.xpose.msra.mxu0 0
    %464 = vmatprep.subr.bf16.mxu0 0
    %465 = vmatpush1.bf16.xpose.msra.mxu0 0
    %466 = vmatprep.mubr.bf16.mxu0 0
    %467 = vmatmul.mubr.bf16.gmra.mrb[0].mxu0 %v429
    %v468 = vpop.f32.mrb[0].mxu0
    %v469 = vadd.f32 0.0, %v468
    %v470 = vpop.f32.mrb[0].mxu0
    %v471 = vpop.f32.mrb[0].mxu0
    %v472 = vpop.f32.mrb[0].mxu0
    %473 = vdwg.mxu0
    %v474 = vmul.f32 %v469, 0.25
    %v475 = vadd.f32 %v474, %v360
    %v476 = vsel %vm362, %v475, -inf
    %477 = vmax.xlane.f32.xlu0 %v476
    %v478 = vpop.xlane.xlu0 %477
    %v479 = vsub.f32 %v475, %v478
    %v480 = vmul.f32 %v479, 1.442695
    %v481 = vpow.pop %v480
    %v482 = vsel %vm362, %v481, 0.0
    %483 = vadd.xlane.f32.xlu0 %v482
    %v484 = vpop.xlane.xlu0 %483
    %v485 = vrcp.pop %v484
    %v486 = vmul.f32 %v481, %v485
    %v487 = vpack.c.bf16 %v486, %v486
    %488 = vrot.lane.b32.xlu0 %v305, 48
    %v489 = vpop.permute.xlu0 %488
    %v491 = vsel %vm362, %v487, 0
    %v494 = vsel %vm104, %v489, 0
    %496 = vmatprep.subr.bf16.mxu0 0
    %497 = vmatpush1.bf16.msra.mxu0 %v494
    %498 = vmatprep.subr.bf16.mxu0 0
    %499 = vmatpush1.bf16.msra.mxu0 0
    %500 = vmatprep.subr.bf16.mxu0 0
    %501 = vmatpush1.bf16.msra.mxu0 0
    %502 = vmatprep.subr.bf16.mxu0 0
    %503 = vmatpush1.bf16.msra.mxu0 0
    %504 = vmatprep.subr.bf16.mxu0 0
    %505 = vmatpush1.bf16.msra.mxu0 0
    %506 = vmatprep.subr.bf16.mxu0 0
    %507 = vmatpush1.bf16.msra.mxu0 0
    %508 = vmatprep.subr.bf16.mxu0 0
    %509 = vmatpush1.bf16.msra.mxu0 0
    %510 = vmatprep.subr.bf16.mxu0 0
    %511 = vmatpush1.bf16.msra.mxu0 0
    %512 = vmatprep.subr.bf16.mxu0 0
    %513 = vmatpush1.bf16.msra.mxu0 0
    %514 = vmatprep.subr.bf16.mxu0 0
    %515 = vmatpush1.bf16.msra.mxu0 0
    %516 = vmatprep.subr.bf16.mxu0 0
    %517 = vmatpush1.bf16.msra.mxu0 0
    %518 = vmatprep.subr.bf16.mxu0 0
    %519 = vmatpush1.bf16.msra.mxu0 0
    %520 = vmatprep.subr.bf16.mxu0 0
    %521 = vmatpush1.bf16.msra.mxu0 0
    %522 = vmatprep.subr.bf16.mxu0 0
    %523 = vmatpush1.bf16.msra.mxu0 0
    %524 = vmatprep.subr.bf16.mxu0 0
    %525 = vmatpush1.bf16.msra.mxu0 0
    %526 = vmatprep.subr.bf16.mxu0 0
    %527 = vmatpush1.bf16.msra.mxu0 0
    %528 = vmatprep.mubr.bf16.mxu0 0
    %529 = vmatmul.mubr.bf16.gmra.mrb[0].mxu0 %v491
    %v530 = vpop.f32.mrb[0].mxu0
    %v531 = vadd.f32 0.0, %v530
    %v532 = vpop.f32.mrb[0].mxu0
    %v533 = vpop.f32.mrb[0].mxu0
    %v534 = vpop.f32.mrb[0].mxu0
    %535 = vdwg.mxu0
    %v536 = vpack.c.bf16 %v531, %v531
    %v539 = vunpack.c.l.b16 %v55
    %v540 = vunpack.c.l.b16 %v56
    %v541 = vpack.c.b16 %v540, %v539
    %v544 = vsel %vm309, %v536, 0
    %546 = vmatprep.subr.bf16.mxu0 0
    %547 = vmatpush1.bf16.msra.mxu0 %v541
    %548 = vmatprep.subr.bf16.mxu0 0
    %549 = vmatpush1.bf16.msra.mxu0 0
    %550 = vmatprep.subr.bf16.mxu0 0
    %551 = vmatpush1.bf16.msra.mxu0 0
    %552 = vmatprep.subr.bf16.mxu0 0
    %553 = vmatpush1.bf16.msra.mxu0 0
    %554 = vmatprep.subr.bf16.mxu0 0
    %555 = vmatpush1.bf16.msra.mxu0 0
    %556 = vmatprep.subr.bf16.mxu0 0
    %557 = vmatpush1.bf16.msra.mxu0 0
    %558 = vmatprep.subr.bf16.mxu0 0
    %559 = vmatpush1.bf16.msra.mxu0 0
    %560 = vmatprep.subr.bf16.mxu0 0
    %561 = vmatpush1.bf16.msra.mxu0 0
    %562 = vmatprep.subr.bf16.mxu0 0
    %563 = vmatpush1.bf16.msra.mxu0 0
    %564 = vmatprep.subr.bf16.mxu0 0
    %565 = vmatpush1.bf16.msra.mxu0 0
    %566 = vmatprep.subr.bf16.mxu0 0
    %567 = vmatpush1.bf16.msra.mxu0 0
    %568 = vmatprep.subr.bf16.mxu0 0
    %569 = vmatpush1.bf16.msra.mxu0 0
    %570 = vmatprep.subr.bf16.mxu0 0
    %571 = vmatpush1.bf16.msra.mxu0 0
    %572 = vmatprep.subr.bf16.mxu0 0
    %573 = vmatpush1.bf16.msra.mxu0 0
    %574 = vmatprep.subr.bf16.mxu0 0
    %575 = vmatpush1.bf16.msra.mxu0 0
    %576 = vmatprep.subr.bf16.mxu0 0
    %577 = vmatpush1.bf16.msra.mxu0 0
    %578 = vmatprep.mubr.bf16.mxu0 0
    %579 = vmatmul.mubr.bf16.gmra.mrb[0].mxu0 %v544
    %v580 = vpop.f32.mrb[0].mxu0
    %v581 = vadd.f32 0.0, %v580
    %v582 = vpop.f32.mrb[0].mxu0
    %v583 = vpop.f32.mrb[0].mxu0
    %v584 = vpop.f32.mrb[0].mxu0
    %585 = vdwg.mxu0
    %v588 = vunpack.c.l.b16 %v53
    %v589 = vunpack.c.l.b16 %v54
    %v590 = vpack.c.b16 %v589, %v588
    %v593 = vsel %vm309, %v423, 0
    %595 = vmatprep.subr.bf16.mxu0 0
    %596 = vmatpush1.bf16.msra.mxu0 %v590
    %597 = vmatprep.subr.bf16.mxu0 0
    %598 = vmatpush1.bf16.msra.mxu0 0
    %599 = vmatprep.subr.bf16.mxu0 0
    %600 = vmatpush1.bf16.msra.mxu0 0
    %601 = vmatprep.subr.bf16.mxu0 0
    %602 = vmatpush1.bf16.msra.mxu0 0
    %603 = vmatprep.subr.bf16.mxu0 0
    %604 = vmatpush1.bf16.msra.mxu0 0
    %605 = vmatprep.subr.bf16.mxu0 0
    %606 = vmatpush1.bf16.msra.mxu0 0
    %607 = vmatprep.subr.bf16.mxu0 0
    %608 = vmatpush1.bf16.msra.mxu0 0
    %609 = vmatprep.subr.bf16.mxu0 0
    %610 = vmatpush1.bf16.msra.mxu0 0
    %611 = vmatprep.subr.bf16.mxu0 0
    %612 = vmatpush1.bf16.msra.mxu0 0
    %613 = vmatprep.subr.bf16.mxu0 0
    %614 = vmatpush1.bf16.msra.mxu0 0
    %615 = vmatprep.subr.bf16.mxu0 0
    %616 = vmatpush1.bf16.msra.mxu0 0
    %617 = vmatprep.subr.bf16.mxu0 0
    %618 = vmatpush1.bf16.msra.mxu0 0
    %619 = vmatprep.subr.bf16.mxu0 0
    %620 = vmatpush1.bf16.msra.mxu0 0
    %621 = vmatprep.subr.bf16.mxu0 0
    %622 = vmatpush1.bf16.msra.mxu0 0
    %623 = vmatprep.subr.bf16.mxu0 0
    %624 = vmatpush1.bf16.msra.mxu0 0
    %625 = vmatprep.subr.bf16.mxu0 0
    %626 = vmatpush1.bf16.msra.mxu0 0
    %627 = vmatprep.mubr.bf16.mxu0 0
    %628 = vmatmul.mubr.bf16.gmra.mrb[0].mxu0 %v593
    %v629 = vpop.f32.mrb[0].mxu0
    %v630 = vadd.f32 %v581, %v629
    %v631 = vpop.f32.mrb[0].mxu0
    %v632 = vpop.f32.mrb[0].mxu0
    %v633 = vpop.f32.mrb[0].mxu0
    %634 = vdwg.mxu0
    %v635 = vpack.c.bf16 %v300, %v300
    %637 = vrot.lane.b32.xlu0 %v635, 112
    %v638 = vpop.permute.xlu0 %637
    %v640 = vsel %vm309, %v635, 0
    %v643 = vsel %vm309, %v638, 0
    %645 = vmatprep.subr.bf16.mxu0 0
    %646 = vmatpush1.bf16.xpose.msra.mxu0 %v643
    %647 = vmatprep.subr.bf16.mxu0 0
    %648 = vmatpush1.bf16.xpose.msra.mxu0 0
    %649 = vmatprep.subr.bf16.mxu0 0
    %650 = vmatpush1.bf16.xpose.msra.mxu0 0
    %651 = vmatprep.subr.bf16.mxu0 0
    %652 = vmatpush1.bf16.xpose.msra.mxu0 0
    %653 = vmatprep.subr.bf16.mxu0 0
    %654 = vmatpush1.bf16.xpose.msra.mxu0 0
    %655 = vmatprep.subr.bf16.mxu0 0
    %656 = vmatpush1.bf16.xpose.msra.mxu0 0
    %657 = vmatprep.subr.bf16.mxu0 0
    %658 = vmatpush1.bf16.xpose.msra.mxu0 0
    %659 = vmatprep.subr.bf16.mxu0 0
    %660 = vmatpush1.bf16.xpose.msra.mxu0 0
    %661 = vmatprep.subr.bf16.mxu0 0
    %662 = vmatpush1.bf16.xpose.msra.mxu0 0
    %663 = vmatprep.subr.bf16.mxu0 0
    %664 = vmatpush1.bf16.xpose.msra.mxu0 0
    %665 = vmatprep.subr.bf16.mxu0 0
    %666 = vmatpush1.bf16.xpose.msra.mxu0 0
    %667 = vmatprep.subr.bf16.mxu0 0
    %668 = vmatpush1.bf16.xpose.msra.mxu0 0
    %669 = vmatprep.subr.bf16.mxu0 0
    %670 = vmatpush1.bf16.xpose.msra.mxu0 0
    %671 = vmatprep.subr.bf16.mxu0 0
    %672 = vmatpush1.bf16.xpose.msra.mxu0 0
    %673 = vmatprep.subr.bf16.mxu0 0
    %674 = vmatpush1.bf16.xpose.msra.mxu0 0
    %675 = vmatprep.subr.bf16.mxu0 0
    %676 = vmatpush1.bf16.xpose.msra.mxu0 0
    %677 = vmatprep.mubr.bf16.mxu0 0
    %678 = vmatmul.mubr.bf16.gmra.mrb[0].mxu0 %v640
    %v679 = vpop.f32.mrb[0].mxu0
    %v680 = vadd.f32 0.0, %v679
    %v681 = vpop.f32.mrb[0].mxu0
    %v682 = vpop.f32.mrb[0].mxu0
    %v683 = vpop.f32.mrb[0].mxu0
    %684 = vdwg.mxu0
    %v685 = vmul.f32 %v680, 0.25
    %v686 = vlaneseq
    %v687 = vshrl.u32 %v686, 7
    %v688 = vsub.s32 1, %v687
    %v689 = vrot.slane %v304, %v688
    %v690 = vadd.f32 %v685, %v689
    %v691 = vsel %vm362, %v690, -inf
    %692 = vmax.xlane.f32.xlu0 %v691
    %v693 = vpop.xlane.xlu0 %692
    %v694 = vsub.f32 %v690, %v693
    %v695 = vmul.f32 %v694, 1.442695
    %v696 = vpow.pop %v695
    %v697 = vsel %vm362, %v696, 0.0
    %698 = vadd.xlane.f32.xlu0 %v697
    %v699 = vpop.xlane.xlu0 %698
    %v700 = vrcp.pop %v699
    %v701 = vmul.f32 %v696, %v700
    %v702 = vpack.c.bf16 %v701, %v701
    %703 = vrot.lane.b32.xlu0 %v635, 96
    %v704 = vpop.permute.xlu0 %703
    %v706 = vsel %vm362, %v702, 0
    %v709 = vsel %vm104, %v704, 0
    %711 = vmatprep.subr.bf16.mxu0 0
    %712 = vmatpush1.bf16.msra.mxu0 %v709
    %713 = vmatprep.subr.bf16.mxu0 0
    %714 = vmatpush1.bf16.msra.mxu0 0
    %715 = vmatprep.subr.bf16.mxu0 0
    %716 = vmatpush1.bf16.msra.mxu0 0
    %717 = vmatprep.subr.bf16.mxu0 0
    %718 = vmatpush1.bf16.msra.mxu0 0
    %719 = vmatprep.subr.bf16.mxu0 0
    %720 = vmatpush1.bf16.msra.mxu0 0
    %721 = vmatprep.subr.bf16.mxu0 0
    %722 = vmatpush1.bf16.msra.mxu0 0
    %723 = vmatprep.subr.bf16.mxu0 0
    %724 = vmatpush1.bf16.msra.mxu0 0
    %725 = vmatprep.subr.bf16.mxu0 0
    %726 = vmatpush1.bf16.msra.mxu0 0
    %727 = vmatprep.subr.bf16.mxu0 0
    %728 = vmatpush1.bf16.msra.mxu0 0
    %729 = vmatprep.subr.bf16.mxu0 0
    %730 = vmatpush1.bf16.msra.mxu0 0
    %731 = vmatprep.subr.bf16.mxu0 0
    %732 = vmatpush1.bf16.msra.mxu0 0
    %733 = vmatprep.subr.bf16.mxu0 0
    %734 = vmatpush1.bf16.msra.mxu0 0
    %735 = vmatprep.subr.bf16.mxu0 0
    %736 = vmatpush1.bf16.msra.mxu0 0
    %737 = vmatprep.subr.bf16.mxu0 0
    %738 = vmatpush1.bf16.msra.mxu0 0
    %739 = vmatprep.subr.bf16.mxu0 0
    %740 = vmatpush1.bf16.msra.mxu0 0
    %741 = vmatprep.subr.bf16.mxu0 0
    %742 = vmatpush1.bf16.msra.mxu0 0
    %743 = vmatprep.mubr.bf16.mxu0 0
    %744 = vmatmul.mubr.bf16.gmra.mrb[0].mxu0 %v706
    %v745 = vpop.f32.mrb[0].mxu0
    %v746 = vadd.f32 0.0, %v745
    %v747 = vpop.f32.mrb[0].mxu0
    %v748 = vpop.f32.mrb[0].mxu0
    %v749 = vpop.f32.mrb[0].mxu0
    %750 = vdwg.mxu0
    %v751 = vpack.c.bf16 %v746, %v746
    %752 = vrot.lane.b32.xlu0 %v635, 80
    %v753 = vpop.permute.xlu0 %752
    %754 = vrot.lane.b32.xlu0 %v635, 64
    %v755 = vpop.permute.xlu0 %754
    %v757 = vsel %vm309, %v753, 0
    %v760 = vsel %vm309, %v755, 0
    %762 = vmatprep.subr.bf16.mxu0 0
    %763 = vmatpush1.bf16.xpose.msra.mxu0 %v760
    %764 = vmatprep.subr.bf16.mxu0 0
    %765 = vmatpush1.bf16.xpose.msra.mxu0 0
    %766 = vmatprep.subr.bf16.mxu0 0
    %767 = vmatpush1.bf16.xpose.msra.mxu0 0
    %768 = vmatprep.subr.bf16.mxu0 0
    %769 = vmatpush1.bf16.xpose.msra.mxu0 0
    %770 = vmatprep.subr.bf16.mxu0 0
    %771 = vmatpush1.bf16.xpose.msra.mxu0 0
    %772 = vmatprep.subr.bf16.mxu0 0
    %773 = vmatpush1.bf16.xpose.msra.mxu0 0
    %774 = vmatprep.subr.bf16.mxu0 0
    %775 = vmatpush1.bf16.xpose.msra.mxu0 0
    %776 = vmatprep.subr.bf16.mxu0 0
    %777 = vmatpush1.bf16.xpose.msra.mxu0 0
    %778 = vmatprep.subr.bf16.mxu0 0
    %779 = vmatpush1.bf16.xpose.msra.mxu0 0
    %780 = vmatprep.subr.bf16.mxu0 0
    %781 = vmatpush1.bf16.xpose.msra.mxu0 0
    %782 = vmatprep.subr.bf16.mxu0 0
    %783 = vmatpush1.bf16.xpose.msra.mxu0 0
    %784 = vmatprep.subr.bf16.mxu0 0
    %785 = vmatpush1.bf16.xpose.msra.mxu0 0
    %786 = vmatprep.subr.bf16.mxu0 0
    %787 = vmatpush1.bf16.xpose.msra.mxu0 0
    %788 = vmatprep.subr.bf16.mxu0 0
    %789 = vmatpush1.bf16.xpose.msra.mxu0 0
    %790 = vmatprep.subr.bf16.mxu0 0
    %791 = vmatpush1.bf16.xpose.msra.mxu0 0
    %792 = vmatprep.subr.bf16.mxu0 0
    %793 = vmatpush1.bf16.xpose.msra.mxu0 0
    %794 = vmatprep.mubr.bf16.mxu0 0
    %795 = vmatmul.mubr.bf16.gmra.mrb[0].mxu0 %v757
    %v796 = vpop.f32.mrb[0].mxu0
    %v797 = vadd.f32 0.0, %v796
    %v798 = vpop.f32.mrb[0].mxu0
    %v799 = vpop.f32.mrb[0].mxu0
    %v800 = vpop.f32.mrb[0].mxu0
    %801 = vdwg.mxu0
    %v802 = vmul.f32 %v797, 0.25
    %v803 = vadd.f32 %v802, %v689
    %v804 = vsel %vm362, %v803, -inf
    %805 = vmax.xlane.f32.xlu0 %v804
    %v806 = vpop.xlane.xlu0 %805
    %v807 = vsub.f32 %v803, %v806
    %v808 = vmul.f32 %v807, 1.442695
    %v809 = vpow.pop %v808
    %v810 = vsel %vm362, %v809, 0.0
    %811 = vadd.xlane.f32.xlu0 %v810
    %v812 = vpop.xlane.xlu0 %811
    %v813 = vrcp.pop %v812
    %v814 = vmul.f32 %v809, %v813
    %v815 = vpack.c.bf16 %v814, %v814
    %816 = vrot.lane.b32.xlu0 %v635, 48
    %v817 = vpop.permute.xlu0 %816
    %v819 = vsel %vm362, %v815, 0
    %v822 = vsel %vm104, %v817, 0
    %824 = vmatprep.subr.bf16.mxu0 0
    %825 = vmatpush1.bf16.msra.mxu0 %v822
    %826 = vmatprep.subr.bf16.mxu0 0
    %827 = vmatpush1.bf16.msra.mxu0 0
    %828 = vmatprep.subr.bf16.mxu0 0
    %829 = vmatpush1.bf16.msra.mxu0 0
    %830 = vmatprep.subr.bf16.mxu0 0
    %831 = vmatpush1.bf16.msra.mxu0 0
    %832 = vmatprep.subr.bf16.mxu0 0
    %833 = vmatpush1.bf16.msra.mxu0 0
    %834 = vmatprep.subr.bf16.mxu0 0
    %835 = vmatpush1.bf16.msra.mxu0 0
    %836 = vmatprep.subr.bf16.mxu0 0
    %837 = vmatpush1.bf16.msra.mxu0 0
    %838 = vmatprep.subr.bf16.mxu0 0
    %839 = vmatpush1.bf16.msra.mxu0 0
    %840 = vmatprep.subr.bf16.mxu0 0
    %841 = vmatpush1.bf16.msra.mxu0 0
    %842 = vmatprep.subr.bf16.mxu0 0
    %843 = vmatpush1.bf16.msra.mxu0 0
    %844 = vmatprep.subr.bf16.mxu0 0
    %845 = vmatpush1.bf16.msra.mxu0 0
    %846 = vmatprep.subr.bf16.mxu0 0
    %847 = vmatpush1.bf16.msra.mxu0 0
    %848 = vmatprep.subr.bf16.mxu0 0
    %849 = vmatpush1.bf16.msra.mxu0 0
    %850 = vmatprep.subr.bf16.mxu0 0
    %851 = vmatpush1.bf16.msra.mxu0 0
    %852 = vmatprep.subr.bf16.mxu0 0
    %853 = vmatpush1.bf16.msra.mxu0 0
    %854 = vmatprep.subr.bf16.mxu0 0
    %855 = vmatpush1.bf16.msra.mxu0 0
    %856 = vmatprep.mubr.bf16.mxu0 0
    %857 = vmatmul.mubr.bf16.gmra.mrb[0].mxu0 %v819
    %v858 = vpop.f32.mrb[0].mxu0
    %v859 = vadd.f32 0.0, %v858
    %v860 = vpop.f32.mrb[0].mxu0
    %v861 = vpop.f32.mrb[0].mxu0
    %v862 = vpop.f32.mrb[0].mxu0
    %863 = vdwg.mxu0
    %v864 = vpack.c.bf16 %v859, %v859
    %v866 = vsel %vm309, %v864, 0
    %868 = vmatprep.subr.bf16.mxu0 0
    %869 = vmatpush1.bf16.msra.mxu0 %v541
    %870 = vmatprep.subr.bf16.mxu0 0
    %871 = vmatpush1.bf16.msra.mxu0 0
    %872 = vmatprep.subr.bf16.mxu0 0
    %873 = vmatpush1.bf16.msra.mxu0 0
    %874 = vmatprep.subr.bf16.mxu0 0
    %875 = vmatpush1.bf16.msra.mxu0 0
    %876 = vmatprep.subr.bf16.mxu0 0
    %877 = vmatpush1.bf16.msra.mxu0 0
    %878 = vmatprep.subr.bf16.mxu0 0
    %879 = vmatpush1.bf16.msra.mxu0 0
    %880 = vmatprep.subr.bf16.mxu0 0
    %881 = vmatpush1.bf16.msra.mxu0 0
    %882 = vmatprep.subr.bf16.mxu0 0
    %883 = vmatpush1.bf16.msra.mxu0 0
    %884 = vmatprep.subr.bf16.mxu0 0
    %885 = vmatpush1.bf16.msra.mxu0 0
    %886 = vmatprep.subr.bf16.mxu0 0
    %887 = vmatpush1.bf16.msra.mxu0 0
    %888 = vmatprep.subr.bf16.mxu0 0
    %889 = vmatpush1.bf16.msra.mxu0 0
    %890 = vmatprep.subr.bf16.mxu0 0
    %891 = vmatpush1.bf16.msra.mxu0 0
    %892 = vmatprep.subr.bf16.mxu0 0
    %893 = vmatpush1.bf16.msra.mxu0 0
    %894 = vmatprep.subr.bf16.mxu0 0
    %895 = vmatpush1.bf16.msra.mxu0 0
    %896 = vmatprep.subr.bf16.mxu0 0
    %897 = vmatpush1.bf16.msra.mxu0 0
    %898 = vmatprep.subr.bf16.mxu0 0
    %899 = vmatpush1.bf16.msra.mxu0 0
    %900 = vmatprep.mubr.bf16.mxu0 0
    %901 = vmatmul.mubr.bf16.gmra.mrb[0].mxu0 %v866
    %v902 = vpop.f32.mrb[0].mxu0
    %v903 = vadd.f32 0.0, %v902
    %v904 = vpop.f32.mrb[0].mxu0
    %v905 = vpop.f32.mrb[0].mxu0
    %v906 = vpop.f32.mrb[0].mxu0
    %907 = vdwg.mxu0
    %v909 = vsel %vm309, %v751, 0
    %911 = vmatprep.subr.bf16.mxu0 0
    %912 = vmatpush1.bf16.msra.mxu0 %v590
    %913 = vmatprep.subr.bf16.mxu0 0
    %914 = vmatpush1.bf16.msra.mxu0 0
    %915 = vmatprep.subr.bf16.mxu0 0
    %916 = vmatpush1.bf16.msra.mxu0 0
    %917 = vmatprep.subr.bf16.mxu0 0
    %918 = vmatpush1.bf16.msra.mxu0 0
    %919 = vmatprep.subr.bf16.mxu0 0
    %920 = vmatpush1.bf16.msra.mxu0 0
    %921 = vmatprep.subr.bf16.mxu0 0
    %922 = vmatpush1.bf16.msra.mxu0 0
    %923 = vmatprep.subr.bf16.mxu0 0
    %924 = vmatpush1.bf16.msra.mxu0 0
    %925 = vmatprep.subr.bf16.mxu0 0
    %926 = vmatpush1.bf16.msra.mxu0 0
    %927 = vmatprep.subr.bf16.mxu0 0
    %928 = vmatpush1.bf16.msra.mxu0 0
    %929 = vmatprep.subr.bf16.mxu0 0
    %930 = vmatpush1.bf16.msra.mxu0 0
    %931 = vmatprep.subr.bf16.mxu0 0
    %932 = vmatpush1.bf16.msra.mxu0 0
    %933 = vmatprep.subr.bf16.mxu0 0
    %934 = vmatpush1.bf16.msra.mxu0 0
    %935 = vmatprep.subr.bf16.mxu0 0
    %936 = vmatpush1.bf16.msra.mxu0 0
    %937 = vmatprep.subr.bf16.mxu0 0
    %938 = vmatpush1.bf16.msra.mxu0 0
    %939 = vmatprep.subr.bf16.mxu0 0
    %940 = vmatpush1.bf16.msra.mxu0 0
    %941 = vmatprep.subr.bf16.mxu0 0
    %942 = vmatpush1.bf16.msra.mxu0 0
    %943 = vmatprep.mubr.bf16.mxu0 0
    %944 = vmatmul.mubr.bf16.gmra.mrb[0].mxu0 %v909
    %v945 = vpop.f32.mrb[0].mxu0
    %v946 = vadd.f32 %v903, %v945
    %v947 = vpop.f32.mrb[0].mxu0
    %v948 = vpop.f32.mrb[0].mxu0
    %v949 = vpop.f32.mrb[0].mxu0
    %950 = vdwg.mxu0
    %v951 = vlaneseq
    %v952 = vshrl.u32 %v951, 7
    %v953 = vsub.s32 0, %v952
    %v954 = vrot.slane %v29, %v953
    %v955 = vadd.f32 %v630, %v954
    %v956 = vadd.f32 %v946, %v954
    %v957 = vadd.f32 %v240, %v955
    %v958 = vadd.f32 %v241, %v956
    %v959 = vsel %vm202, %v957, 0.0
    %960 = vadd.xlane.f32.xlu0 %v959
    %v961 = vpop.xlane.xlu0 %960
    %v962 = vsel %vm202, %v958, 0.0
    %963 = vadd.xlane.f32.xlu0 %v962
    %v964 = vpop.xlane.xlu0 %963
    %v965 = vmul.f32 %v961, %v209
    %v966 = vmul.f32 %v964, %v209
    %v967 = vsub.f32 %v957, %v965
    %v968 = vsub.f32 %v958, %v966
    %v969 = vmul.f32 %v967, %v967
    %v970 = vmul.f32 %v968, %v968
    %v971 = vsel %vm202, %v969, 0.0
    %972 = vadd.xlane.f32.xlu0 %v971
    %v973 = vpop.xlane.xlu0 %972
    %v974 = vsel %vm202, %v970, 0.0
    %975 = vadd.xlane.f32.xlu0 %v974
    %v976 = vpop.xlane.xlu0 %975
    %v977 = vmul.f32 %v973, %v209
    %v978 = vmul.f32 %v976, %v209
    %v979 = vadd.f32 %v977, 1e-12
    %v980 = vadd.f32 %v978, 1e-12
    %v981 = vrsqrt.pop %v979
    %v982 = vrsqrt.pop %v980
    %v983 = vmul.f32 %v967, %v981
    %v984 = vmul.f32 %v968, %v982
    %v985 = vlaneseq
    %v986 = vshrl.u32 %v985, 7
    %v987 = vsub.s32 0, %v986
    %v988 = vrot.slane %v24, %v987
    %v989 = vmul.f32 %v983, %v988
    %v990 = vmul.f32 %v984, %v988
    %v991 = vlaneseq
    %v992 = vshrl.u32 %v991, 7
    %v993 = vsub.s32 0, %v992
    %v994 = vrot.slane %v25, %v993
    %v995 = vadd.f32 %v989, %v994
    %v996 = vadd.f32 %v990, %v994
    %v997 = vpack.c.bf16 %v996, %v995
    %v998 = vlaneseq
    %v999 = vshrl.u32 %v998, 7
    %v1000 = vsub.s32 0, %v999
    %v1001 = vrot.slane %v30, %v1000
    %v1006 = vunpack.c.l.b16 %v41
    %v1007 = vunpack.c.l.b16 %v42
    %v1008 = vunpack.c.l.b16 %v43
    %v1009 = vunpack.c.l.b16 %v44
    %v1010 = vpack.c.b16 %v1007, %v1006
    %v1011 = vpack.c.b16 %v1009, %v1008
    %v1015 = vsel %vm202, %v997, 0
    %1017 = vmatprep.subr.bf16.mxu0 0
    %1018 = vmatpush1.bf16.msra.mxu0 %v1010
    %1019 = vmatprep.subr.bf16.mxu0 0
    %1020 = vmatpush1.bf16.msra.mxu0 %v1011
    %1021 = vmatprep.subr.bf16.mxu0 0
    %1022 = vmatpush1.bf16.msra.mxu0 0
    %1023 = vmatprep.subr.bf16.mxu0 0
    %1024 = vmatpush1.bf16.msra.mxu0 0
    %1025 = vmatprep.subr.bf16.mxu0 0
    %1026 = vmatpush1.bf16.msra.mxu0 0
    %1027 = vmatprep.subr.bf16.mxu0 0
    %1028 = vmatpush1.bf16.msra.mxu0 0
    %1029 = vmatprep.subr.bf16.mxu0 0
    %1030 = vmatpush1.bf16.msra.mxu0 0
    %1031 = vmatprep.subr.bf16.mxu0 0
    %1032 = vmatpush1.bf16.msra.mxu0 0
    %1033 = vmatprep.subr.bf16.mxu0 0
    %1034 = vmatpush1.bf16.msra.mxu0 0
    %1035 = vmatprep.subr.bf16.mxu0 0
    %1036 = vmatpush1.bf16.msra.mxu0 0
    %1037 = vmatprep.subr.bf16.mxu0 0
    %1038 = vmatpush1.bf16.msra.mxu0 0
    %1039 = vmatprep.subr.bf16.mxu0 0
    %1040 = vmatpush1.bf16.msra.mxu0 0
    %1041 = vmatprep.subr.bf16.mxu0 0
    %1042 = vmatpush1.bf16.msra.mxu0 0
    %1043 = vmatprep.subr.bf16.mxu0 0
    %1044 = vmatpush1.bf16.msra.mxu0 0
    %1045 = vmatprep.subr.bf16.mxu0 0
    %1046 = vmatpush1.bf16.msra.mxu0 0
    %1047 = vmatprep.subr.bf16.mxu0 0
    %1048 = vmatpush1.bf16.msra.mxu0 0
    %1049 = vmatprep.mubr.bf16.mxu0 0
    %1050 = vmatmul.mubr.bf16.gmra.mrb[0].mxu0 %v1015
    %v1051 = vpop.f32.mrb[0].mxu0
    %v1052 = vadd.f32 %v1001, %v1051
    %v1053 = vpop.f32.mrb[0].mxu0
    %v1054 = vpop.f32.mrb[0].mxu0
    %v1055 = vadd.f32 %v1001, %v1054
    %v1056 = vpop.f32.mrb[0].mxu0
    %1057 = vdwg.mxu0
    %v1058 = vmul.f32 %v1052, 0.5
    %v1059 = vmul.f32 %v1055, 0.5
    %v1060 = vmul.f32 %v1052, 0.044715
    %v1061 = vmul.f32 %v1055, 0.044715
    %v1062 = vmul.f32 %v1060, %v1052
    %v1063 = vmul.f32 %v1061, %v1055
    %v1064 = vmul.f32 %v1062, %v1052
    %v1065 = vmul.f32 %v1063, %v1055
    %v1066 = vadd.f32 %v1052, %v1064
    %v1067 = vadd.f32 %v1055, %v1065
    %v1068 = vmul.f32 %v1066, 0.7978846
    %v1069 = vmul.f32 %v1067, 0.7978846
    %v1070 = vtanh.pop %v1068
    %v1071 = vtanh.pop %v1069
    %v1072 = vadd.f32 %v1070, 1.0
    %v1073 = vadd.f32 %v1071, 1.0
    %v1074 = vmul.f32 %v1058, %v1072
    %v1075 = vmul.f32 %v1059, %v1073
    %v1076 = vpack.c.bf16 %v1075, %v1074
    %v1077 = vlaneseq
    %v1078 = vshrl.u32 %v1077, 7
    %v1079 = vsub.s32 0, %v1078
    %v1080 = vrot.slane %v31, %v1079
    %v1089 = vunpack.c.l.b16 %v78
    %v1090 = vunpack.c.l.b16 %v79
    %v1091 = vunpack.c.l.b16 %v80
    %v1092 = vunpack.c.l.b16 %v81
    %v1093 = vunpack.c.l.b16 %v82
    %v1094 = vunpack.c.l.b16 %v83
    %v1095 = vunpack.c.l.b16 %v84
    %v1096 = vunpack.c.l.b16 %v85
    %v1097 = vpack.c.b16 %v1090, %v1089
    %v1098 = vpack.c.b16 %v1092, %v1091
    %v1099 = vpack.c.b16 %v1094, %v1093
    %v1100 = vpack.c.b16 %v1096, %v1095
    %vm1105 = vcmask 523264
    %v1107 = vsel %vm1105, %v1076, 0
    %1109 = vmatprep.subr.bf16.mxu0 0
    %1110 = vmatpush1.bf16.msra.mxu0 %v1097
    %1111 = vmatprep.subr.bf16.mxu0 0
    %1112 = vmatpush1.bf16.msra.mxu0 %v1098
    %1113 = vmatprep.subr.bf16.mxu0 0
    %1114 = vmatpush1.bf16.msra.mxu0 %v1099
    %1115 = vmatprep.subr.bf16.mxu0 0
    %1116 = vmatpush1.bf16.msra.mxu0 %v1100
    %1117 = vmatprep.subr.bf16.mxu0 0
    %1118 = vmatpush1.bf16.msra.mxu0 0
    %1119 = vmatprep.subr.bf16.mxu0 0
    %1120 = vmatpush1.bf16.msra.mxu0 0
    %1121 = vmatprep.subr.bf16.mxu0 0
    %1122 = vmatpush1.bf16.msra.mxu0 0
    %1123 = vmatprep.subr.bf16.mxu0 0
    %1124 = vmatpush1.bf16.msra.mxu0 0
    %1125 = vmatprep.subr.bf16.mxu0 0
    %1126 = vmatpush1.bf16.msra.mxu0 0
    %1127 = vmatprep.subr.bf16.mxu0 0
    %1128 = vmatpush1.bf16.msra.mxu0 0
    %1129 = vmatprep.subr.bf16.mxu0 0
    %1130 = vmatpush1.bf16.msra.mxu0 0
    %1131 = vmatprep.subr.bf16.mxu0 0
    %1132 = vmatpush1.bf16.msra.mxu0 0
    %1133 = vmatprep.subr.bf16.mxu0 0
    %1134 = vmatpush1.bf16.msra.mxu0 0
    %1135 = vmatprep.subr.bf16.mxu0 0
    %1136 = vmatpush1.bf16.msra.mxu0 0
    %1137 = vmatprep.subr.bf16.mxu0 0
    %1138 = vmatpush1.bf16.msra.mxu0 0
    %1139 = vmatprep.subr.bf16.mxu0 0
    %1140 = vmatpush1.bf16.msra.mxu0 0
    %1141 = vmatprep.mubr.bf16.mxu0 0
    %1142 = vmatmul.mubr.bf16.gmra.mrb[0].mxu0 %v1107
    %v1143 = vpop.f32.mrb[0].mxu0
    %v1144 = vadd.f32 %v1080, %v1143
    %v1145 = vpop.f32.mrb[0].mxu0
    %v1146 = vpop.f32.mrb[0].mxu0
    %v1147 = vadd.f32 %v1080, %v1146
    %v1148 = vpop.f32.mrb[0].mxu0
    %1149 = vdwg.mxu0
    %v1150 = vadd.f32 %v995, %v1144
    %v1151 = vadd.f32 %v996, %v1147
    %v1152 = vsel %vm202, %v1150, 0.0
    %1153 = vadd.xlane.f32.xlu0 %v1152
    %v1154 = vpop.xlane.xlu0 %1153
    %v1155 = vsel %vm202, %v1151, 0.0
    %1156 = vadd.xlane.f32.xlu0 %v1155
    %v1157 = vpop.xlane.xlu0 %1156
    %v1158 = vmul.f32 %v1154, %v209
    %v1159 = vmul.f32 %v1157, %v209
    %v1160 = vsub.f32 %v1150, %v1158
    %v1161 = vsub.f32 %v1151, %v1159
    %v1162 = vmul.f32 %v1160, %v1160
    %v1163 = vmul.f32 %v1161, %v1161
    %v1164 = vsel %vm202, %v1162, 0.0
    %1165 = vadd.xlane.f32.xlu0 %v1164
    %v1166 = vpop.xlane.xlu0 %1165
    %v1167 = vsel %vm202, %v1163, 0.0
    %1168 = vadd.xlane.f32.xlu0 %v1167
    %v1169 = vpop.xlane.xlu0 %1168
    %v1170 = vmul.f32 %v1166, %v209
    %v1171 = vmul.f32 %v1169, %v209
    %v1172 = vadd.f32 %v1170, 1e-12
    %v1173 = vadd.f32 %v1171, 1e-12
    %v1174 = vrsqrt.pop %v1172
    %v1175 = vrsqrt.pop %v1173
    %v1176 = vmul.f32 %v1160, %v1174
    %v1177 = vmul.f32 %v1161, %v1175
    %v1178 = vlaneseq
    %v1179 = vshrl.u32 %v1178, 7
    %v1180 = vsub.s32 0, %v1179
    %v1181 = vrot.slane %v26, %v1180
    %v1182 = vmul.f32 %v1176, %v1181
    %v1183 = vmul.f32 %v1177, %v1181
    %v1184 = vlaneseq
    %v1185 = vshrl.u32 %v1184, 7
    %v1186 = vsub.s32 0, %v1185
    %v1187 = vrot.slane %v27, %v1186
    %v1188 = vadd.f32 %v1182, %v1187
    %v1189 = vadd.f32 %v1183, %v1187
    %v1190 = vpack.c.bf16 %v1189, %v1188
    %v1191 = vlaneseq
    %v1192 = vshrl.u32 %v1191, 7
    %v1193 = vsub.s32 0, %v1192
    %v1194 = vrot.slane %v32, %v1193
    %v1199 = vunpack.c.l.b16 %v45
    %v1200 = vunpack.c.l.b16 %v46
    %v1201 = vunpack.c.l.b16 %v47
    %v1202 = vunpack.c.l.b16 %v48
    %v1203 = vpack.c.b16 %v1200, %v1199
    %v1204 = vpack.c.b16 %v1202, %v1201
    %v1208 = vsel %vm202, %v1190, 0
    %1210 = vmatprep.subr.bf16.mxu0 0
    %1211 = vmatpush1.bf16.msra.mxu0 %v1203
    %1212 = vmatprep.subr.bf16.mxu0 0
    %1213 = vmatpush1.bf16.msra.mxu0 %v1204
    %1214 = vmatprep.subr.bf16.mxu0 0
    %1215 = vmatpush1.bf16.msra.mxu0 0
    %1216 = vmatprep.subr.bf16.mxu0 0
    %1217 = vmatpush1.bf16.msra.mxu0 0
    %1218 = vmatprep.subr.bf16.mxu0 0
    %1219 = vmatpush1.bf16.msra.mxu0 0
    %1220 = vmatprep.subr.bf16.mxu0 0
    %1221 = vmatpush1.bf16.msra.mxu0 0
    %1222 = vmatprep.subr.bf16.mxu0 0
    %1223 = vmatpush1.bf16.msra.mxu0 0
    %1224 = vmatprep.subr.bf16.mxu0 0
    %1225 = vmatpush1.bf16.msra.mxu0 0
    %1226 = vmatprep.subr.bf16.mxu0 0
    %1227 = vmatpush1.bf16.msra.mxu0 0
    %1228 = vmatprep.subr.bf16.mxu0 0
    %1229 = vmatpush1.bf16.msra.mxu0 0
    %1230 = vmatprep.subr.bf16.mxu0 0
    %1231 = vmatpush1.bf16.msra.mxu0 0
    %1232 = vmatprep.subr.bf16.mxu0 0
    %1233 = vmatpush1.bf16.msra.mxu0 0
    %1234 = vmatprep.subr.bf16.mxu0 0
    %1235 = vmatpush1.bf16.msra.mxu0 0
    %1236 = vmatprep.subr.bf16.mxu0 0
    %1237 = vmatpush1.bf16.msra.mxu0 0
    %1238 = vmatprep.subr.bf16.mxu0 0
    %1239 = vmatpush1.bf16.msra.mxu0 0
    %1240 = vmatprep.subr.bf16.mxu0 0
    %1241 = vmatpush1.bf16.msra.mxu0 0
    %1242 = vmatprep.mubr.bf16.mxu0 0
    %1243 = vmatmul.mubr.bf16.gmra.mrb[0].mxu0 %v1208
    %v1244 = vpop.f32.mrb[0].mxu0
    %v1245 = vadd.f32 %v1194, %v1244
    %v1246 = vpop.f32.mrb[0].mxu0
    %v1247 = vpop.f32.mrb[0].mxu0
    %v1248 = vadd.f32 %v1194, %v1247
    %v1249 = vpop.f32.mrb[0].mxu0
    %1250 = vdwg.mxu0
    %v1251 = vand.u32 %v89, 31
    %vm1252 = vcmp.lt.s32.totalorder %v1251, 16
    %v1253 = vsel %vm1252, 1, 0
    %vm1254 = vcmp.eq.s32.totalorder %v1253, 1
    %v1257 = vrot.slane %v1248, 7
    %vm1258 = vcmask 1041409
    %v1259 = vsel %vm1258, %v1257, %v1245
    %v1261 = vrot.slane %v1245, 7
    %v1262 = vrot.slane %v1248, 6
    %v1263 = vsel %vm1258, %v1262, %v1261
    %v1265 = vsel %vm1254, %v1259, %v1263
    %v1270 = vunpack.c.l.b16 %v49
    %v1271 = vunpack.c.l.b16 %v50
    %v1272 = vunpack.c.l.b16 %v51
    %v1273 = vunpack.c.l.b16 %v52
    %v1274 = vpack.c.b16 %v1271, %v1270
    %v1275 = vpack.c.b16 %v1273, %v1272
    %v1279 = vsel %vm202, 0, 0
    %1281 = vmatprep.subr.bf16.mxu0 0
    %1282 = vmatpush1.bf16.msra.mxu0 %v1274
    %1283 = vmatprep.subr.bf16.mxu0 0
    %1284 = vmatpush1.bf16.msra.mxu0 %v1275
    %1285 = vmatprep.subr.bf16.mxu0 0
    %1286 = vmatpush1.bf16.msra.mxu0 0
    %1287 = vmatprep.subr.bf16.mxu0 0
    %1288 = vmatpush1.bf16.msra.mxu0 0
    %1289 = vmatprep.subr.bf16.mxu0 0
    %1290 = vmatpush1.bf16.msra.mxu0 0
    %1291 = vmatprep.subr.bf16.mxu0 0
    %1292 = vmatpush1.bf16.msra.mxu0 0
    %1293 = vmatprep.subr.bf16.mxu0 0
    %1294 = vmatpush1.bf16.msra.mxu0 0
    %1295 = vmatprep.subr.bf16.mxu0 0
    %1296 = vmatpush1.bf16.msra.mxu0 0
    %1297 = vmatprep.subr.bf16.mxu0 0
    %1298 = vmatpush1.bf16.msra.mxu0 0
    %1299 = vmatprep.subr.bf16.mxu0 0
    %1300 = vmatpush1.bf16.msra.mxu0 0
    %1301 = vmatprep.subr.bf16.mxu0 0
    %1302 = vmatpush1.bf16.msra.mxu0 0
    %1303 = vmatprep.subr.bf16.mxu0 0
    %1304 = vmatpush1.bf16.msra.mxu0 0
    %1305 = vmatprep.subr.bf16.mxu0 0
    %1306 = vmatpush1.bf16.msra.mxu0 0
    %1307 = vmatprep.subr.bf16.mxu0 0
    %1308 = vmatpush1.bf16.msra.mxu0 0
    %1309 = vmatprep.subr.bf16.mxu0 0
    %1310 = vmatpush1.bf16.msra.mxu0 0
    %1311 = vmatprep.subr.bf16.mxu0 0
    %1312 = vmatpush1.bf16.msra.mxu0 0
    %1313 = vmatprep.mubr.bf16.mxu0 0
    %1314 = vmatmul.mubr.bf16.gmra.mrb[0].mxu0 %v1279
    %v1315 = vpop.f32.mrb[0].mxu0
    %v1316 = vadd.f32 0.0, %v1315
    %v1317 = vpop.f32.mrb[0].mxu0
    %v1318 = vpop.f32.mrb[0].mxu0
    %v1319 = vpop.f32.mrb[0].mxu0
    %1320 = vdwg.mxu0
    %v1321 = vadd.f32 %v1265, %v1316
    %v1322 = vsub.f32 0.0, %v1321
    %v1323 = vmul.f32 %v1322, 1.442695
    %v1324 = vpow.pop %v1323
    %v1325 = vadd.f32 %v1324, 1.0
    %v1326 = vrcp.pop %v1325
    %v1327 = vtanh.pop %v1321
    %v1328 = vmul.f32 %v1326, 0.0
    %1330 = vrot.lane.b32.xlu0 %v1327, 32
    %v1331 = vpop.permute.xlu0 %1330
    %v1333 = vmul.f32 %v1326, %v1331
    %1335 = vrot.lane.b32.xlu0 %v1333, 32
    %v1336 = vpop.permute.xlu0 %1335
    %v1338 = vadd.f32 %v1328, %v1336
    %v1339 = vtanh.pop %v1338
    %1341 = vrot.lane.b32.xlu0 %v1339, 32
    %v1342 = vpop.permute.xlu0 %1341
    %v1344 = vmul.f32 %v1326, %v1342
    %v1345 = vpack.c.bf16 %v1344, %v1344
    %1347 = vrot.lane.b32.xlu0 %v1345, 48
    %v1348 = vpop.permute.xlu0 %1347
    %v1351 = vunpack.c.l.b16 %v59
    %v1352 = vunpack.c.l.b16 %v60
    %v1353 = vpack.c.b16 %v1352, %v1351
    %v1356 = vsel %vm309, %v1348, 0
    %1358 = vmatprep.subr.bf16.mxu0 0
    %1359 = vmatpush1.bf16.msra.mxu0 %v1353
    %1360 = vmatprep.subr.bf16.mxu0 0
    %1361 = vmatpush1.bf16.msra.mxu0 0
    %1362 = vmatprep.subr.bf16.mxu0 0
    %1363 = vmatpush1.bf16.msra.mxu0 0
    %1364 = vmatprep.subr.bf16.mxu0 0
    %1365 = vmatpush1.bf16.msra.mxu0 0
    %1366 = vmatprep.subr.bf16.mxu0 0
    %1367 = vmatpush1.bf16.msra.mxu0 0
    %1368 = vmatprep.subr.bf16.mxu0 0
    %1369 = vmatpush1.bf16.msra.mxu0 0
    %1370 = vmatprep.subr.bf16.mxu0 0
    %1371 = vmatpush1.bf16.msra.mxu0 0
    %1372 = vmatprep.subr.bf16.mxu0 0
    %1373 = vmatpush1.bf16.msra.mxu0 0
    %1374 = vmatprep.subr.bf16.mxu0 0
    %1375 = vmatpush1.bf16.msra.mxu0 0
    %1376 = vmatprep.subr.bf16.mxu0 0
    %1377 = vmatpush1.bf16.msra.mxu0 0
    %1378 = vmatprep.subr.bf16.mxu0 0
    %1379 = vmatpush1.bf16.msra.mxu0 0
    %1380 = vmatprep.subr.bf16.mxu0 0
    %1381 = vmatpush1.bf16.msra.mxu0 0
    %1382 = vmatprep.subr.bf16.mxu0 0
    %1383 = vmatpush1.bf16.msra.mxu0 0
    %1384 = vmatprep.subr.bf16.mxu0 0
    %1385 = vmatpush1.bf16.msra.mxu0 0
    %1386 = vmatprep.subr.bf16.mxu0 0
    %1387 = vmatpush1.bf16.msra.mxu0 0
    %1388 = vmatprep.subr.bf16.mxu0 0
    %1389 = vmatpush1.bf16.msra.mxu0 0
    %1390 = vmatprep.mubr.bf16.mxu0 0
    %1391 = vmatmul.mubr.bf16.gmra.mrb[0].mxu0 %v1356
    %v1392 = vpop.f32.mrb[0].mxu0
    %v1393 = vadd.f32 0.0, %v1392
    %v1394 = vpop.f32.mrb[0].mxu0
    %v1395 = vpop.f32.mrb[0].mxu0
    %v1396 = vpop.f32.mrb[0].mxu0
    %1397 = vdwg.mxu0
    %v1398 = vrot.slane %v1245, 1
    %v1399 = vsel %vm1258, %v1248, %v1398
    %v1401 = vrot.slane %v1245, 6
    %v1402 = vrot.slane %v1248, 5
    %v1403 = vsel %vm1258, %v1402, %v1401
    %v1405 = vsel %vm1254, %v1399, %v1403
    %1406 = vrot.lane.b32.xlu0 %v1345, 64
    %v1407 = vpop.permute.xlu0 %1406
    %v1409 = vsel %vm202, %v1407, 0
    %1411 = vmatprep.subr.bf16.mxu0 0
    %1412 = vmatpush1.bf16.msra.mxu0 %v1274
    %1413 = vmatprep.subr.bf16.mxu0 0
    %1414 = vmatpush1.bf16.msra.mxu0 %v1275
    %1415 = vmatprep.subr.bf16.mxu0 0
    %1416 = vmatpush1.bf16.msra.mxu0 0
    %1417 = vmatprep.subr.bf16.mxu0 0
    %1418 = vmatpush1.bf16.msra.mxu0 0
    %1419 = vmatprep.subr.bf16.mxu0 0
    %1420 = vmatpush1.bf16.msra.mxu0 0
    %1421 = vmatprep.subr.bf16.mxu0 0
    %1422 = vmatpush1.bf16.msra.mxu0 0
    %1423 = vmatprep.subr.bf16.mxu0 0
    %1424 = vmatpush1.bf16.msra.mxu0 0
    %1425 = vmatprep.subr.bf16.mxu0 0
    %1426 = vmatpush1.bf16.msra.mxu0 0
    %1427 = vmatprep.subr.bf16.mxu0 0
    %1428 = vmatpush1.bf16.msra.mxu0 0
    %1429 = vmatprep.subr.bf16.mxu0 0
    %1430 = vmatpush1.bf16.msra.mxu0 0
    %1431 = vmatprep.subr.bf16.mxu0 0
    %1432 = vmatpush1.bf16.msra.mxu0 0
    %1433 = vmatprep.subr.bf16.mxu0 0
    %1434 = vmatpush1.bf16.msra.mxu0 0
    %1435 = vmatprep.subr.bf16.mxu0 0
    %1436 = vmatpush1.bf16.msra.mxu0 0
    %1437 = vmatprep.subr.bf16.mxu0 0
    %1438 = vmatpush1.bf16.msra.mxu0 0
    %1439 = vmatprep.subr.bf16.mxu0 0
    %1440 = vmatpush1.bf16.msra.mxu0 0
    %1441 = vmatprep.subr.bf16.mxu0 0
    %1442 = vmatpush1.bf16.msra.mxu0 0
    %1443 = vmatprep.mubr.bf16.mxu0 0
    %1444 = vmatmul.mubr.bf16.gmra.mrb[0].mxu0 %v1409
    %v1445 = vpop.f32.mrb[0].mxu0
    %v1446 = vadd.f32 0.0, %v1445
    %v1447 = vpop.f32.mrb[0].mxu0
    %v1448 = vpop.f32.mrb[0].mxu0
    %v1449 = vpop.f32.mrb[0].mxu0
    %1450 = vdwg.mxu0
    %v1451 = vadd.f32 %v1405, %v1446
    %v1452 = vsub.f32 0.0, %v1451
    %v1453 = vmul.f32 %v1452, 1.442695
    %v1454 = vpow.pop %v1453
    %v1455 = vadd.f32 %v1454, 1.0
    %v1456 = vrcp.pop %v1455
    %v1457 = vtanh.pop %v1451
    %v1458 = vmul.f32 %v1456, %v1338
    %1460 = vrot.lane.b32.xlu0 %v1457, 32
    %v1461 = vpop.permute.xlu0 %1460
    %v1463 = vmul.f32 %v1456, %v1461
    %1465 = vrot.lane.b32.xlu0 %v1463, 32
    %v1466 = vpop.permute.xlu0 %1465
    %v1468 = vadd.f32 %v1458, %v1466
    %v1469 = vtanh.pop %v1468
    %1471 = vrot.lane.b32.xlu0 %v1469, 32
    %v1472 = vpop.permute.xlu0 %1471
    %v1474 = vmul.f32 %v1456, %v1472
    %v1475 = vpack.c.bf16 %v1474, %v1474
    %1477 = vrot.lane.b32.xlu0 %v1475, 48
    %v1478 = vpop.permute.xlu0 %1477
    %v1480 = vsel %vm309, %v1478, 0
    %1482 = vmatprep.subr.bf16.mxu0 0
    %1483 = vmatpush1.bf16.msra.mxu0 %v1353
    %1484 = vmatprep.subr.bf16.mxu0 0
    %1485 = vmatpush1.bf16.msra.mxu0 0
    %1486 = vmatprep.subr.bf16.mxu0 0
    %1487 = vmatpush1.bf16.msra.mxu0 0
    %1488 = vmatprep.subr.bf16.mxu0 0
    %1489 = vmatpush1.bf16.msra.mxu0 0
    %1490 = vmatprep.subr.bf16.mxu0 0
    %1491 = vmatpush1.bf16.msra.mxu0 0
    %1492 = vmatprep.subr.bf16.mxu0 0
    %1493 = vmatpush1.bf16.msra.mxu0 0
    %1494 = vmatprep.subr.bf16.mxu0 0
    %1495 = vmatpush1.bf16.msra.mxu0 0
    %1496 = vmatprep.subr.bf16.mxu0 0
    %1497 = vmatpush1.bf16.msra.mxu0 0
    %1498 = vmatprep.subr.bf16.mxu0 0
    %1499 = vmatpush1.bf16.msra.mxu0 0
    %1500 = vmatprep.subr.bf16.mxu0 0
    %1501 = vmatpush1.bf16.msra.mxu0 0
    %1502 = vmatprep.subr.bf16.mxu0 0
    %1503 = vmatpush1.bf16.msra.mxu0 0
    %1504 = vmatprep.subr.bf16.mxu0 0
    %1505 = vmatpush1.bf16.msra.mxu0 0
    %1506 = vmatprep.subr.bf16.mxu0 0
    %1507 = vmatpush1.bf16.msra.mxu0 0
    %1508 = vmatprep.subr.bf16.mxu0 0
    %1509 = vmatpush1.bf16.msra.mxu0 0
    %1510 = vmatprep.subr.bf16.mxu0 0
    %1511 = vmatpush1.bf16.msra.mxu0 0
    %1512 = vmatprep.subr.bf16.mxu0 0
    %1513 = vmatpush1.bf16.msra.mxu0 0
    %1514 = vmatprep.mubr.bf16.mxu0 0
    %1515 = vmatmul.mubr.bf16.gmra.mrb[0].mxu0 %v1480
    %v1516 = vpop.f32.mrb[0].mxu0
    %v1517 = vadd.f32 0.0, %v1516
    %v1518 = vpop.f32.mrb[0].mxu0
    %v1519 = vpop.f32.mrb[0].mxu0
    %v1520 = vpop.f32.mrb[0].mxu0
    %1521 = vdwg.mxu0
    %v1522 = vrot.slane %v1245, 2
    %v1523 = vrot.slane %v1248, 1
    %v1524 = vsel %vm1258, %v1523, %v1522
    %v1526 = vrot.slane %v1245, 5
    %v1527 = vrot.slane %v1248, 4
    %v1528 = vsel %vm1258, %v1527, %v1526
    %v1530 = vsel %vm1254, %v1524, %v1528
    %1531 = vrot.lane.b32.xlu0 %v1475, 64
    %v1532 = vpop.permute.xlu0 %1531
    %v1534 = vsel %vm202, %v1532, 0
    %1536 = vmatprep.subr.bf16.mxu0 0
    %1537 = vmatpush1.bf16.msra.mxu0 %v1274
    %1538 = vmatprep.subr.bf16.mxu0 0
    %1539 = vmatpush1.bf16.msra.mxu0 %v1275
    %1540 = vmatprep.subr.bf16.mxu0 0
    %1541 = vmatpush1.bf16.msra.mxu0 0
    %1542 = vmatprep.subr.bf16.mxu0 0
    %1543 = vmatpush1.bf16.msra.mxu0 0
    %1544 = vmatprep.subr.bf16.mxu0 0
    %1545 = vmatpush1.bf16.msra.mxu0 0
    %1546 = vmatprep.subr.bf16.mxu0 0
    %1547 = vmatpush1.bf16.msra.mxu0 0
    %1548 = vmatprep.subr.bf16.mxu0 0
    %1549 = vmatpush1.bf16.msra.mxu0 0
    %1550 = vmatprep.subr.bf16.mxu0 0
    %1551 = vmatpush1.bf16.msra.mxu0 0
    %1552 = vmatprep.subr.bf16.mxu0 0
    %1553 = vmatpush1.bf16.msra.mxu0 0
    %1554 = vmatprep.subr.bf16.mxu0 0
    %1555 = vmatpush1.bf16.msra.mxu0 0
    %1556 = vmatprep.subr.bf16.mxu0 0
    %1557 = vmatpush1.bf16.msra.mxu0 0
    %1558 = vmatprep.subr.bf16.mxu0 0
    %1559 = vmatpush1.bf16.msra.mxu0 0
    %1560 = vmatprep.subr.bf16.mxu0 0
    %1561 = vmatpush1.bf16.msra.mxu0 0
    %1562 = vmatprep.subr.bf16.mxu0 0
    %1563 = vmatpush1.bf16.msra.mxu0 0
    %1564 = vmatprep.subr.bf16.mxu0 0
    %1565 = vmatpush1.bf16.msra.mxu0 0
    %1566 = vmatprep.subr.bf16.mxu0 0
    %1567 = vmatpush1.bf16.msra.mxu0 0
    %1568 = vmatprep.mubr.bf16.mxu0 0
    %1569 = vmatmul.mubr.bf16.gmra.mrb[0].mxu0 %v1534
    %v1570 = vpop.f32.mrb[0].mxu0
    %v1571 = vadd.f32 0.0, %v1570
    %v1572 = vpop.f32.mrb[0].mxu0
    %v1573 = vpop.f32.mrb[0].mxu0
    %v1574 = vpop.f32.mrb[0].mxu0
    %1575 = vdwg.mxu0
    %v1576 = vadd.f32 %v1530, %v1571
    %v1577 = vsub.f32 0.0, %v1576
    %v1578 = vmul.f32 %v1577, 1.442695
    %v1579 = vpow.pop %v1578
    %v1580 = vadd.f32 %v1579, 1.0
    %v1581 = vrcp.pop %v1580
    %v1582 = vtanh.pop %v1576
    %v1583 = vmul.f32 %v1581, %v1468
    %1585 = vrot.lane.b32.xlu0 %v1582, 32
    %v1586 = vpop.permute.xlu0 %1585
    %v1588 = vmul.f32 %v1581, %v1586
    %1590 = vrot.lane.b32.xlu0 %v1588, 32
    %v1591 = vpop.permute.xlu0 %1590
    %v1593 = vadd.f32 %v1583, %v1591
    %v1594 = vtanh.pop %v1593
    %1596 = vrot.lane.b32.xlu0 %v1594, 32
    %v1597 = vpop.permute.xlu0 %1596
    %v1599 = vmul.f32 %v1581, %v1597
    %v1600 = vpack.c.bf16 %v1599, %v1599
    %1602 = vrot.lane.b32.xlu0 %v1600, 48
    %v1603 = vpop.permute.xlu0 %1602
    %v1605 = vsel %vm309, %v1603, 0
    %1607 = vmatprep.subr.bf16.mxu0 0
    %1608 = vmatpush1.bf16.msra.mxu0 %v1353
    %1609 = vmatprep.subr.bf16.mxu0 0
    %1610 = vmatpush1.bf16.msra.mxu0 0
    %1611 = vmatprep.subr.bf16.mxu0 0
    %1612 = vmatpush1.bf16.msra.mxu0 0
    %1613 = vmatprep.subr.bf16.mxu0 0
    %1614 = vmatpush1.bf16.msra.mxu0 0
    %1615 = vmatprep.subr.bf16.mxu0 0
    %1616 = vmatpush1.bf16.msra.mxu0 0
    %1617 = vmatprep.subr.bf16.mxu0 0
    %1618 = vmatpush1.bf16.msra.mxu0 0
    %1619 = vmatprep.subr.bf16.mxu0 0
    %1620 = vmatpush1.bf16.msra.mxu0 0
    %1621 = vmatprep.subr.bf16.mxu0 0
    %1622 = vmatpush1.bf16.msra.mxu0 0
    %1623 = vmatprep.subr.bf16.mxu0 0
    %1624 = vmatpush1.bf16.msra.mxu0 0
    %1625 = vmatprep.subr.bf16.mxu0 0
    %1626 = vmatpush1.bf16.msra.mxu0 0
    %1627 = vmatprep.subr.bf16.mxu0 0
    %1628 = vmatpush1.bf16.msra.mxu0 0
    %1629 = vmatprep.subr.bf16.mxu0 0
    %1630 = vmatpush1.bf16.msra.mxu0 0
    %1631 = vmatprep.subr.bf16.mxu0 0
    %1632 = vmatpush1.bf16.msra.mxu0 0
    %1633 = vmatprep.subr.bf16.mxu0 0
    %1634 = vmatpush1.bf16.msra.mxu0 0
    %1635 = vmatprep.subr.bf16.mxu0 0
    %1636 = vmatpush1.bf16.msra.mxu0 0
    %1637 = vmatprep.subr.bf16.mxu0 0
    %1638 = vmatpush1.bf16.msra.mxu0 0
    %1639 = vmatprep.mubr.bf16.mxu0 0
    %1640 = vmatmul.mubr.bf16.gmra.mrb[0].mxu0 %v1605
    %v1641 = vpop.f32.mrb[0].mxu0
    %v1642 = vadd.f32 0.0, %v1641
    %v1643 = vpop.f32.mrb[0].mxu0
    %v1644 = vpop.f32.mrb[0].mxu0
    %v1645 = vpop.f32.mrb[0].mxu0
    %1646 = vdwg.mxu0
    %v1647 = vrot.slane %v1245, 3
    %v1648 = vrot.slane %v1248, 2
    %v1649 = vsel %vm1258, %v1648, %v1647
    %v1651 = vrot.slane %v1245, 4
    %v1652 = vrot.slane %v1248, 3
    %v1653 = vsel %vm1258, %v1652, %v1651
    %v1655 = vsel %vm1254, %v1649, %v1653
    %1656 = vrot.lane.b32.xlu0 %v1600, 64
    %v1657 = vpop.permute.xlu0 %1656
    %v1659 = vsel %vm202, %v1657, 0
    %1661 = vmatprep.subr.bf16.mxu0 0
    %1662 = vmatpush1.bf16.msra.mxu0 %v1274
    %1663 = vmatprep.subr.bf16.mxu0 0
    %1664 = vmatpush1.bf16.msra.mxu0 %v1275
    %1665 = vmatprep.subr.bf16.mxu0 0
    %1666 = vmatpush1.bf16.msra.mxu0 0
    %1667 = vmatprep.subr.bf16.mxu0 0
    %1668 = vmatpush1.bf16.msra.mxu0 0
    %1669 = vmatprep.subr.bf16.mxu0 0
    %1670 = vmatpush1.bf16.msra.mxu0 0
    %1671 = vmatprep.subr.bf16.mxu0 0
    %1672 = vmatpush1.bf16.msra.mxu0 0
    %1673 = vmatprep.subr.bf16.mxu0 0
    %1674 = vmatpush1.bf16.msra.mxu0 0
    %1675 = vmatprep.subr.bf16.mxu0 0
    %1676 = vmatpush1.bf16.msra.mxu0 0
    %1677 = vmatprep.subr.bf16.mxu0 0
    %1678 = vmatpush1.bf16.msra.mxu0 0
    %1679 = vmatprep.subr.bf16.mxu0 0
    %1680 = vmatpush1.bf16.msra.mxu0 0
    %1681 = vmatprep.subr.bf16.mxu0 0
    %1682 = vmatpush1.bf16.msra.mxu0 0
    %1683 = vmatprep.subr.bf16.mxu0 0
    %1684 = vmatpush1.bf16.msra.mxu0 0
    %1685 = vmatprep.subr.bf16.mxu0 0
    %1686 = vmatpush1.bf16.msra.mxu0 0
    %1687 = vmatprep.subr.bf16.mxu0 0
    %1688 = vmatpush1.bf16.msra.mxu0 0
    %1689 = vmatprep.subr.bf16.mxu0 0
    %1690 = vmatpush1.bf16.msra.mxu0 0
    %1691 = vmatprep.subr.bf16.mxu0 0
    %1692 = vmatpush1.bf16.msra.mxu0 0
    %1693 = vmatprep.mubr.bf16.mxu0 0
    %1694 = vmatmul.mubr.bf16.gmra.mrb[0].mxu0 %v1659
    %v1695 = vpop.f32.mrb[0].mxu0
    %v1696 = vadd.f32 0.0, %v1695
    %v1697 = vpop.f32.mrb[0].mxu0
    %v1698 = vpop.f32.mrb[0].mxu0
    %v1699 = vpop.f32.mrb[0].mxu0
    %1700 = vdwg.mxu0
    %v1701 = vadd.f32 %v1655, %v1696
    %v1702 = vsub.f32 0.0, %v1701
    %v1703 = vmul.f32 %v1702, 1.442695
    %v1704 = vpow.pop %v1703
    %v1705 = vadd.f32 %v1704, 1.0
    %v1706 = vrcp.pop %v1705
    %v1707 = vtanh.pop %v1701
    %v1708 = vmul.f32 %v1706, %v1593
    %1710 = vrot.lane.b32.xlu0 %v1707, 32
    %v1711 = vpop.permute.xlu0 %1710
    %v1713 = vmul.f32 %v1706, %v1711
    %1715 = vrot.lane.b32.xlu0 %v1713, 32
    %v1716 = vpop.permute.xlu0 %1715
    %v1718 = vadd.f32 %v1708, %v1716
    %v1719 = vtanh.pop %v1718
    %1721 = vrot.lane.b32.xlu0 %v1719, 32
    %v1722 = vpop.permute.xlu0 %1721
    %v1724 = vmul.f32 %v1706, %v1722
    %v1725 = vpack.c.bf16 %v1724, %v1724
    %1727 = vrot.lane.b32.xlu0 %v1725, 48
    %v1728 = vpop.permute.xlu0 %1727
    %v1730 = vsel %vm309, %v1728, 0
    %1732 = vmatprep.subr.bf16.mxu0 0
    %1733 = vmatpush1.bf16.msra.mxu0 %v1353
    %1734 = vmatprep.subr.bf16.mxu0 0
    %1735 = vmatpush1.bf16.msra.mxu0 0
    %1736 = vmatprep.subr.bf16.mxu0 0
    %1737 = vmatpush1.bf16.msra.mxu0 0
    %1738 = vmatprep.subr.bf16.mxu0 0
    %1739 = vmatpush1.bf16.msra.mxu0 0
    %1740 = vmatprep.subr.bf16.mxu0 0
    %1741 = vmatpush1.bf16.msra.mxu0 0
    %1742 = vmatprep.subr.bf16.mxu0 0
    %1743 = vmatpush1.bf16.msra.mxu0 0
    %1744 = vmatprep.subr.bf16.mxu0 0
    %1745 = vmatpush1.bf16.msra.mxu0 0
    %1746 = vmatprep.subr.bf16.mxu0 0
    %1747 = vmatpush1.bf16.msra.mxu0 0
    %1748 = vmatprep.subr.bf16.mxu0 0
    %1749 = vmatpush1.bf16.msra.mxu0 0
    %1750 = vmatprep.subr.bf16.mxu0 0
    %1751 = vmatpush1.bf16.msra.mxu0 0
    %1752 = vmatprep.subr.bf16.mxu0 0
    %1753 = vmatpush1.bf16.msra.mxu0 0
    %1754 = vmatprep.subr.bf16.mxu0 0
    %1755 = vmatpush1.bf16.msra.mxu0 0
    %1756 = vmatprep.subr.bf16.mxu0 0
    %1757 = vmatpush1.bf16.msra.mxu0 0
    %1758 = vmatprep.subr.bf16.mxu0 0
    %1759 = vmatpush1.bf16.msra.mxu0 0
    %1760 = vmatprep.subr.bf16.mxu0 0
    %1761 = vmatpush1.bf16.msra.mxu0 0
    %1762 = vmatprep.subr.bf16.mxu0 0
    %1763 = vmatpush1.bf16.msra.mxu0 0
    %1764 = vmatprep.mubr.bf16.mxu0 0
    %1765 = vmatmul.mubr.bf16.gmra.mrb[0].mxu0 %v1730
    %v1766 = vpop.f32.mrb[0].mxu0
    %v1767 = vadd.f32 0.0, %v1766
    %v1768 = vpop.f32.mrb[0].mxu0
    %v1769 = vpop.f32.mrb[0].mxu0
    %v1770 = vpop.f32.mrb[0].mxu0
    %1771 = vdwg.mxu0
    %v1772 = vsel %vm1254, %v1653, %v1649
    %1773 = vrot.lane.b32.xlu0 %v1725, 64
    %v1774 = vpop.permute.xlu0 %1773
    %v1776 = vsel %vm202, %v1774, 0
    %1778 = vmatprep.subr.bf16.mxu0 0
    %1779 = vmatpush1.bf16.msra.mxu0 %v1274
    %1780 = vmatprep.subr.bf16.mxu0 0
    %1781 = vmatpush1.bf16.msra.mxu0 %v1275
    %1782 = vmatprep.subr.bf16.mxu0 0
    %1783 = vmatpush1.bf16.msra.mxu0 0
    %1784 = vmatprep.subr.bf16.mxu0 0
    %1785 = vmatpush1.bf16.msra.mxu0 0
    %1786 = vmatprep.subr.bf16.mxu0 0
    %1787 = vmatpush1.bf16.msra.mxu0 0
    %1788 = vmatprep.subr.bf16.mxu0 0
    %1789 = vmatpush1.bf16.msra.mxu0 0
    %1790 = vmatprep.subr.bf16.mxu0 0
    %1791 = vmatpush1.bf16.msra.mxu0 0
    %1792 = vmatprep.subr.bf16.mxu0 0
    %1793 = vmatpush1.bf16.msra.mxu0 0
    %1794 = vmatprep.subr.bf16.mxu0 0
    %1795 = vmatpush1.bf16.msra.mxu0 0
    %1796 = vmatprep.subr.bf16.mxu0 0
    %1797 = vmatpush1.bf16.msra.mxu0 0
    %1798 = vmatprep.subr.bf16.mxu0 0
    %1799 = vmatpush1.bf16.msra.mxu0 0
    %1800 = vmatprep.subr.bf16.mxu0 0
    %1801 = vmatpush1.bf16.msra.mxu0 0
    %1802 = vmatprep.subr.bf16.mxu0 0
    %1803 = vmatpush1.bf16.msra.mxu0 0
    %1804 = vmatprep.subr.bf16.mxu0 0
    %1805 = vmatpush1.bf16.msra.mxu0 0
    %1806 = vmatprep.subr.bf16.mxu0 0
    %1807 = vmatpush1.bf16.msra.mxu0 0
    %1808 = vmatprep.subr.bf16.mxu0 0
    %1809 = vmatpush1.bf16.msra.mxu0 0
    %1810 = vmatprep.mubr.bf16.mxu0 0
    %1811 = vmatmul.mubr.bf16.gmra.mrb[0].mxu0 %v1776
    %v1812 = vpop.f32.mrb[0].mxu0
    %v1813 = vadd.f32 0.0, %v1812
    %v1814 = vpop.f32.mrb[0].mxu0
    %v1815 = vpop.f32.mrb[0].mxu0
    %v1816 = vpop.f32.mrb[0].mxu0
    %1817 = vdwg.mxu0
    %v1818 = vadd.f32 %v1772, %v1813
    %v1819 = vsub.f32 0.0, %v1818
    %v1820 = vmul.f32 %v1819, 1.442695
    %v1821 = vpow.pop %v1820
    %v1822 = vadd.f32 %v1821, 1.0
    %v1823 = vrcp.pop %v1822
    %v1824 = vtanh.pop %v1818
    %v1825 = vmul.f32 %v1823, %v1718
    %1827 = vrot.lane.b32.xlu0 %v1824, 32
    %v1828 = vpop.permute.xlu0 %1827
    %v1830 = vmul.f32 %v1823, %v1828
    %1832 = vrot.lane.b32.xlu0 %v1830, 32
    %v1833 = vpop.permute.xlu0 %1832
    %v1835 = vadd.f32 %v1825, %v1833
    %v1836 = vtanh.pop %v1835
    %1838 = vrot.lane.b32.xlu0 %v1836, 32
    %v1839 = vpop.permute.xlu0 %1838
    %v1841 = vmul.f32 %v1823, %v1839
    %v1842 = vpack.c.bf16 %v1841, %v1841
    %1844 = vrot.lane.b32.xlu0 %v1842, 48
    %v1845 = vpop.permute.xlu0 %1844
    %v1847 = vsel %vm309, %v1845, 0
    %1849 = vmatprep.subr.bf16.mxu0 0
    %1850 = vmatpush1.bf16.msra.mxu0 %v1353
    %1851 = vmatprep.subr.bf16.mxu0 0
    %1852 = vmatpush1.bf16.msra.mxu0 0
    %1853 = vmatprep.subr.bf16.mxu0 0
    %1854 = vmatpush1.bf16.msra.mxu0 0
    %1855 = vmatprep.subr.bf16.mxu0 0
    %1856 = vmatpush1.bf16.msra.mxu0 0
    %1857 = vmatprep.subr.bf16.mxu0 0
    %1858 = vmatpush1.bf16.msra.mxu0 0
    %1859 = vmatprep.subr.bf16.mxu0 0
    %1860 = vmatpush1.bf16.msra.mxu0 0
    %1861 = vmatprep.subr.bf16.mxu0 0
    %1862 = vmatpush1.bf16.msra.mxu0 0
    %1863 = vmatprep.subr.bf16.mxu0 0
    %1864 = vmatpush1.bf16.msra.mxu0 0
    %1865 = vmatprep.subr.bf16.mxu0 0
    %1866 = vmatpush1.bf16.msra.mxu0 0
    %1867 = vmatprep.subr.bf16.mxu0 0
    %1868 = vmatpush1.bf16.msra.mxu0 0
    %1869 = vmatprep.subr.bf16.mxu0 0
    %1870 = vmatpush1.bf16.msra.mxu0 0
    %1871 = vmatprep.subr.bf16.mxu0 0
    %1872 = vmatpush1.bf16.msra.mxu0 0
    %1873 = vmatprep.subr.bf16.mxu0 0
    %1874 = vmatpush1.bf16.msra.mxu0 0
    %1875 = vmatprep.subr.bf16.mxu0 0
    %1876 = vmatpush1.bf16.msra.mxu0 0
    %1877 = vmatprep.subr.bf16.mxu0 0
    %1878 = vmatpush1.bf16.msra.mxu0 0
    %1879 = vmatprep.subr.bf16.mxu0 0
    %1880 = vmatpush1.bf16.msra.mxu0 0
    %1881 = vmatprep.mubr.bf16.mxu0 0
    %1882 = vmatmul.mubr.bf16.gmra.mrb[0].mxu0 %v1847
    %v1883 = vpop.f32.mrb[0].mxu0
    %v1884 = vadd.f32 0.0, %v1883
    %v1885 = vpop.f32.mrb[0].mxu0
    %v1886 = vpop.f32.mrb[0].mxu0
    %v1887 = vpop.f32.mrb[0].mxu0
    %1888 = vdwg.mxu0
    %v1889 = vsel %vm1254, %v1528, %v1524
    %1890 = vrot.lane.b32.xlu0 %v1842, 64
    %v1891 = vpop.permute.xlu0 %1890
    %v1893 = vsel %vm202, %v1891, 0
    %1895 = vmatprep.subr.bf16.mxu0 0
    %1896 = vmatpush1.bf16.msra.mxu0 %v1274
    %1897 = vmatprep.subr.bf16.mxu0 0
    %1898 = vmatpush1.bf16.msra.mxu0 %v1275
    %1899 = vmatprep.subr.bf16.mxu0 0
    %1900 = vmatpush1.bf16.msra.mxu0 0
    %1901 = vmatprep.subr.bf16.mxu0 0
    %1902 = vmatpush1.bf16.msra.mxu0 0
    %1903 = vmatprep.subr.bf16.mxu0 0
    %1904 = vmatpush1.bf16.msra.mxu0 0
    %1905 = vmatprep.subr.bf16.mxu0 0
    %1906 = vmatpush1.bf16.msra.mxu0 0
    %1907 = vmatprep.subr.bf16.mxu0 0
    %1908 = vmatpush1.bf16.msra.mxu0 0
    %1909 = vmatprep.subr.bf16.mxu0 0
    %1910 = vmatpush1.bf16.msra.mxu0 0
    %1911 = vmatprep.subr.bf16.mxu0 0
    %1912 = vmatpush1.bf16.msra.mxu0 0
    %1913 = vmatprep.subr.bf16.mxu0 0
    %1914 = vmatpush1.bf16.msra.mxu0 0
    %1915 = vmatprep.subr.bf16.mxu0 0
    %1916 = vmatpush1.bf16.msra.mxu0 0
    %1917 = vmatprep.subr.bf16.mxu0 0
    %1918 = vmatpush1.bf16.msra.mxu0 0
    %1919 = vmatprep.subr.bf16.mxu0 0
    %1920 = vmatpush1.bf16.msra.mxu0 0
    %1921 = vmatprep.subr.bf16.mxu0 0
    %1922 = vmatpush1.bf16.msra.mxu0 0
    %1923 = vmatprep.subr.bf16.mxu0 0
    %1924 = vmatpush1.bf16.msra.mxu0 0
    %1925 = vmatprep.subr.bf16.mxu0 0
    %1926 = vmatpush1.bf16.msra.mxu0 0
    %1927 = vmatprep.mubr.bf16.mxu0 0
    %1928 = vmatmul.mubr.bf16.gmra.mrb[0].mxu0 %v1893
    %v1929 = vpop.f32.mrb[0].mxu0
    %v1930 = vadd.f32 0.0, %v1929
    %v1931 = vpop.f32.mrb[0].mxu0
    %v1932 = vpop.f32.mrb[0].mxu0
    %v1933 = vpop.f32.mrb[0].mxu0
    %1934 = vdwg.mxu0
    %v1935 = vadd.f32 %v1889, %v1930
    %v1936 = vsub.f32 0.0, %v1935
    %v1937 = vmul.f32 %v1936, 1.442695
    %v1938 = vpow.pop %v1937
    %v1939 = vadd.f32 %v1938, 1.0
    %v1940 = vrcp.pop %v1939
    %v1941 = vtanh.pop %v1935
    %v1942 = vmul.f32 %v1940, %v1835
    %1944 = vrot.lane.b32.xlu0 %v1941, 32
    %v1945 = vpop.permute.xlu0 %1944
    %v1947 = vmul.f32 %v1940, %v1945
    %1949 = vrot.lane.b32.xlu0 %v1947, 32
    %v1950 = vpop.permute.xlu0 %1949
    %v1952 = vadd.f32 %v1942, %v1950
    %v1953 = vtanh.pop %v1952
    %1955 = vrot.lane.b32.xlu0 %v1953, 32
    %v1956 = vpop.permute.xlu0 %1955
    %v1958 = vmul.f32 %v1940, %v1956
    %v1959 = vpack.c.bf16 %v1958, %v1958
    %1961 = vrot.lane.b32.xlu0 %v1959, 48
    %v1962 = vpop.permute.xlu0 %1961
    %v1964 = vsel %vm309, %v1962, 0
    %1966 = vmatprep.subr.bf16.mxu0 0
    %1967 = vmatpush1.bf16.msra.mxu0 %v1353
    %1968 = vmatprep.subr.bf16.mxu0 0
    %1969 = vmatpush1.bf16.msra.mxu0 0
    %1970 = vmatprep.subr.bf16.mxu0 0
    %1971 = vmatpush1.bf16.msra.mxu0 0
    %1972 = vmatprep.subr.bf16.mxu0 0
    %1973 = vmatpush1.bf16.msra.mxu0 0
    %1974 = vmatprep.subr.bf16.mxu0 0
    %1975 = vmatpush1.bf16.msra.mxu0 0
    %1976 = vmatprep.subr.bf16.mxu0 0
    %1977 = vmatpush1.bf16.msra.mxu0 0
    %1978 = vmatprep.subr.bf16.mxu0 0
    %1979 = vmatpush1.bf16.msra.mxu0 0
    %1980 = vmatprep.subr.bf16.mxu0 0
    %1981 = vmatpush1.bf16.msra.mxu0 0
    %1982 = vmatprep.subr.bf16.mxu0 0
    %1983 = vmatpush1.bf16.msra.mxu0 0
    %1984 = vmatprep.subr.bf16.mxu0 0
    %1985 = vmatpush1.bf16.msra.mxu0 0
    %1986 = vmatprep.subr.bf16.mxu0 0
    %1987 = vmatpush1.bf16.msra.mxu0 0
    %1988 = vmatprep.subr.bf16.mxu0 0
    %1989 = vmatpush1.bf16.msra.mxu0 0
    %1990 = vmatprep.subr.bf16.mxu0 0
    %1991 = vmatpush1.bf16.msra.mxu0 0
    %1992 = vmatprep.subr.bf16.mxu0 0
    %1993 = vmatpush1.bf16.msra.mxu0 0
    %1994 = vmatprep.subr.bf16.mxu0 0
    %1995 = vmatpush1.bf16.msra.mxu0 0
    %1996 = vmatprep.subr.bf16.mxu0 0
    %1997 = vmatpush1.bf16.msra.mxu0 0
    %1998 = vmatprep.mubr.bf16.mxu0 0
    %1999 = vmatmul.mubr.bf16.gmra.mrb[0].mxu0 %v1964
    %v2000 = vpop.f32.mrb[0].mxu0
    %v2001 = vadd.f32 0.0, %v2000
    %v2002 = vpop.f32.mrb[0].mxu0
    %v2003 = vpop.f32.mrb[0].mxu0
    %v2004 = vpop.f32.mrb[0].mxu0
    %2005 = vdwg.mxu0
    %v2006 = vsel %vm1254, %v1403, %v1399
    %2007 = vrot.lane.b32.xlu0 %v1959, 64
    %v2008 = vpop.permute.xlu0 %2007
    %v2010 = vsel %vm202, %v2008, 0
    %2012 = vmatprep.subr.bf16.mxu0 0
    %2013 = vmatpush1.bf16.msra.mxu0 %v1274
    %2014 = vmatprep.subr.bf16.mxu0 0
    %2015 = vmatpush1.bf16.msra.mxu0 %v1275
    %2016 = vmatprep.subr.bf16.mxu0 0
    %2017 = vmatpush1.bf16.msra.mxu0 0
    %2018 = vmatprep.subr.bf16.mxu0 0
    %2019 = vmatpush1.bf16.msra.mxu0 0
    %2020 = vmatprep.subr.bf16.mxu0 0
    %2021 = vmatpush1.bf16.msra.mxu0 0
    %2022 = vmatprep.subr.bf16.mxu0 0
    %2023 = vmatpush1.bf16.msra.mxu0 0
    %2024 = vmatprep.subr.bf16.mxu0 0
    %2025 = vmatpush1.bf16.msra.mxu0 0
    %2026 = vmatprep.subr.bf16.mxu0 0
    %2027 = vmatpush1.bf16.msra.mxu0 0
    %2028 = vmatprep.subr.bf16.mxu0 0
    %2029 = vmatpush1.bf16.msra.mxu0 0
    %2030 = vmatprep.subr.bf16.mxu0 0
    %2031 = vmatpush1.bf16.msra.mxu0 0
    %2032 = vmatprep.subr.bf16.mxu0 0
    %2033 = vmatpush1.bf16.msra.mxu0 0
    %2034 = vmatprep.subr.bf16.mxu0 0
    %2035 = vmatpush1.bf16.msra.mxu0 0
    %2036 = vmatprep.subr.bf16.mxu0 0
    %2037 = vmatpush1.bf16.msra.mxu0 0
    %2038 = vmatprep.subr.bf16.mxu0 0
    %2039 = vmatpush1.bf16.msra.mxu0 0
    %2040 = vmatprep.subr.bf16.mxu0 0
    %2041 = vmatpush1.bf16.msra.mxu0 0
    %2042 = vmatprep.subr.bf16.mxu0 0
    %2043 = vmatpush1.bf16.msra.mxu0 0
    %2044 = vmatprep.mubr.bf16.mxu0 0
    %2045 = vmatmul.mubr.bf16.gmra.mrb[0].mxu0 %v2010
    %v2046 = vpop.f32.mrb[0].mxu0
    %v2047 = vadd.f32 0.0, %v2046
    %v2048 = vpop.f32.mrb[0].mxu0
    %v2049 = vpop.f32.mrb[0].mxu0
    %v2050 = vpop.f32.mrb[0].mxu0
    %2051 = vdwg.mxu0
    %v2052 = vadd.f32 %v2006, %v2047
    %v2053 = vsub.f32 0.0, %v2052
    %v2054 = vmul.f32 %v2053, 1.442695
    %v2055 = vpow.pop %v2054
    %v2056 = vadd.f32 %v2055, 1.0
    %v2057 = vrcp.pop %v2056
    %v2058 = vtanh.pop %v2052
    %v2059 = vmul.f32 %v2057, %v1952
    %2061 = vrot.lane.b32.xlu0 %v2058, 32
    %v2062 = vpop.permute.xlu0 %2061
    %v2064 = vmul.f32 %v2057, %v2062
    %2066 = vrot.lane.b32.xlu0 %v2064, 32
    %v2067 = vpop.permute.xlu0 %2066
    %v2069 = vadd.f32 %v2059, %v2067
    %v2070 = vtanh.pop %v2069
    %2072 = vrot.lane.b32.xlu0 %v2070, 32
    %v2073 = vpop.permute.xlu0 %2072
    %v2075 = vmul.f32 %v2057, %v2073
    %v2076 = vpack.c.bf16 %v2075, %v2075
    %2078 = vrot.lane.b32.xlu0 %v2076, 48
    %v2079 = vpop.permute.xlu0 %2078
    %v2081 = vsel %vm309, %v2079, 0
    %2083 = vmatprep.subr.bf16.mxu0 0
    %2084 = vmatpush1.bf16.msra.mxu0 %v1353
    %2085 = vmatprep.subr.bf16.mxu0 0
    %2086 = vmatpush1.bf16.msra.mxu0 0
    %2087 = vmatprep.subr.bf16.mxu0 0
    %2088 = vmatpush1.bf16.msra.mxu0 0
    %2089 = vmatprep.subr.bf16.mxu0 0
    %2090 = vmatpush1.bf16.msra.mxu0 0
    %2091 = vmatprep.subr.bf16.mxu0 0
    %2092 = vmatpush1.bf16.msra.mxu0 0
    %2093 = vmatprep.subr.bf16.mxu0 0
    %2094 = vmatpush1.bf16.msra.mxu0 0
    %2095 = vmatprep.subr.bf16.mxu0 0
    %2096 = vmatpush1.bf16.msra.mxu0 0
    %2097 = vmatprep.subr.bf16.mxu0 0
    %2098 = vmatpush1.bf16.msra.mxu0 0
    %2099 = vmatprep.subr.bf16.mxu0 0
    %2100 = vmatpush1.bf16.msra.mxu0 0
    %2101 = vmatprep.subr.bf16.mxu0 0
    %2102 = vmatpush1.bf16.msra.mxu0 0
    %2103 = vmatprep.subr.bf16.mxu0 0
    %2104 = vmatpush1.bf16.msra.mxu0 0
    %2105 = vmatprep.subr.bf16.mxu0 0
    %2106 = vmatpush1.bf16.msra.mxu0 0
    %2107 = vmatprep.subr.bf16.mxu0 0
    %2108 = vmatpush1.bf16.msra.mxu0 0
    %2109 = vmatprep.subr.bf16.mxu0 0
    %2110 = vmatpush1.bf16.msra.mxu0 0
    %2111 = vmatprep.subr.bf16.mxu0 0
    %2112 = vmatpush1.bf16.msra.mxu0 0
    %2113 = vmatprep.subr.bf16.mxu0 0
    %2114 = vmatpush1.bf16.msra.mxu0 0
    %2115 = vmatprep.mubr.bf16.mxu0 0
    %2116 = vmatmul.mubr.bf16.gmra.mrb[0].mxu0 %v2081
    %v2117 = vpop.f32.mrb[0].mxu0
    %v2118 = vadd.f32 0.0, %v2117
    %v2119 = vpop.f32.mrb[0].mxu0
    %v2120 = vpop.f32.mrb[0].mxu0
    %v2121 = vpop.f32.mrb[0].mxu0
    %2122 = vdwg.mxu0
    %v2123 = vsel %vm1254, %v1263, %v1259
    %2124 = vrot.lane.b32.xlu0 %v2076, 64
    %v2125 = vpop.permute.xlu0 %2124
    %v2127 = vsel %vm202, %v2125, 0
    %2129 = vmatprep.subr.bf16.mxu0 0
    %2130 = vmatpush1.bf16.msra.mxu0 %v1274
    %2131 = vmatprep.subr.bf16.mxu0 0
    %2132 = vmatpush1.bf16.msra.mxu0 %v1275
    %2133 = vmatprep.subr.bf16.mxu0 0
    %2134 = vmatpush1.bf16.msra.mxu0 0
    %2135 = vmatprep.subr.bf16.mxu0 0
    %2136 = vmatpush1.bf16.msra.mxu0 0
    %2137 = vmatprep.subr.bf16.mxu0 0
    %2138 = vmatpush1.bf16.msra.mxu0 0
    %2139 = vmatprep.subr.bf16.mxu0 0
    %2140 = vmatpush1.bf16.msra.mxu0 0
    %2141 = vmatprep.subr.bf16.mxu0 0
    %2142 = vmatpush1.bf16.msra.mxu0 0
    %2143 = vmatprep.subr.bf16.mxu0 0
    %2144 = vmatpush1.bf16.msra.mxu0 0
    %2145 = vmatprep.subr.bf16.mxu0 0
    %2146 = vmatpush1.bf16.msra.mxu0 0
    %2147 = vmatprep.subr.bf16.mxu0 0
    %2148 = vmatpush1.bf16.msra.mxu0 0
    %2149 = vmatprep.subr.bf16.mxu0 0
    %2150 = vmatpush1.bf16.msra.mxu0 0
    %2151 = vmatprep.subr.bf16.mxu0 0
    %2152 = vmatpush1.bf16.msra.mxu0 0
    %2153 = vmatprep.subr.bf16.mxu0 0
    %2154 = vmatpush1.bf16.msra.mxu0 0
    %2155 = vmatprep.subr.bf16.mxu0 0
    %2156 = vmatpush1.bf16.msra.mxu0 0
    %2157 = vmatprep.subr.bf16.mxu0 0
    %2158 = vmatpush1.bf16.msra.mxu0 0
    %2159 = vmatprep.subr.bf16.mxu0 0
    %2160 = vmatpush1.bf16.msra.mxu0 0
    %2161 = vmatprep.mubr.bf16.mxu0 0
    %2162 = vmatmul.mubr.bf16.gmra.mrb[0].mxu0 %v2127
    %v2163 = vpop.f32.mrb[0].mxu0
    %v2164 = vadd.f32 0.0, %v2163
    %v2165 = vpop.f32.mrb[0].mxu0
    %v2166 = vpop.f32.mrb[0].mxu0
    %v2167 = vpop.f32.mrb[0].mxu0
    %2168 = vdwg.mxu0
    %v2169 = vadd.f32 %v2123, %v2164
    %v2170 = vsub.f32 0.0, %v2169
    %v2171 = vmul.f32 %v2170, 1.442695
    %v2172 = vpow.pop %v2171
    %v2173 = vadd.f32 %v2172, 1.0
    %v2174 = vrcp.pop %v2173
    %v2175 = vtanh.pop %v2169
    %v2176 = vmul.f32 %v2174, %v2069
    %2178 = vrot.lane.b32.xlu0 %v2175, 32
    %v2179 = vpop.permute.xlu0 %2178
    %v2181 = vmul.f32 %v2174, %v2179
    %2183 = vrot.lane.b32.xlu0 %v2181, 32
    %v2184 = vpop.permute.xlu0 %2183
    %v2186 = vadd.f32 %v2176, %v2184
    %v2187 = vtanh.pop %v2186
    %2189 = vrot.lane.b32.xlu0 %v2187, 32
    %v2190 = vpop.permute.xlu0 %2189
    %v2192 = vmul.f32 %v2174, %v2190
    %v2193 = vpack.c.bf16 %v2192, %v2192
    %2195 = vrot.lane.b32.xlu0 %v2193, 48
    %v2196 = vpop.permute.xlu0 %2195
    %v2198 = vsel %vm309, %v2196, 0
    %2200 = vmatprep.subr.bf16.mxu0 0
    %2201 = vmatpush1.bf16.msra.mxu0 %v1353
    %2202 = vmatprep.subr.bf16.mxu0 0
    %2203 = vmatpush1.bf16.msra.mxu0 0
    %2204 = vmatprep.subr.bf16.mxu0 0
    %2205 = vmatpush1.bf16.msra.mxu0 0
    %2206 = vmatprep.subr.bf16.mxu0 0
    %2207 = vmatpush1.bf16.msra.mxu0 0
    %2208 = vmatprep.subr.bf16.mxu0 0
    %2209 = vmatpush1.bf16.msra.mxu0 0
    %2210 = vmatprep.subr.bf16.mxu0 0
    %2211 = vmatpush1.bf16.msra.mxu0 0
    %2212 = vmatprep.subr.bf16.mxu0 0
    %2213 = vmatpush1.bf16.msra.mxu0 0
    %2214 = vmatprep.subr.bf16.mxu0 0
    %2215 = vmatpush1.bf16.msra.mxu0 0
    %2216 = vmatprep.subr.bf16.mxu0 0
    %2217 = vmatpush1.bf16.msra.mxu0 0
    %2218 = vmatprep.subr.bf16.mxu0 0
    %2219 = vmatpush1.bf16.msra.mxu0 0
    %2220 = vmatprep.subr.bf16.mxu0 0
    %2221 = vmatpush1.bf16.msra.mxu0 0
    %2222 = vmatprep.subr.bf16.mxu0 0
    %2223 = vmatpush1.bf16.msra.mxu0 0
    %2224 = vmatprep.subr.bf16.mxu0 0
    %2225 = vmatpush1.bf16.msra.mxu0 0
    %2226 = vmatprep.subr.bf16.mxu0 0
    %2227 = vmatpush1.bf16.msra.mxu0 0
    %2228 = vmatprep.subr.bf16.mxu0 0
    %2229 = vmatpush1.bf16.msra.mxu0 0
    %2230 = vmatprep.subr.bf16.mxu0 0
    %2231 = vmatpush1.bf16.msra.mxu0 0
    %2232 = vmatprep.mubr.bf16.mxu0 0
    %2233 = vmatmul.mubr.bf16.gmra.mrb[0].mxu0 %v2198
    %v2234 = vpop.f32.mrb[0].mxu0
    %v2235 = vadd.f32 0.0, %v2234
    %v2236 = vpop.f32.mrb[0].mxu0
    %v2237 = vpop.f32.mrb[0].mxu0
    %v2238 = vpop.f32.mrb[0].mxu0
    %2239 = vdwg.mxu0
    %v2242 = vunpack.c.l.b16 %v57
    %v2243 = vunpack.c.l.b16 %v58
    %v2244 = vpack.c.b16 %v2243, %v2242
    %v2246 = vsel %vm309, %v1407, 0
    %2248 = vmatprep.subr.bf16.mxu0 0
    %2249 = vmatpush1.bf16.msra.mxu0 %v2244
    %2250 = vmatprep.subr.bf16.mxu0 0
    %2251 = vmatpush1.bf16.msra.mxu0 0
    %2252 = vmatprep.subr.bf16.mxu0 0
    %2253 = vmatpush1.bf16.msra.mxu0 0
    %2254 = vmatprep.subr.bf16.mxu0 0
    %2255 = vmatpush1.bf16.msra.mxu0 0
    %2256 = vmatprep.subr.bf16.mxu0 0
    %2257 = vmatpush1.bf16.msra.mxu0 0
    %2258 = vmatprep.subr.bf16.mxu0 0
    %2259 = vmatpush1.bf16.msra.mxu0 0
    %2260 = vmatprep.subr.bf16.mxu0 0
    %2261 = vmatpush1.bf16.msra.mxu0 0
    %2262 = vmatprep.subr.bf16.mxu0 0
    %2263 = vmatpush1.bf16.msra.mxu0 0
    %2264 = vmatprep.subr.bf16.mxu0 0
    %2265 = vmatpush1.bf16.msra.mxu0 0
    %2266 = vmatprep.subr.bf16.mxu0 0
    %2267 = vmatpush1.bf16.msra.mxu0 0
    %2268 = vmatprep.subr.bf16.mxu0 0
    %2269 = vmatpush1.bf16.msra.mxu0 0
    %2270 = vmatprep.subr.bf16.mxu0 0
    %2271 = vmatpush1.bf16.msra.mxu0 0
    %2272 = vmatprep.subr.bf16.mxu0 0
    %2273 = vmatpush1.bf16.msra.mxu0 0
    %2274 = vmatprep.subr.bf16.mxu0 0
    %2275 = vmatpush1.bf16.msra.mxu0 0
    %2276 = vmatprep.subr.bf16.mxu0 0
    %2277 = vmatpush1.bf16.msra.mxu0 0
    %2278 = vmatprep.subr.bf16.mxu0 0
    %2279 = vmatpush1.bf16.msra.mxu0 0
    %2280 = vmatprep.mubr.bf16.mxu0 0
    %2281 = vmatmul.mubr.bf16.gmra.mrb[0].mxu0 %v2246
    %v2282 = vpop.f32.mrb[0].mxu0
    %v2283 = vadd.f32 %v2235, %v2282
    %v2284 = vpop.f32.mrb[0].mxu0
    %v2285 = vpop.f32.mrb[0].mxu0
    %v2286 = vpop.f32.mrb[0].mxu0
    %2287 = vdwg.mxu0
    %v2288 = vlaneseq
    %v2289 = vshrl.u32 %v2288, 7
    %v2290 = vsub.s32 0, %v2289
    %v2291 = vrot.slane %v33, %v2290
    %v2292 = vadd.f32 %v2283, %v2291
    %v2293 = vsel %vm309, %v1532, 0
    %2295 = vmatprep.subr.bf16.mxu0 0
    %2296 = vmatpush1.bf16.msra.mxu0 %v2244
    %2297 = vmatprep.subr.bf16.mxu0 0
    %2298 = vmatpush1.bf16.msra.mxu0 0
    %2299 = vmatprep.subr.bf16.mxu0 0
    %2300 = vmatpush1.bf16.msra.mxu0 0
    %2301 = vmatprep.subr.bf16.mxu0 0
    %2302 = vmatpush1.bf16.msra.mxu0 0
    %2303 = vmatprep.subr.bf16.mxu0 0
    %2304 = vmatpush1.bf16.msra.mxu0 0
    %2305 = vmatprep.subr.bf16.mxu0 0
    %2306 = vmatpush1.bf16.msra.mxu0 0
    %2307 = vmatprep.subr.bf16.mxu0 0
    %2308 = vmatpush1.bf16.msra.mxu0 0
    %2309 = vmatprep.subr.bf16.mxu0 0
    %2310 = vmatpush1.bf16.msra.mxu0 0
    %2311 = vmatprep.subr.bf16.mxu0 0
    %2312 = vmatpush1.bf16.msra.mxu0 0
    %2313 = vmatprep.subr.bf16.mxu0 0
    %2314 = vmatpush1.bf16.msra.mxu0 0
    %2315 = vmatprep.subr.bf16.mxu0 0
    %2316 = vmatpush1.bf16.msra.mxu0 0
    %2317 = vmatprep.subr.bf16.mxu0 0
    %2318 = vmatpush1.bf16.msra.mxu0 0
    %2319 = vmatprep.subr.bf16.mxu0 0
    %2320 = vmatpush1.bf16.msra.mxu0 0
    %2321 = vmatprep.subr.bf16.mxu0 0
    %2322 = vmatpush1.bf16.msra.mxu0 0
    %2323 = vmatprep.subr.bf16.mxu0 0
    %2324 = vmatpush1.bf16.msra.mxu0 0
    %2325 = vmatprep.subr.bf16.mxu0 0
    %2326 = vmatpush1.bf16.msra.mxu0 0
    %2327 = vmatprep.mubr.bf16.mxu0 0
    %2328 = vmatmul.mubr.bf16.gmra.mrb[0].mxu0 %v2293
    %v2329 = vpop.f32.mrb[0].mxu0
    %v2330 = vadd.f32 %v2118, %v2329
    %v2331 = vpop.f32.mrb[0].mxu0
    %v2332 = vpop.f32.mrb[0].mxu0
    %v2333 = vpop.f32.mrb[0].mxu0
    %2334 = vdwg.mxu0
    %v2335 = vadd.f32 %v2330, %v2291
    %v2336 = vsel %vm309, %v1657, 0
    %2338 = vmatprep.subr.bf16.mxu0 0
    %2339 = vmatpush1.bf16.msra.mxu0 %v2244
    %2340 = vmatprep.subr.bf16.mxu0 0
    %2341 = vmatpush1.bf16.msra.mxu0 0
    %2342 = vmatprep.subr.bf16.mxu0 0
    %2343 = vmatpush1.bf16.msra.mxu0 0
    %2344 = vmatprep.subr.bf16.mxu0 0
    %2345 = vmatpush1.bf16.msra.mxu0 0
    %2346 = vmatprep.subr.bf16.mxu0 0
    %2347 = vmatpush1.bf16.msra.mxu0 0
    %2348 = vmatprep.subr.bf16.mxu0 0
    %2349 = vmatpush1.bf16.msra.mxu0 0
    %2350 = vmatprep.subr.bf16.mxu0 0
    %2351 = vmatpush1.bf16.msra.mxu0 0
    %2352 = vmatprep.subr.bf16.mxu0 0
    %2353 = vmatpush1.bf16.msra.mxu0 0
    %2354 = vmatprep.subr.bf16.mxu0 0
    %2355 = vmatpush1.bf16.msra.mxu0 0
    %2356 = vmatprep.subr.bf16.mxu0 0
    %2357 = vmatpush1.bf16.msra.mxu0 0
    %2358 = vmatprep.subr.bf16.mxu0 0
    %2359 = vmatpush1.bf16.msra.mxu0 0
    %2360 = vmatprep.subr.bf16.mxu0 0
    %2361 = vmatpush1.bf16.msra.mxu0 0
    %2362 = vmatprep.subr.bf16.mxu0 0
    %2363 = vmatpush1.bf16.msra.mxu0 0
    %2364 = vmatprep.subr.bf16.mxu0 0
    %2365 = vmatpush1.bf16.msra.mxu0 0
    %2366 = vmatprep.subr.bf16.mxu0 0
    %2367 = vmatpush1.bf16.msra.mxu0 0
    %2368 = vmatprep.subr.bf16.mxu0 0
    %2369 = vmatpush1.bf16.msra.mxu0 0
    %2370 = vmatprep.mubr.bf16.mxu0 0
    %2371 = vmatmul.mubr.bf16.gmra.mrb[0].mxu0 %v2336
    %v2372 = vpop.f32.mrb[0].mxu0
    %v2373 = vadd.f32 %v2001, %v2372
    %v2374 = vpop.f32.mrb[0].mxu0
    %v2375 = vpop.f32.mrb[0].mxu0
    %v2376 = vpop.f32.mrb[0].mxu0
    %2377 = vdwg.mxu0
    %v2378 = vadd.f32 %v2373, %v2291
    %v2379 = vsel %vm309, %v1774, 0
    %2381 = vmatprep.subr.bf16.mxu0 0
    %2382 = vmatpush1.bf16.msra.mxu0 %v2244
    %2383 = vmatprep.subr.bf16.mxu0 0
    %2384 = vmatpush1.bf16.msra.mxu0 0
    %2385 = vmatprep.subr.bf16.mxu0 0
    %2386 = vmatpush1.bf16.msra.mxu0 0
    %2387 = vmatprep.subr.bf16.mxu0 0
    %2388 = vmatpush1.bf16.msra.mxu0 0
    %2389 = vmatprep.subr.bf16.mxu0 0
    %2390 = vmatpush1.bf16.msra.mxu0 0
    %2391 = vmatprep.subr.bf16.mxu0 0
    %2392 = vmatpush1.bf16.msra.mxu0 0
    %2393 = vmatprep.subr.bf16.mxu0 0
    %2394 = vmatpush1.bf16.msra.mxu0 0
    %2395 = vmatprep.subr.bf16.mxu0 0
    %2396 = vmatpush1.bf16.msra.mxu0 0
    %2397 = vmatprep.subr.bf16.mxu0 0
    %2398 = vmatpush1.bf16.msra.mxu0 0
    %2399 = vmatprep.subr.bf16.mxu0 0
    %2400 = vmatpush1.bf16.msra.mxu0 0
    %2401 = vmatprep.subr.bf16.mxu0 0
    %2402 = vmatpush1.bf16.msra.mxu0 0
    %2403 = vmatprep.subr.bf16.mxu0 0
    %2404 = vmatpush1.bf16.msra.mxu0 0
    %2405 = vmatprep.subr.bf16.mxu0 0
    %2406 = vmatpush1.bf16.msra.mxu0 0
    %2407 = vmatprep.subr.bf16.mxu0 0
    %2408 = vmatpush1.bf16.msra.mxu0 0
    %2409 = vmatprep.subr.bf16.mxu0 0
    %2410 = vmatpush1.bf16.msra.mxu0 0
    %2411 = vmatprep.subr.bf16.mxu0 0
    %2412 = vmatpush1.bf16.msra.mxu0 0
    %2413 = vmatprep.mubr.bf16.mxu0 0
    %2414 = vmatmul.mubr.bf16.gmra.mrb[0].mxu0 %v2379
    %v2415 = vpop.f32.mrb[0].mxu0
    %v2416 = vadd.f32 %v1884, %v2415
    %v2417 = vpop.f32.mrb[0].mxu0
    %v2418 = vpop.f32.mrb[0].mxu0
    %v2419 = vpop.f32.mrb[0].mxu0
    %2420 = vdwg.mxu0
    %v2421 = vadd.f32 %v2416, %v2291
    %v2422 = vsel %vm309, %v1891, 0
    %2424 = vmatprep.subr.bf16.mxu0 0
    %2425 = vmatpush1.bf16.msra.mxu0 %v2244
    %2426 = vmatprep.subr.bf16.mxu0 0
    %2427 = vmatpush1.bf16.msra.mxu0 0
    %2428 = vmatprep.subr.bf16.mxu0 0
    %2429 = vmatpush1.bf16.msra.mxu0 0
    %2430 = vmatprep.subr.bf16.mxu0 0
    %2431 = vmatpush1.bf16.msra.mxu0 0
    %2432 = vmatprep.subr.bf16.mxu0 0
    %2433 = vmatpush1.bf16.msra.mxu0 0
    %2434 = vmatprep.subr.bf16.mxu0 0
    %2435 = vmatpush1.bf16.msra.mxu0 0
    %2436 = vmatprep.subr.bf16.mxu0 0
    %2437 = vmatpush1.bf16.msra.mxu0 0
    %2438 = vmatprep.subr.bf16.mxu0 0
    %2439 = vmatpush1.bf16.msra.mxu0 0
    %2440 = vmatprep.subr.bf16.mxu0 0
    %2441 = vmatpush1.bf16.msra.mxu0 0
    %2442 = vmatprep.subr.bf16.mxu0 0
    %2443 = vmatpush1.bf16.msra.mxu0 0
    %2444 = vmatprep.subr.bf16.mxu0 0
    %2445 = vmatpush1.bf16.msra.mxu0 0
    %2446 = vmatprep.subr.bf16.mxu0 0
    %2447 = vmatpush1.bf16.msra.mxu0 0
    %2448 = vmatprep.subr.bf16.mxu0 0
    %2449 = vmatpush1.bf16.msra.mxu0 0
    %2450 = vmatprep.subr.bf16.mxu0 0
    %2451 = vmatpush1.bf16.msra.mxu0 0
    %2452 = vmatprep.subr.bf16.mxu0 0
    %2453 = vmatpush1.bf16.msra.mxu0 0
    %2454 = vmatprep.subr.bf16.mxu0 0
    %2455 = vmatpush1.bf16.msra.mxu0 0
    %2456 = vmatprep.mubr.bf16.mxu0 0
    %2457 = vmatmul.mubr.bf16.gmra.mrb[0].mxu0 %v2422
    %v2458 = vpop.f32.mrb[0].mxu0
    %v2459 = vadd.f32 %v1767, %v2458
    %v2460 = vpop.f32.mrb[0].mxu0
    %v2461 = vpop.f32.mrb[0].mxu0
    %v2462 = vpop.f32.mrb[0].mxu0
    %2463 = vdwg.mxu0
    %v2464 = vadd.f32 %v2459, %v2291
    %v2465 = vsel %vm309, %v2008, 0
    %2467 = vmatprep.subr.bf16.mxu0 0
    %2468 = vmatpush1.bf16.msra.mxu0 %v2244
    %2469 = vmatprep.subr.bf16.mxu0 0
    %2470 = vmatpush1.bf16.msra.mxu0 0
    %2471 = vmatprep.subr.bf16.mxu0 0
    %2472 = vmatpush1.bf16.msra.mxu0 0
    %2473 = vmatprep.subr.bf16.mxu0 0
    %2474 = vmatpush1.bf16.msra.mxu0 0
    %2475 = vmatprep.subr.bf16.mxu0 0
    %2476 = vmatpush1.bf16.msra.mxu0 0
    %2477 = vmatprep.subr.bf16.mxu0 0
    %2478 = vmatpush1.bf16.msra.mxu0 0
    %2479 = vmatprep.subr.bf16.mxu0 0
    %2480 = vmatpush1.bf16.msra.mxu0 0
    %2481 = vmatprep.subr.bf16.mxu0 0
    %2482 = vmatpush1.bf16.msra.mxu0 0
    %2483 = vmatprep.subr.bf16.mxu0 0
    %2484 = vmatpush1.bf16.msra.mxu0 0
    %2485 = vmatprep.subr.bf16.mxu0 0
    %2486 = vmatpush1.bf16.msra.mxu0 0
    %2487 = vmatprep.subr.bf16.mxu0 0
    %2488 = vmatpush1.bf16.msra.mxu0 0
    %2489 = vmatprep.subr.bf16.mxu0 0
    %2490 = vmatpush1.bf16.msra.mxu0 0
    %2491 = vmatprep.subr.bf16.mxu0 0
    %2492 = vmatpush1.bf16.msra.mxu0 0
    %2493 = vmatprep.subr.bf16.mxu0 0
    %2494 = vmatpush1.bf16.msra.mxu0 0
    %2495 = vmatprep.subr.bf16.mxu0 0
    %2496 = vmatpush1.bf16.msra.mxu0 0
    %2497 = vmatprep.subr.bf16.mxu0 0
    %2498 = vmatpush1.bf16.msra.mxu0 0
    %2499 = vmatprep.mubr.bf16.mxu0 0
    %2500 = vmatmul.mubr.bf16.gmra.mrb[0].mxu0 %v2465
    %v2501 = vpop.f32.mrb[0].mxu0
    %v2502 = vadd.f32 %v1642, %v2501
    %v2503 = vpop.f32.mrb[0].mxu0
    %v2504 = vpop.f32.mrb[0].mxu0
    %v2505 = vpop.f32.mrb[0].mxu0
    %2506 = vdwg.mxu0
    %v2507 = vadd.f32 %v2502, %v2291
    %v2508 = vsel %vm309, %v2125, 0
    %2510 = vmatprep.subr.bf16.mxu0 0
    %2511 = vmatpush1.bf16.msra.mxu0 %v2244
    %2512 = vmatprep.subr.bf16.mxu0 0
    %2513 = vmatpush1.bf16.msra.mxu0 0
    %2514 = vmatprep.subr.bf16.mxu0 0
    %2515 = vmatpush1.bf16.msra.mxu0 0
    %2516 = vmatprep.subr.bf16.mxu0 0
    %2517 = vmatpush1.bf16.msra.mxu0 0
    %2518 = vmatprep.subr.bf16.mxu0 0
    %2519 = vmatpush1.bf16.msra.mxu0 0
    %2520 = vmatprep.subr.bf16.mxu0 0
    %2521 = vmatpush1.bf16.msra.mxu0 0
    %2522 = vmatprep.subr.bf16.mxu0 0
    %2523 = vmatpush1.bf16.msra.mxu0 0
    %2524 = vmatprep.subr.bf16.mxu0 0
    %2525 = vmatpush1.bf16.msra.mxu0 0
    %2526 = vmatprep.subr.bf16.mxu0 0
    %2527 = vmatpush1.bf16.msra.mxu0 0
    %2528 = vmatprep.subr.bf16.mxu0 0
    %2529 = vmatpush1.bf16.msra.mxu0 0
    %2530 = vmatprep.subr.bf16.mxu0 0
    %2531 = vmatpush1.bf16.msra.mxu0 0
    %2532 = vmatprep.subr.bf16.mxu0 0
    %2533 = vmatpush1.bf16.msra.mxu0 0
    %2534 = vmatprep.subr.bf16.mxu0 0
    %2535 = vmatpush1.bf16.msra.mxu0 0
    %2536 = vmatprep.subr.bf16.mxu0 0
    %2537 = vmatpush1.bf16.msra.mxu0 0
    %2538 = vmatprep.subr.bf16.mxu0 0
    %2539 = vmatpush1.bf16.msra.mxu0 0
    %2540 = vmatprep.subr.bf16.mxu0 0
    %2541 = vmatpush1.bf16.msra.mxu0 0
    %2542 = vmatprep.mubr.bf16.mxu0 0
    %2543 = vmatmul.mubr.bf16.gmra.mrb[0].mxu0 %v2508
    %v2544 = vpop.f32.mrb[0].mxu0
    %v2545 = vadd.f32 %v1517, %v2544
    %v2546 = vpop.f32.mrb[0].mxu0
    %v2547 = vpop.f32.mrb[0].mxu0
    %v2548 = vpop.f32.mrb[0].mxu0
    %2549 = vdwg.mxu0
    %v2550 = vadd.f32 %v2545, %v2291
    %2551 = vrot.lane.b32.xlu0 %v2193, 64
    %v2552 = vpop.permute.xlu0 %2551
    %v2554 = vsel %vm309, %v2552, 0
    %2556 = vmatprep.subr.bf16.mxu0 0
    %2557 = vmatpush1.bf16.msra.mxu0 %v2244
    %2558 = vmatprep.subr.bf16.mxu0 0
    %2559 = vmatpush1.bf16.msra.mxu0 0
    %2560 = vmatprep.subr.bf16.mxu0 0
    %2561 = vmatpush1.bf16.msra.mxu0 0
    %2562 = vmatprep.subr.bf16.mxu0 0
    %2563 = vmatpush1.bf16.msra.mxu0 0
    %2564 = vmatprep.subr.bf16.mxu0 0
    %2565 = vmatpush1.bf16.msra.mxu0 0
    %2566 = vmatprep.subr.bf16.mxu0 0
    %2567 = vmatpush1.bf16.msra.mxu0 0
    %2568 = vmatprep.subr.bf16.mxu0 0
    %2569 = vmatpush1.bf16.msra.mxu0 0
    %2570 = vmatprep.subr.bf16.mxu0 0
    %2571 = vmatpush1.bf16.msra.mxu0 0
    %2572 = vmatprep.subr.bf16.mxu0 0
    %2573 = vmatpush1.bf16.msra.mxu0 0
    %2574 = vmatprep.subr.bf16.mxu0 0
    %2575 = vmatpush1.bf16.msra.mxu0 0
    %2576 = vmatprep.subr.bf16.mxu0 0
    %2577 = vmatpush1.bf16.msra.mxu0 0
    %2578 = vmatprep.subr.bf16.mxu0 0
    %2579 = vmatpush1.bf16.msra.mxu0 0
    %2580 = vmatprep.subr.bf16.mxu0 0
    %2581 = vmatpush1.bf16.msra.mxu0 0
    %2582 = vmatprep.subr.bf16.mxu0 0
    %2583 = vmatpush1.bf16.msra.mxu0 0
    %2584 = vmatprep.subr.bf16.mxu0 0
    %2585 = vmatpush1.bf16.msra.mxu0 0
    %2586 = vmatprep.subr.bf16.mxu0 0
    %2587 = vmatpush1.bf16.msra.mxu0 0
    %2588 = vmatprep.mubr.bf16.mxu0 0
    %2589 = vmatmul.mubr.bf16.gmra.mrb[0].mxu0 %v2554
    %v2590 = vpop.f32.mrb[0].mxu0
    %v2591 = vadd.f32 %v1393, %v2590
    %v2592 = vpop.f32.mrb[0].mxu0
    %v2593 = vpop.f32.mrb[0].mxu0
    %v2594 = vpop.f32.mrb[0].mxu0
    %2595 = vdwg.mxu0
    %v2596 = vadd.f32 %v2591, %v2291
    %v2597 = vlaneseq
    %v2598 = vshrl.u32 %v2597, 7
    %v2599 = vsub.s32 0, %v2598
    %v2600 = vrot.slane %v34, %v2599
    %v2601 = vadd.f32 %v2600, %v2292
    %2603 = vset.pattern.permute.xlu0 0
    %2604 = vperm.xlu0 %2603, %v2601
    %v2605 = vpop.permute.xlu0 %2604
    %v2607 = vlaneseq
    %v2608 = vshrl.u32 %v2607, 7
    %v2609 = vsub.s32 0, %v2608
    %v2610 = vrot.slane %v36, %v2609
    %v2611 = vadd.f32 %v2605, %v2610
    %2612 = vset.pattern.permute.xlu0 1
    %2613 = vperm.xlu0 %2612, %v2601
    %v2614 = vpop.permute.xlu0 %2613
    %v2616 = vlaneseq
    %v2617 = vshrl.u32 %v2616, 7
    %v2618 = vsub.s32 1, %v2617
    %v2619 = vrot.slane %v36, %v2618
    %v2620 = vadd.f32 %v2614, %v2619
    %vm2621 = vcmp.gt.f32.partialorder %v2620, %v2611
    %v2622 = vsel %vm2621, 1, 0
    %v2623 = vmax.f32 %v2611, %v2620
    %2624 = vset.pattern.permute.xlu0 2
    %2625 = vperm.xlu0 %2624, %v2601
    %v2626 = vpop.permute.xlu0 %2625
    %v2628 = vlaneseq
    %v2629 = vshrl.u32 %v2628, 7
    %v2630 = vsub.s32 2, %v2629
    %v2631 = vrot.slane %v36, %v2630
    %v2632 = vadd.f32 %v2626, %v2631
    %vm2633 = vcmp.gt.f32.partialorder %v2632, %v2623
    %v2634 = vsel %vm2633, 2, %v2622
    %v2635 = vmax.f32 %v2623, %v2632
    %2636 = vset.pattern.permute.xlu0 3
    %2637 = vperm.xlu0 %2636, %v2601
    %v2638 = vpop.permute.xlu0 %2637
    %v2640 = vlaneseq
    %v2641 = vshrl.u32 %v2640, 7
    %v2642 = vsub.s32 3, %v2641
    %v2643 = vrot.slane %v36, %v2642
    %v2644 = vadd.f32 %v2638, %v2643
    %vm2645 = vcmp.gt.f32.partialorder %v2644, %v2635
    %v2646 = vsel %vm2645, 3, %v2634
    %v2647 = vmax.f32 %v2635, %v2644
    %2648 = vset.pattern.permute.xlu0 4
    %2649 = vperm.xlu0 %2648, %v2601
    %v2650 = vpop.permute.xlu0 %2649
    %v2652 = vlaneseq
    %v2653 = vshrl.u32 %v2652, 7
    %v2654 = vsub.s32 4, %v2653
    %v2655 = vrot.slane %v36, %v2654
    %v2656 = vadd.f32 %v2650, %v2655
    %vm2657 = vcmp.gt.f32.partialorder %v2656, %v2647
    %v2658 = vsel %vm2657, 4, %v2646
    %v2659 = vmax.f32 %v2647, %v2656
    %vm2660 = vcmp.gt.f32.partialorder %v201, 0.0
    %v2661 = vadd.f32 %v2659, %v2335
    %v2662 = vsel %vm2660, 1, 0
    %2663 = vset.pattern.permute.xlu0 1
    %2664 = vperm.xlu0 %2663, %v2662
    %v2665 = vpop.permute.xlu0 %2664
    %vm2666 = vcmp.eq.s32.totalorder %v2665, 1
    %v2667 = vsel %vm2666, %v2661, %v2601
    %2669 = vset.pattern.permute.xlu0 0
    %2670 = vperm.xlu0 %2669, %v2667
    %v2671 = vpop.permute.xlu0 %2670
    %v2673 = vadd.f32 %v2671, %v2610
    %2674 = vset.pattern.permute.xlu0 1
    %2675 = vperm.xlu0 %2674, %v2667
    %v2676 = vpop.permute.xlu0 %2675
    %v2678 = vadd.f32 %v2676, %v2619
    %vm2679 = vcmp.gt.f32.partialorder %v2678, %v2673
    %v2680 = vsel %vm2679, 1, 0
    %v2681 = vmax.f32 %v2673, %v2678
    %2682 = vset.pattern.permute.xlu0 2
    %2683 = vperm.xlu0 %2682, %v2667
    %v2684 = vpop.permute.xlu0 %2683
    %v2686 = vadd.f32 %v2684, %v2631
    %vm2687 = vcmp.gt.f32.partialorder %v2686, %v2681
    %v2688 = vsel %vm2687, 2, %v2680
    %v2689 = vmax.f32 %v2681, %v2686
    %2690 = vset.pattern.permute.xlu0 3
    %2691 = vperm.xlu0 %2690, %v2667
    %v2692 = vpop.permute.xlu0 %2691
    %v2694 = vadd.f32 %v2692, %v2643
    %vm2695 = vcmp.gt.f32.partialorder %v2694, %v2689
    %v2696 = vsel %vm2695, 3, %v2688
    %v2697 = vmax.f32 %v2689, %v2694
    %2698 = vset.pattern.permute.xlu0 4
    %2699 = vperm.xlu0 %2698, %v2667
    %v2700 = vpop.permute.xlu0 %2699
    %v2702 = vadd.f32 %v2700, %v2655
    %vm2703 = vcmp.gt.f32.partialorder %v2702, %v2697
    %v2704 = vsel %vm2703, 4, %v2696
    %v2705 = vmax.f32 %v2697, %v2702
    %v2706 = vadd.f32 %v2705, %v2378
    %2707 = vset.pattern.permute.xlu0 2
    %2708 = vperm.xlu0 %2707, %v2662
    %v2709 = vpop.permute.xlu0 %2708
    %vm2710 = vcmp.eq.s32.totalorder %v2709, 1
    %v2711 = vsel %vm2710, %v2706, %v2667
    %2713 = vset.pattern.permute.xlu0 0
    %2714 = vperm.xlu0 %2713, %v2711
    %v2715 = vpop.permute.xlu0 %2714
    %v2717 = vadd.f32 %v2715, %v2610
    %2718 = vset.pattern.permute.xlu0 1
    %2719 = vperm.xlu0 %2718, %v2711
    %v2720 = vpop.permute.xlu0 %2719
    %v2722 = vadd.f32 %v2720, %v2619
    %vm2723 = vcmp.gt.f32.partialorder %v2722, %v2717
    %v2724 = vsel %vm2723, 1, 0
    %v2725 = vmax.f32 %v2717, %v2722
    %2726 = vset.pattern.permute.xlu0 2
    %2727 = vperm.xlu0 %2726, %v2711
    %v2728 = vpop.permute.xlu0 %2727
    %v2730 = vadd.f32 %v2728, %v2631
    %vm2731 = vcmp.gt.f32.partialorder %v2730, %v2725
    %v2732 = vsel %vm2731, 2, %v2724
    %v2733 = vmax.f32 %v2725, %v2730
    %2734 = vset.pattern.permute.xlu0 3
    %2735 = vperm.xlu0 %2734, %v2711
    %v2736 = vpop.permute.xlu0 %2735
    %v2738 = vadd.f32 %v2736, %v2643
    %vm2739 = vcmp.gt.f32.partialorder %v2738, %v2733
    %v2740 = vsel %vm2739, 3, %v2732
    %v2741 = vmax.f32 %v2733, %v2738
    %2742 = vset.pattern.permute.xlu0 4
    %2743 = vperm.xlu0 %2742, %v2711
    %v2744 = vpop.permute.xlu0 %2743
    %v2746 = vadd.f32 %v2744, %v2655
    %vm2747 = vcmp.gt.f32.partialorder %v2746, %v2741
    %v2748 = vsel %vm2747, 4, %v2740
    %v2749 = vmax.f32 %v2741, %v2746
    %v2750 = vadd.f32 %v2749, %v2421
    %2751 = vset.pattern.permute.xlu0 3
    %2752 = vperm.xlu0 %2751, %v2662
    %v2753 = vpop.permute.xlu0 %2752
    %vm2754 = vcmp.eq.s32.totalorder %v2753, 1
    %v2755 = vsel %vm2754, %v2750, %v2711
    %2757 = vset.pattern.permute.xlu0 0
    %2758 = vperm.xlu0 %2757, %v2755
    %v2759 = vpop.permute.xlu0 %2758
    %v2761 = vadd.f32 %v2759, %v2610
    %2762 = vset.pattern.permute.xlu0 1
    %2763 = vperm.xlu0 %2762, %v2755
    %v2764 = vpop.permute.xlu0 %2763
    %v2766 = vadd.f32 %v2764, %v2619
    %vm2767 = vcmp.gt.f32.partialorder %v2766, %v2761
    %v2768 = vsel %vm2767, 1, 0
    %v2769 = vmax.f32 %v2761, %v2766
    %2770 = vset.pattern.permute.xlu0 2
    %2771 = vperm.xlu0 %2770, %v2755
    %v2772 = vpop.permute.xlu0 %2771
    %v2774 = vadd.f32 %v2772, %v2631
    %vm2775 = vcmp.gt.f32.partialorder %v2774, %v2769
    %v2776 = vsel %vm2775, 2, %v2768
    %v2777 = vmax.f32 %v2769, %v2774
    %2778 = vset.pattern.permute.xlu0 3
    %2779 = vperm.xlu0 %2778, %v2755
    %v2780 = vpop.permute.xlu0 %2779
    %v2782 = vadd.f32 %v2780, %v2643
    %vm2783 = vcmp.gt.f32.partialorder %v2782, %v2777
    %v2784 = vsel %vm2783, 3, %v2776
    %v2785 = vmax.f32 %v2777, %v2782
    %2786 = vset.pattern.permute.xlu0 4
    %2787 = vperm.xlu0 %2786, %v2755
    %v2788 = vpop.permute.xlu0 %2787
    %v2790 = vadd.f32 %v2788, %v2655
    %vm2791 = vcmp.gt.f32.partialorder %v2790, %v2785
    %v2792 = vsel %vm2791, 4, %v2784
    %v2793 = vmax.f32 %v2785, %v2790
    %v2794 = vadd.f32 %v2793, %v2464
    %2795 = vset.pattern.permute.xlu0 4
    %2796 = vperm.xlu0 %2795, %v2662
    %v2797 = vpop.permute.xlu0 %2796
    %vm2798 = vcmp.eq.s32.totalorder %v2797, 1
    %v2799 = vsel %vm2798, %v2794, %v2755
    %2801 = vset.pattern.permute.xlu0 0
    %2802 = vperm.xlu0 %2801, %v2799
    %v2803 = vpop.permute.xlu0 %2802
    %v2805 = vadd.f32 %v2803, %v2610
    %2806 = vset.pattern.permute.xlu0 1
    %2807 = vperm.xlu0 %2806, %v2799
    %v2808 = vpop.permute.xlu0 %2807
    %v2810 = vadd.f32 %v2808, %v2619
    %vm2811 = vcmp.gt.f32.partialorder %v2810, %v2805
    %v2812 = vsel %vm2811, 1, 0
    %v2813 = vmax.f32 %v2805, %v2810
    %2814 = vset.pattern.permute.xlu0 2
    %2815 = vperm.xlu0 %2814, %v2799
    %v2816 = vpop.permute.xlu0 %2815
    %v2818 = vadd.f32 %v2816, %v2631
    %vm2819 = vcmp.gt.f32.partialorder %v2818, %v2813
    %v2820 = vsel %vm2819, 2, %v2812
    %v2821 = vmax.f32 %v2813, %v2818
    %2822 = vset.pattern.permute.xlu0 3
    %2823 = vperm.xlu0 %2822, %v2799
    %v2824 = vpop.permute.xlu0 %2823
    %v2826 = vadd.f32 %v2824, %v2643
    %vm2827 = vcmp.gt.f32.partialorder %v2826, %v2821
    %v2828 = vsel %vm2827, 3, %v2820
    %v2829 = vmax.f32 %v2821, %v2826
    %2830 = vset.pattern.permute.xlu0 4
    %2831 = vperm.xlu0 %2830, %v2799
    %v2832 = vpop.permute.xlu0 %2831
    %v2834 = vadd.f32 %v2832, %v2655
    %vm2835 = vcmp.gt.f32.partialorder %v2834, %v2829
    %v2836 = vsel %vm2835, 4, %v2828
    %v2837 = vmax.f32 %v2829, %v2834
    %v2838 = vadd.f32 %v2837, %v2507
    %2839 = vset.pattern.permute.xlu0 5
    %2840 = vperm.xlu0 %2839, %v2662
    %v2841 = vpop.permute.xlu0 %2840
    %vm2842 = vcmp.eq.s32.totalorder %v2841, 1
    %v2843 = vsel %vm2842, %v2838, %v2799
    %2845 = vset.pattern.permute.xlu0 0
    %2846 = vperm.xlu0 %2845, %v2843
    %v2847 = vpop.permute.xlu0 %2846
    %v2849 = vadd.f32 %v2847, %v2610
    %2850 = vset.pattern.permute.xlu0 1
    %2851 = vperm.xlu0 %2850, %v2843
    %v2852 = vpop.permute.xlu0 %2851
    %v2854 = vadd.f32 %v2852, %v2619
    %vm2855 = vcmp.gt.f32.partialorder %v2854, %v2849
    %v2856 = vsel %vm2855, 1, 0
    %v2857 = vmax.f32 %v2849, %v2854
    %2858 = vset.pattern.permute.xlu0 2
    %2859 = vperm.xlu0 %2858, %v2843
    %v2860 = vpop.permute.xlu0 %2859
    %v2862 = vadd.f32 %v2860, %v2631
    %vm2863 = vcmp.gt.f32.partialorder %v2862, %v2857
    %v2864 = vsel %vm2863, 2, %v2856
    %v2865 = vmax.f32 %v2857, %v2862
    %2866 = vset.pattern.permute.xlu0 3
    %2867 = vperm.xlu0 %2866, %v2843
    %v2868 = vpop.permute.xlu0 %2867
    %v2870 = vadd.f32 %v2868, %v2643
    %vm2871 = vcmp.gt.f32.partialorder %v2870, %v2865
    %v2872 = vsel %vm2871, 3, %v2864
    %v2873 = vmax.f32 %v2865, %v2870
    %2874 = vset.pattern.permute.xlu0 4
    %2875 = vperm.xlu0 %2874, %v2843
    %v2876 = vpop.permute.xlu0 %2875
    %v2878 = vadd.f32 %v2876, %v2655
    %vm2879 = vcmp.gt.f32.partialorder %v2878, %v2873
    %v2880 = vsel %vm2879, 4, %v2872
    %v2881 = vmax.f32 %v2873, %v2878
    %v2882 = vadd.f32 %v2881, %v2550
    %2883 = vset.pattern.permute.xlu0 6
    %2884 = vperm.xlu0 %2883, %v2662
    %v2885 = vpop.permute.xlu0 %2884
    %vm2886 = vcmp.eq.s32.totalorder %v2885, 1
    %v2887 = vsel %vm2886, %v2882, %v2843
    %2889 = vset.pattern.permute.xlu0 0
    %2890 = vperm.xlu0 %2889, %v2887
    %v2891 = vpop.permute.xlu0 %2890
    %v2893 = vadd.f32 %v2891, %v2610
    %2894 = vset.pattern.permute.xlu0 1
    %2895 = vperm.xlu0 %2894, %v2887
    %v2896 = vpop.permute.xlu0 %2895
    %v2898 = vadd.f32 %v2896, %v2619
    %vm2899 = vcmp.gt.f32.partialorder %v2898, %v2893
    %v2900 = vsel %vm2899, 1, 0
    %v2901 = vmax.f32 %v2893, %v2898
    %2902 = vset.pattern.permute.xlu0 2
    %2903 = vperm.xlu0 %2902, %v2887
    %v2904 = vpop.permute.xlu0 %2903
    %v2906 = vadd.f32 %v2904, %v2631
    %vm2907 = vcmp.gt.f32.partialorder %v2906, %v2901
    %v2908 = vsel %vm2907, 2, %v2900
    %v2909 = vmax.f32 %v2901, %v2906
    %2910 = vset.pattern.permute.xlu0 3
    %2911 = vperm.xlu0 %2910, %v2887
    %v2912 = vpop.permute.xlu0 %2911
    %v2914 = vadd.f32 %v2912, %v2643
    %vm2915 = vcmp.gt.f32.partialorder %v2914, %v2909
    %v2916 = vsel %vm2915, 3, %v2908
    %v2917 = vmax.f32 %v2909, %v2914
    %2918 = vset.pattern.permute.xlu0 4
    %2919 = vperm.xlu0 %2918, %v2887
    %v2920 = vpop.permute.xlu0 %2919
    %v2922 = vadd.f32 %v2920, %v2655
    %vm2923 = vcmp.gt.f32.partialorder %v2922, %v2917
    %v2924 = vsel %vm2923, 4, %v2916
    %v2925 = vmax.f32 %v2917, %v2922
    %v2926 = vadd.f32 %v2925, %v2596
    %2927 = vset.pattern.permute.xlu0 7
    %2928 = vperm.xlu0 %2927, %v2662
    %v2929 = vpop.permute.xlu0 %2928
    %vm2930 = vcmp.eq.s32.totalorder %v2929, 1
    %v2931 = vsel %vm2930, %v2926, %v2887
    %v2932 = vlaneseq
    %v2933 = vshrl.u32 %v2932, 7
    %v2934 = vsub.s32 0, %v2933
    %v2935 = vrot.slane %v35, %v2934
    %v2936 = vadd.f32 %v2931, %v2935
    %vm2937 = vcmask 33792
    %v2938 = vsel %vm2937, %v2936, -inf
    %2939 = vmax.xlane.f32.xlu0 %v2938
    %v2940 = vpop.xlane.xlu0 %2939
    %vm2941 = vcmp.eq.f32.partialorder %v2936, %v2940
    %v2942 = vsel %vm2941, %v89, 5
    %v2943 = vsel %vm2937, %v2942, 2147483647
    %v2944 = vand.u32 %v2943, 65535
    %v2945 = vshra.s32 %v2943, 16
    %v2946 = vcvt.s32.f32 %v2944
    %v2947 = vcvt.s32.f32 %v2945
    %2948 = vmin.xlane.f32.xlu0 %v2947
    %v2949 = vpop.xlane.xlu0 %2948
    %vm2950 = vcmp.eq.f32.partialorder %v2947, %v2949
    %v2951 = vsel %vm2950, %v2946, inf
    %2952 = vmin.xlane.f32.xlu0 %v2951
    %v2953 = vpop.xlane.xlu0 %2952
    %v2954 = vcvt.f32.s32 %v2953
    %v2955 = vcvt.f32.s32 %v2949
    %v2956 = vshll.u32 %v2955, 16
    %v2957 = vadd.s32 %v2956, %v2954
    %vm2958 = vcmp.eq.s32.totalorder %v89, 7
    %v2959 = vsel %vm2958, %v2957, 0
    %vm2960 = vcmp.eq.s32.totalorder %v89, %v2957
    %v2961 = vsel %vm2960, %v2924, 4294967295
    %v2962 = vsel %vm2937, %v2961, 2147483648
    %v2963 = vand.u32 %v2962, 65535
    %v2964 = vshra.s32 %v2962, 16
    %v2965 = vcvt.s32.f32 %v2963
    %v2966 = vcvt.s32.f32 %v2964
    %2967 = vmax.xlane.f32.xlu0 %v2966
    %v2968 = vpop.xlane.xlu0 %2967
    %vm2969 = vcmp.eq.f32.partialorder %v2966, %v2968
    %v2970 = vsel %vm2969, %v2965, -inf
    %2971 = vmax.xlane.f32.xlu0 %v2970
    %v2972 = vpop.xlane.xlu0 %2971
    %v2973 = vcvt.f32.s32 %v2972
    %v2974 = vcvt.f32.s32 %v2968
    %v2975 = vshll.u32 %v2974, 16
    %v2976 = vadd.s32 %v2975, %v2973
    %v2977 = vsel %vm2660, %v2976, %v2957
    %vm2978 = vcmp.eq.s32.totalorder %v89, 6
    %2979 = vset.pattern.permute.xlu0 7
    %2980 = vperm.xlu0 %2979, %v2977
    %v2981 = vpop.permute.xlu0 %2980
    %v2982 = vsel %vm2978, %v2981, 0
    %v2983 = vadd.s32 %v2959, %v2982
    %vm2984 = vcmp.eq.s32.totalorder %v89, %v2981
    %v2985 = vsel %vm2984, %v2880, 4294967295
    %v2986 = vsel %vm2937, %v2985, 2147483648
    %v2987 = vand.u32 %v2986, 65535
    %v2988 = vshra.s32 %v2986, 16
    %v2989 = vcvt.s32.f32 %v2987
    %v2990 = vcvt.s32.f32 %v2988
    %2991 = vmax.xlane.f32.xlu0 %v2990
    %v2992 = vpop.xlane.xlu0 %2991
    %vm2993 = vcmp.eq.f32.partialorder %v2990, %v2992
    %v2994 = vsel %vm2993, %v2989, -inf
    %2995 = vmax.xlane.f32.xlu0 %v2994
    %v2996 = vpop.xlane.xlu0 %2995
    %v2997 = vcvt.f32.s32 %v2996
    %v2998 = vcvt.f32.s32 %v2992
    %v2999 = vshll.u32 %v2998, 16
    %v3000 = vadd.s32 %v2999, %v2997
    %3001 = vrot.lane.b32.xlu0 %v2977, 127
    %v3002 = vpop.permute.xlu0 %3001
    %v3003 = vsel %vm2660, %v3000, %v3002
    %vm3004 = vcmp.eq.s32.totalorder %v89, 5
    %3005 = vset.pattern.permute.xlu0 6
    %3006 = vperm.xlu0 %3005, %v3003
    %v3007 = vpop.permute.xlu0 %3006
    %v3008 = vsel %vm3004, %v3007, 0
    %v3009 = vadd.s32 %v2983, %v3008
    %vm3010 = vcmp.eq.s32.totalorder %v89, %v3007
    %v3011 = vsel %vm3010, %v2836, 4294967295
    %v3012 = vsel %vm2937, %v3011, 2147483648
    %v3013 = vand.u32 %v3012, 65535
    %v3014 = vshra.s32 %v3012, 16
    %v3015 = vcvt.s32.f32 %v3013
    %v3016 = vcvt.s32.f32 %v3014
    %3017 = vmax.xlane.f32.xlu0 %v3016
    %v3018 = vpop.xlane.xlu0 %3017
    %vm3019 = vcmp.eq.f32.partialorder %v3016, %v3018
    %v3020 = vsel %vm3019, %v3015, -inf
    %3021 = vmax.xlane.f32.xlu0 %v3020
    %v3022 = vpop.xlane.xlu0 %3021
    %v3023 = vcvt.f32.s32 %v3022
    %v3024 = vcvt.f32.s32 %v3018
    %v3025 = vshll.u32 %v3024, 16
    %v3026 = vadd.s32 %v3025, %v3023
    %3027 = vrot.lane.b32.xlu0 %v3003, 127
    %v3028 = vpop.permute.xlu0 %3027
    %v3029 = vsel %vm2660, %v3026, %v3028
    %vm3030 = vcmp.eq.s32.totalorder %v89, 4
    %3031 = vset.pattern.permute.xlu0 5
    %3032 = vperm.xlu0 %3031, %v3029
    %v3033 = vpop.permute.xlu0 %3032
    %v3034 = vsel %vm3030, %v3033, 0
    %v3035 = vadd.s32 %v3009, %v3034
    %vm3036 = vcmp.eq.s32.totalorder %v89, %v3033
    %v3037 = vsel %vm3036, %v2792, 4294967295
    %v3038 = vsel %vm2937, %v3037, 2147483648
    %v3039 = vand.u32 %v3038, 65535
    %v3040 = vshra.s32 %v3038, 16
    %v3041 = vcvt.s32.f32 %v3039
    %v3042 = vcvt.s32.f32 %v3040
    %3043 = vmax.xlane.f32.xlu0 %v3042
    %v3044 = vpop.xlane.xlu0 %3043
    %vm3045 = vcmp.eq.f32.partialorder %v3042, %v3044
    %v3046 = vsel %vm3045, %v3041, -inf
    %3047 = vmax.xlane.f32.xlu0 %v3046
    %v3048 = vpop.xlane.xlu0 %3047
    %v3049 = vcvt.f32.s32 %v3048
    %v3050 = vcvt.f32.s32 %v3044
    %v3051 = vshll.u32 %v3050, 16
    %v3052 = vadd.s32 %v3051, %v3049
    %3053 = vrot.lane.b32.xlu0 %v3029, 127
    %v3054 = vpop.permute.xlu0 %3053
    %v3055 = vsel %vm2660, %v3052, %v3054
    %vm3056 = vcmp.eq.s32.totalorder %v89, 3
    %3057 = vset.pattern.permute.xlu0 4
    %3058 = vperm.xlu0 %3057, %v3055
    %v3059 = vpop.permute.xlu0 %3058
    %v3060 = vsel %vm3056, %v3059, 0
    %v3061 = vadd.s32 %v3035, %v3060
    %vm3062 = vcmp.eq.s32.totalorder %v89, %v3059
    %v3063 = vsel %vm3062, %v2748, 4294967295
    %v3064 = vsel %vm2937, %v3063, 2147483648
    %v3065 = vand.u32 %v3064, 65535
    %v3066 = vshra.s32 %v3064, 16
    %v3067 = vcvt.s32.f32 %v3065
    %v3068 = vcvt.s32.f32 %v3066
    %3069 = vmax.xlane.f32.xlu0 %v3068
    %v3070 = vpop.xlane.xlu0 %3069
    %vm3071 = vcmp.eq.f32.partialorder %v3068, %v3070
    %v3072 = vsel %vm3071, %v3067, -inf
    %3073 = vmax.xlane.f32.xlu0 %v3072
    %v3074 = vpop.xlane.xlu0 %3073
    %v3075 = vcvt.f32.s32 %v3074
    %v3076 = vcvt.f32.s32 %v3070
    %v3077 = vshll.u32 %v3076, 16
    %v3078 = vadd.s32 %v3077, %v3075
    %3079 = vrot.lane.b32.xlu0 %v3055, 127
    %v3080 = vpop.permute.xlu0 %3079
    %v3081 = vsel %vm2660, %v3078, %v3080
    %vm3082 = vcmp.eq.s32.totalorder %v89, 2
    %3083 = vset.pattern.permute.xlu0 3
    %3084 = vperm.xlu0 %3083, %v3081
    %v3085 = vpop.permute.xlu0 %3084
    %v3086 = vsel %vm3082, %v3085, 0
    %v3087 = vadd.s32 %v3061, %v3086
    %vm3088 = vcmp.eq.s32.totalorder %v89, %v3085
    %v3089 = vsel %vm3088, %v2704, 4294967295
    %v3090 = vsel %vm2937, %v3089, 2147483648
    %v3091 = vand.u32 %v3090, 65535
    %v3092 = vshra.s32 %v3090, 16
    %v3093 = vcvt.s32.f32 %v3091
    %v3094 = vcvt.s32.f32 %v3092
    %3095 = vmax.xlane.f32.xlu0 %v3094
    %v3096 = vpop.xlane.xlu0 %3095
    %vm3097 = vcmp.eq.f32.partialorder %v3094, %v3096
    %v3098 = vsel %vm3097, %v3093, -inf
    %3099 = vmax.xlane.f32.xlu0 %v3098
    %v3100 = vpop.xlane.xlu0 %3099
    %v3101 = vcvt.f32.s32 %v3100
    %v3102 = vcvt.f32.s32 %v3096
    %v3103 = vshll.u32 %v3102, 16
    %v3104 = vadd.s32 %v3103, %v3101
    %3105 = vrot.lane.b32.xlu0 %v3081, 127
    %v3106 = vpop.permute.xlu0 %3105
    %v3107 = vsel %vm2660, %v3104, %v3106
    %vm3108 = vcmp.eq.s32.totalorder %v89, 1
    %3109 = vset.pattern.permute.xlu0 2
    %3110 = vperm.xlu0 %3109, %v3107
    %v3111 = vpop.permute.xlu0 %3110
    %v3112 = vsel %vm3108, %v3111, 0
    %v3113 = vadd.s32 %v3087, %v3112
    %vm3114 = vcmp.eq.s32.totalorder %v89, %v3111
    %v3115 = vsel %vm3114, %v2658, 4294967295
    %v3116 = vsel %vm2937, %v3115, 2147483648
    %v3117 = vand.u32 %v3116, 65535
    %v3118 = vshra.s32 %v3116, 16
    %v3119 = vcvt.s32.f32 %v3117
    %v3120 = vcvt.s32.f32 %v3118
    %3121 = vmax.xlane.f32.xlu0 %v3120
    %v3122 = vpop.xlane.xlu0 %3121
    %vm3123 = vcmp.eq.f32.partialorder %v3120, %v3122
    %v3124 = vsel %vm3123, %v3119, -inf
    %3125 = vmax.xlane.f32.xlu0 %v3124
    %v3126 = vpop.xlane.xlu0 %3125
    %v3127 = vcvt.f32.s32 %v3126
    %v3128 = vcvt.f32.s32 %v3122
    %v3129 = vshll.u32 %v3128, 16
    %v3130 = vadd.s32 %v3129, %v3127
    %3131 = vrot.lane.b32.xlu0 %v3107, 127
    %v3132 = vpop.permute.xlu0 %3131
    %v3133 = vsel %vm2660, %v3130, %v3132
    %vm3134 = vcmp.eq.s32.totalorder %v89, 0
    %3135 = vset.pattern.permute.xlu0 1
    %3136 = vperm.xlu0 %3135, %v3133
    %v3137 = vpop.permute.xlu0 %3136
    %v3138 = vsel %vm3134, %v3137, 0
    %v3139 = vadd.s32 %v3113, %v3138
    %vm3140 = vcmask 58368
    %3141 = vst.msk [vmem:[#allocation2] sm:$0x3] %vm3140, %v3139
    // Predicated region
    $region22: #{bert_bilstm_crf_forward.1} parent=1 // pred_check
      _
    $region23: #{bert_bilstm_crf_forward.1} parent=1 // pred_check_branch
      %3143 = sbr.rel (0) target = $region25
    $region24: #{bert_bilstm_crf_forward.1} parent=1 // pred_region
      %s3145 = ssub.s32 32, 32
      %3146 = vsyncadd [#allocation3], %s3145
      %s3148 = sshll.u32 [#allocation2], 4
      %s3149 = int_to_ptr.vmem [resolvable:$true] %s3148
      %3151 = dma.vmem_to_hbm [thread:$0]  %s3149, 32, %s5, [#allocation3]
    $region25: #{bert_bilstm_crf_forward.1} parent=1 // pred_fallthru
      _
    // Predicated region
    $region26: #{bert_bilstm_crf_forward.1} parent=1 // pred_check
      _
    $region27: #{bert_bilstm_crf_forward.1} parent=1 // pred_check_branch
      %3153 = sbr.rel (0) target = $region29
    $region28: #{bert_bilstm_crf_forward.1} parent=1 // pred_region
      %3154 = dma.done [#allocation3], 32
    $region29: #{bert_bilstm_crf_forward.1} parent=1 // pred_fallthru
      _
    %3155 = vsyncpa [#allocation3], 1

</llo_original>
